<compile_context>
chip_gen: v7x
topology: tpu7x:2x2x1
jax: 0.10.0
libtpu: 0.0.40
codegen_flags: <defaults>
</compile_context>

<pallas_src>
import functools
import math

import jax
import jax.numpy as jnp
from jax.experimental import pallas as pl
from jax.experimental.pallas import tpu as pltpu


# -----------------------------------------------------------------------------
# Pallas kernel: one layer's full (B, T) recurrence. One grid step = one
# (batch-element, timestep) cell update.
# -----------------------------------------------------------------------------
def _convlstm_layer_kernel(x_ref, h0_ref, c0_ref, w_ref, b_ref,      # inputs
                           h_all_ref, c_last_ref,                     # outputs
                           slab_ref, hst_ref, cst_ref, gates_ref,     # scratch
                           *, H, W, Cin, Chid, kh, kw, margin):
    HW = H * W
    Ctot = Cin + Chid
    ph, pw = kh // 2, kw // 2
    t = pl.program_id(1)
    n_t = pl.num_programs(1)

    # ---- per-batch-element init (t == 0): zero the padded margins once and
    #      load the initial hidden/cell state.  The slab interior is fully
    #      overwritten every step, so the margins stay zero afterwards.
    @pl.when(t == 0)
    def _init():
        slab_ref[...] = jnp.zeros_like(slab_ref)
        hst_ref[...] = h0_ref[0]
        cst_ref[...] = c0_ref[0]

    # ---- write h_prev and x_t into the combined slab interior ([h; x] rows).
    slab_ref[0:Chid, margin:margin + HW] = hst_ref[...].astype(slab_ref.dtype)
    slab_ref[Chid:Ctot, margin:margin + HW] = x_ref[0, 0].astype(slab_ref.dtype)

    # ---- conv(cat(x, h)) + bias as kh*kw shifted matmuls, f32 accumulation.
    gates_ref[...] = jnp.broadcast_to(b_ref[...], (4 * Chid, HW))
    xcol = jax.lax.broadcasted_iota(jnp.int32, (Ctot, HW), 1) % W
    for tap in range(kh * kw):
        dy, dx = tap // kw, tap % kw
        offy, offx = dy - ph, dx - pw
        start = margin + offy * W + offx           # static lane offset
        col = slab_ref[:, start:start + HW]        # (Ctot, HW) shifted window
        # Zero the columns whose horizontal source pixel is out of the image
        # (the vertical out-of-range positions land in the zeroed margins).
        if offx < 0:
            col = jnp.where(xcol < -offx, 0.0, col).astype(col.dtype)
        elif offx > 0:
            col = jnp.where(xcol >= W - offx, 0.0, col).astype(col.dtype)
        gates_ref[...] += jnp.dot(w_ref[tap], col,
                                  preferred_element_type=jnp.float32)

    # ---- LSTM gates. Channel-major => sublane slices (multiples of 32 rows),
    #      every elementwise op is full-lane (HW lanes).
    gates = gates_ref[...]
    i = jax.nn.sigmoid(gates[0 * Chid:1 * Chid, :])
    f = jax.nn.sigmoid(gates[1 * Chid:2 * Chid, :])
    o = jax.nn.sigmoid(gates[2 * Chid:3 * Chid, :])
    g = jnp.tanh(gates[3 * Chid:4 * Chid, :])

    c_new = f * cst_ref[...] + i * g
    h_new = o * jnp.tanh(c_new)

    cst_ref[...] = c_new
    hst_ref[...] = h_new
    h_all_ref[0, 0] = h_new.astype(h_all_ref.dtype)

    @pl.when(t == n_t - 1)
    def _final():
        c_last_ref[0] = c_new.astype(c_last_ref.dtype)


# -----------------------------------------------------------------------------
# One ConvLSTM layer over the whole sequence (single pallas_call, grid=(B, T)).
#   x:  (T, B, Cin, H*W)   h0, c0: (B, Chid, H*W)
#   w:  (4*Chid, Cin+Chid, kh, kw)  (PyTorch conv weight, in-channels = [x; h])
#   b:  (4*Chid,)
# Returns h_all: (T, B, Chid, H*W), c_last: (B, Chid, H*W).
# -----------------------------------------------------------------------------
def convlstm_layer_scan(x, h0, c0, w, b, *, H, W, matmul_dtype=jnp.float32):
    T, B, Cin, HW = x.shape
    Chid = h0.shape[1]
    four_hid = 4 * Chid
    kh, kw = int(w.shape[2]), int(w.shape[3])
    Ctot = Cin + Chid
    ph, pw = kh // 2, kw // 2
    # Lane margin for the shifted-window slices (>= ph*W + pw, 128-aligned so
    # the steady-state interior writes are lane-aligned).
    margin = max(128, ((ph * W + pw + 127) // 128) * 128)

    # Reorder conv in-channels from PyTorch's cat(x, h) order to [h; x] (slab
    # row order) and pre-flatten to one (kh*kw, 4*Chid, Ctot) weight slab.
    w_hx = jnp.concatenate([w[:, Cin:], w[:, :Cin]], axis=1)
    w_taps = jnp.transpose(w_hx, (2, 3, 0, 1)).reshape(kh * kw, four_hid, Ctot)
    w_taps = w_taps.astype(matmul_dtype)
    bias = b.reshape(four_hid, 1).astype(jnp.float32)

    kernel = functools.partial(_convlstm_layer_kernel, H=H, W=W, Cin=Cin,
                               Chid=Chid, kh=kh, kw=kw, margin=margin)

    h_all, c_last = pl.pallas_call(
        kernel,
        out_shape=(jax.ShapeDtypeStruct((T, B, Chid, HW), jnp.float32),
                   jax.ShapeDtypeStruct((B, Chid, HW), jnp.float32)),
        grid_spec=pltpu.PrefetchScalarGridSpec(
            num_scalar_prefetch=0,
            grid=(B, T),                      # batch outer, time inner
            in_specs=[
                pl.BlockSpec((1, 1, Cin, HW), lambda bb, tt: (tt, bb, 0, 0)),
                pl.BlockSpec((1, Chid, HW), lambda bb, tt: (bb, 0, 0)),
                pl.BlockSpec((1, Chid, HW), lambda bb, tt: (bb, 0, 0)),
                # Weights / bias: constant index_map -> loaded once, VMEM-resident.
                pl.BlockSpec((kh * kw, four_hid, Ctot), lambda bb, tt: (0, 0, 0)),
                pl.BlockSpec((four_hid, 1), lambda bb, tt: (0, 0)),
            ],
            out_specs=[
                pl.BlockSpec((1, 1, Chid, HW), lambda bb, tt: (tt, bb, 0, 0)),
                pl.BlockSpec((1, Chid, HW), lambda bb, tt: (bb, 0, 0)),
            ],
            scratch_shapes=[
                pltpu.VMEM((Ctot, HW + 2 * margin), matmul_dtype),  # padded slab
                pltpu.VMEM((Chid, HW), jnp.float32),                # h state
                pltpu.VMEM((Chid, HW), jnp.float32),                # c state
                pltpu.VMEM((four_hid, HW), jnp.float32),            # gate acc
            ]),
        compiler_params=pltpu.CompilerParams(
            dimension_semantics=("parallel", "arbitrary")),
    )(x, h0, c0, w_taps, bias)
    return h_all, c_last


# -----------------------------------------------------------------------------
# Parameter init (mirrors ConvLSTMCell.reset_parameters: xavier_uniform with
# gain('tanh') = 5/3 on the conv weight, zero bias). peephole=False, bn=False.
# Returns PyTorch-layout params: list of (w (4h, cin+h, kh, kw), b (4h,)).
# -----------------------------------------------------------------------------
def init_convlstm_params(key, input_dim, hidden_dims, kernel_sizes):
    params = []
    for layer, (hid, (kh, kw)) in enumerate(zip(hidden_dims, kernel_sizes)):
        cin = input_dim if layer == 0 else hidden_dims[layer - 1]
        fan_in = (cin + hid) * kh * kw
        fan_out = 4 * hid * kh * kw
        gain = 5.0 / 3.0  # calculate_gain('tanh')
        bound = gain * math.sqrt(6.0 / (fan_in + fan_out))
        key, sub = jax.random.split(key)
        w = jax.random.uniform(sub, (4 * hid, cin + hid, kh, kw),
                               jnp.float32, minval=-bound, maxval=bound)
        b = jnp.zeros((4 * hid,), jnp.float32)
        params.append((w, b))
    return params


# -----------------------------------------------------------------------------
# Full ConvLSTM forward (matches ConvLSTM.forward, batch_first=False default).
#   x: (T, B, C, H, W)  ->  layer_output (T, B, hid[-1], H, W),
#                           last_state_list [(h, c)] in NCHW per layer.
# -----------------------------------------------------------------------------
def convlstm_forward(x, params_torch, hidden_dims, hidden_state=None,
                     batch_first=False, matmul_dtype=jnp.float32):
    if batch_first:
        x = jnp.transpose(x, (1, 0, 2, 3, 4))
    T, B, C, H, W = x.shape
    cur = x.reshape(T, B, C, H * W).astype(jnp.float32)   # free reshape (NCHW)

    last_state_list = []
    for layer, (w, b) in enumerate(params_torch):
        hid = hidden_dims[layer]
        if hidden_state is None:
            h0 = jnp.zeros((B, hid, H * W), jnp.float32)
            c0 = jnp.zeros((B, hid, H * W), jnp.float32)
        else:
            h0 = hidden_state[layer][0].reshape(B, hid, H * W).astype(jnp.float32)
            c0 = hidden_state[layer][1].reshape(B, hid, H * W).astype(jnp.float32)
        h_all, c_last = convlstm_layer_scan(cur, h0, c0, w, b, H=H, W=W,
                                            matmul_dtype=matmul_dtype)
        cur = h_all
        last_state_list.append((h_all[-1].reshape(B, hid, H, W),
                                c_last.reshape(B, hid, H, W)))

    layer_output = cur.reshape(T, B, hidden_dims[-1], H, W)
    if batch_first:
        layer_output = jnp.transpose(layer_output, (1, 0, 2, 3, 4))
    return layer_output, last_state_list


# -----------------------------------------------------------------------------
# Pure-JAX reference (NCHW, lax.conv) — used only to verify the kernel.
# -----------------------------------------------------------------------------
def convlstm_reference(x_tbchw, params_torch, hidden_dims):
    T, B, C, H, W = x_tbchw.shape
    cur = x_tbchw
    last = []
    for layer, (w, b) in enumerate(params_torch):
        hid = hidden_dims[layer]
        h = jnp.zeros((B, hid, H, W), jnp.float32)
        c = jnp.zeros((B, hid, H, W), jnp.float32)
        outs = []
        for t in range(T):
            combined = jnp.concatenate([cur[t], h], axis=1)
            conv = jax.lax.conv_general_dilated(
                combined, w, window_strides=(1, 1), padding='SAME',
                dimension_numbers=('NCHW', 'OIHW', 'NCHW'))
            conv = conv + b.reshape(1, -1, 1, 1)
            cc_i, cc_f, cc_o, cc_g = jnp.split(conv, 4, axis=1)
            i = jax.nn.sigmoid(cc_i)
            f = jax.nn.sigmoid(cc_f)
            o = jax.nn.sigmoid(cc_o)
            g = jnp.tanh(cc_g)
            c = f * c + i * g
            h = o * jnp.tanh(c)
            outs.append(h)
        cur = jnp.stack(outs, axis=0)
        last.append((h, c))
    return cur, last


if __name__ == "__main__":
    # Small deterministic config: 2 layers, kernel (3,3), hidden 32.
    T, B, Cin, H, W = 8, 2, 4, 16, 16
    hidden_dims = [32, 32]
    kernel_sizes = [(3, 3), (3, 3)]

    key = jax.random.PRNGKey(0)
    key, kx = jax.random.split(key)
    x = jax.random.normal(kx, (T, B, Cin, H, W), jnp.float32)  # (t, b, c, h, w)

    params_torch = init_convlstm_params(key, Cin, hidden_dims, kernel_sizes)

    layer_output, last_states = convlstm_forward(
        x, params_torch, hidden_dims, hidden_state=None, batch_first=False)
    layer_output = jax.block_until_ready(layer_output)

    # Verify against a pure-JAX reference of the same math.
    ref_output, ref_last = convlstm_reference(x, params_torch, hidden_dims)
    assert layer_output.shape == (T, B, hidden_dims[-1], H, W)
    assert jnp.allclose(layer_output, ref_output, atol=1e-3, rtol=1e-3)
    for (h_k, c_k), (h_r, c_r) in zip(last_states, ref_last):
        assert jnp.allclose(h_k, h_r, atol=1e-3, rtol=1e-3)
        assert jnp.allclose(c_k, c_r, atol=1e-3, rtol=1e-3)

    print("KERNEL_OK")
</pallas_src>

<mosaic_0001>
module attributes {stable_mosaic.version = 11 : i64} {
  func.func @_convlstm_layer_kernel(%arg0: i32, %arg1: i32, %arg2: memref<1x1x4x256xf32, #tpu.memory_space<vmem>>, %arg3: memref<1x32x256xf32, #tpu.memory_space<vmem>>, %arg4: memref<1x32x256xf32, #tpu.memory_space<vmem>>, %arg5: memref<9x128x36xf32, #tpu.memory_space<vmem>>, %arg6: memref<128x1xf32, #tpu.memory_space<vmem>>, %arg7: memref<1x1x32x256xf32, #tpu.memory_space<vmem>>, %arg8: memref<1x32x256xf32, #tpu.memory_space<vmem>>, %arg9: memref<36x512xf32, #tpu.memory_space<vmem>>, %arg10: memref<32x256xf32, #tpu.memory_space<vmem>>, %arg11: memref<32x256xf32, #tpu.memory_space<vmem>>, %arg12: memref<128x256xf32, #tpu.memory_space<vmem>>) attributes {dimension_semantics = [#tpu.dimension_semantics<parallel>, #tpu.dimension_semantics<arbitrary>], iteration_bounds = array<i64: 2, 8>, scalar_prefetch = 0 : i64, scratch_operands = 4 : i64, tpu.core_type = #tpu.core_type<tc>, window_params = [{transform_indices = @transform_0, window_bounds = array<i64: 1, 1, 4, 256>}, {transform_indices = @transform_1, window_bounds = array<i64: 1, 32, 256>}, {transform_indices = @transform_2, window_bounds = array<i64: 1, 32, 256>}, {pipeline_mode = #tpu.pipeline_mode<synchronous>, transform_indices = @transform_3, window_bounds = array<i64: 9, 128, 36>}, {pipeline_mode = #tpu.pipeline_mode<synchronous>, transform_indices = @transform_4, window_bounds = array<i64: 128, 1>}, {transform_indices = @transform_5, window_bounds = array<i64: 1, 1, 32, 256>}, {transform_indices = @transform_6, window_bounds = array<i64: 1, 32, 256>}]} {
    %c0_i32 = arith.constant 0 : i32
    %0 = arith.cmpi eq, %arg1, %c0_i32 : i32
    %1 = arith.extui %0 : i1 to i32
    %c0_i32_0 = arith.constant 0 : i32
    %2 = arith.cmpi ne, %1, %c0_i32_0 : i32
    scf.if %2 {
      %cst_116 = arith.constant 0.000000e+00 : f32
      %151 = vector.broadcast %cst_116 : f32 to vector<36x512xf32>
      %c0_117 = arith.constant 0 : index
      %c0_118 = arith.constant 0 : index
      %152 = vector.load %arg9[%c0_117, %c0_118] : memref<36x512xf32, #tpu.memory_space<vmem>>, vector<36x512xf32>
      tpu.vector_store %arg9[%c0_117, %c0_118], %151 {strides = array<i32>} : memref<36x512xf32, #tpu.memory_space<vmem>>, vector<36x512xf32>,
      %c0_119 = arith.constant 0 : index
      %c0_120 = arith.constant 0 : index
      %c0_121 = arith.constant 0 : index
      %153 = vector.load %arg3[%c0_119, %c0_120, %c0_121] : memref<1x32x256xf32, #tpu.memory_space<vmem>>, vector<1x32x256xf32>
      %154 = vector.shape_cast %153 : vector<1x32x256xf32> to vector<32x256xf32>
      %c0_122 = arith.constant 0 : index
      %c0_123 = arith.constant 0 : index
      %155 = vector.load %arg10[%c0_122, %c0_123] : memref<32x256xf32, #tpu.memory_space<vmem>>, vector<32x256xf32>
      tpu.vector_store %arg10[%c0_122, %c0_123], %154 {strides = array<i32>} : memref<32x256xf32, #tpu.memory_space<vmem>>, vector<32x256xf32>,
      %c0_124 = arith.constant 0 : index
      %c0_125 = arith.constant 0 : index
      %c0_126 = arith.constant 0 : index
      %156 = vector.load %arg4[%c0_124, %c0_125, %c0_126] : memref<1x32x256xf32, #tpu.memory_space<vmem>>, vector<1x32x256xf32>
      %157 = vector.shape_cast %156 : vector<1x32x256xf32> to vector<32x256xf32>
      %c0_127 = arith.constant 0 : index
      %c0_128 = arith.constant 0 : index
      %158 = vector.load %arg11[%c0_127, %c0_128] : memref<32x256xf32, #tpu.memory_space<vmem>>, vector<32x256xf32>
      tpu.vector_store %arg11[%c0_127, %c0_128], %157 {strides = array<i32>} : memref<32x256xf32, #tpu.memory_space<vmem>>, vector<32x256xf32>,
    } else {
    }
    %c0 = arith.constant 0 : index
    %c0_1 = arith.constant 0 : index
    %3 = vector.load %arg10[%c0, %c0_1] : memref<32x256xf32, #tpu.memory_space<vmem>>, vector<32x256xf32>
    %c0_2 = arith.constant 0 : index
    %c128 = arith.constant 128 : index
    %4 = vector.load %arg9[%c0_2, %c128] : memref<36x512xf32, #tpu.memory_space<vmem>>, vector<32x256xf32>
    tpu.vector_store %arg9[%c0_2, %c128], %3 {strides = array<i32>} : memref<36x512xf32, #tpu.memory_space<vmem>>, vector<32x256xf32>,
    %c0_3 = arith.constant 0 : index
    %c0_4 = arith.constant 0 : index
    %c0_5 = arith.constant 0 : index
    %c0_6 = arith.constant 0 : index
    %5 = vector.load %arg2[%c0_3, %c0_4, %c0_5, %c0_6] : memref<1x1x4x256xf32, #tpu.memory_space<vmem>>, vector<1x1x4x256xf32>
    %6 = vector.shape_cast %5 : vector<1x1x4x256xf32> to vector<4x256xf32>
    %c32 = arith.constant 32 : index
    %c128_7 = arith.constant 128 : index
    %7 = vector.load %arg9[%c32, %c128_7] : memref<36x512xf32, #tpu.memory_space<vmem>>, vector<4x256xf32>
    tpu.vector_store %arg9[%c32, %c128_7], %6 {strides = array<i32>} : memref<36x512xf32, #tpu.memory_space<vmem>>, vector<4x256xf32>,
    %c0_8 = arith.constant 0 : index
    %c0_9 = arith.constant 0 : index
    %8 = vector.load %arg6[%c0_8, %c0_9] : memref<128x1xf32, #tpu.memory_space<vmem>>, vector<128x1xf32>
    %9 = vector.shape_cast %8 : vector<128x1xf32> to vector<128x1xf32>
    %10 = vector.broadcast %9 : vector<128x1xf32> to vector<128x256xf32>
    %c0_10 = arith.constant 0 : index
    %c0_11 = arith.constant 0 : index
    %11 = vector.load %arg12[%c0_10, %c0_11] : memref<128x256xf32, #tpu.memory_space<vmem>>, vector<128x256xf32>
    tpu.vector_store %arg12[%c0_10, %c0_11], %10 {strides = array<i32>} : memref<128x256xf32, #tpu.memory_space<vmem>>, vector<128x256xf32>,
    %12 = tpu.iota {dimensions = array<i32: 1>} : vector<36x256xi32>
    %c16_i32 = arith.constant 16 : i32
    %c0_i32_12 = arith.constant 0 : i32
    %13 = arith.cmpi eq, %c16_i32, %c0_i32_12 : i32
    %c1_i32 = arith.constant 1 : i32
    %14 = arith.select %13, %c1_i32, %c16_i32 : i32
    %15 = vector.broadcast %14 : i32 to vector<36x256xi32>
    %16 = arith.remsi %12, %15 : vector<36x256xi32>
    %c0_i32_13 = arith.constant 0 : i32
    %17 = vector.broadcast %c0_i32_13 : i32 to vector<36x256xi32>
    %18 = arith.cmpi ne, %16, %17 : vector<36x256xi32>
    %c0_i32_14 = arith.constant 0 : i32
    %19 = vector.broadcast %c0_i32_14 : i32 to vector<36x256xi32>
    %20 = arith.cmpi slt, %16, %19 : vector<36x256xi32>
    %c0_i32_15 = arith.constant 0 : i32
    %21 = arith.cmpi slt, %14, %c0_i32_15 : i32
    %22 = vector.broadcast %21 : i1 to vector<36x256xi1>
    %23 = vector.broadcast %22 : vector<36x256xi1> to vector<36x256xi1>
    %24 = arith.xori %20, %23 : vector<36x256xi1>
    %25 = arith.andi %24, %18 : vector<36x256xi1>
    %26 = vector.broadcast %14 : i32 to vector<36x256xi32>
    %27 = arith.addi %16, %26 : vector<36x256xi32>
    %28 = arith.select %25, %27, %16 : vector<36x256xi1>, vector<36x256xi32>
    %c0_16 = arith.constant 0 : index
    %c111 = arith.constant 111 : index
    %29 = vector.load %arg9[%c0_16, %c111] : memref<36x512xf32, #tpu.memory_space<vmem>>, vector<36x256xf32>
    %c1_i32_17 = arith.constant 1 : i32
    %30 = vector.broadcast %c1_i32_17 : i32 to vector<36x256xi32>
    %31 = arith.cmpi slt, %28, %30 : vector<36x256xi32>
    %cst = arith.constant 0.000000e+00 : f32
    %32 = vector.broadcast %cst : f32 to vector<36x256xf32>
    %33 = arith.select %31, %32, %29 : vector<36x256xi1>, vector<36x256xf32>
    %c0_18 = arith.constant 0 : index
    %c0_19 = arith.constant 0 : index
    %34 = vector.load %arg12[%c0_18, %c0_19] : memref<128x256xf32, #tpu.memory_space<vmem>>, vector<128x256xf32>
    %c0_20 = arith.constant 0 : index
    %c0_21 = arith.constant 0 : index
    %c0_22 = arith.constant 0 : index
    %35 = vector.load %arg5[%c0_20, %c0_21, %c0_22] : memref<9x128x36xf32, #tpu.memory_space<vmem>>, vector<1x128x36xf32>
    %36 = vector.shape_cast %35 : vector<1x128x36xf32> to vector<128x36xf32>
    %cst_23 = arith.constant dense<0.000000e+00> : vector<128x256xf32>
    %37 = tpu.matmul %36, %33, %cst_23 {dimension_numbers = #tpu.dot_dimension_numbers<[1], [0], [0], [1], [0, 0, 1, 1], [], []>} : vector<128x36xf32>, vector<36x256xf32>, vector<128x256xf32> -> vector<128x256xf32>
    %38 = arith.addf %34, %37 : vector<128x256xf32>
    %c0_24 = arith.constant 0 : index
    %c0_25 = arith.constant 0 : index
    %39 = vector.load %arg12[%c0_24, %c0_25] : memref<128x256xf32, #tpu.memory_space<vmem>>, vector<128x256xf32>
    tpu.vector_store %arg12[%c0_24, %c0_25], %38 {strides = array<i32>} : memref<128x256xf32, #tpu.memory_space<vmem>>, vector<128x256xf32>,
    %c0_26 = arith.constant 0 : index
    %c112 = arith.constant 112 : index
    %40 = vector.load %arg9[%c0_26, %c112] : memref<36x512xf32, #tpu.memory_space<vmem>>, vector<36x256xf32>
    %c0_27 = arith.constant 0 : index
    %c0_28 = arith.constant 0 : index
    %41 = vector.load %arg12[%c0_27, %c0_28] : memref<128x256xf32, #tpu.memory_space<vmem>>, vector<128x256xf32>
    %c1 = arith.constant 1 : index
    %c0_29 = arith.constant 0 : index
    %c0_30 = arith.constant 0 : index
    %42 = vector.load %arg5[%c1, %c0_29, %c0_30] : memref<9x128x36xf32, #tpu.memory_space<vmem>>, vector<1x128x36xf32>
    %43 = vector.shape_cast %42 : vector<1x128x36xf32> to vector<128x36xf32>
    %cst_31 = arith.constant dense<0.000000e+00> : vector<128x256xf32>
    %44 = tpu.matmul %43, %40, %cst_31 {dimension_numbers = #tpu.dot_dimension_numbers<[1], [0], [0], [1], [0, 0, 1, 1], [], []>} : vector<128x36xf32>, vector<36x256xf32>, vector<128x256xf32> -> vector<128x256xf32>
    %45 = arith.addf %41, %44 : vector<128x256xf32>
    %c0_32 = arith.constant 0 : index
    %c0_33 = arith.constant 0 : index
    %46 = vector.load %arg12[%c0_32, %c0_33] : memref<128x256xf32, #tpu.memory_space<vmem>>, vector<128x256xf32>
    tpu.vector_store %arg12[%c0_32, %c0_33], %45 {strides = array<i32>} : memref<128x256xf32, #tpu.memory_space<vmem>>, vector<128x256xf32>,
    %c0_34 = arith.constant 0 : index
    %c113 = arith.constant 113 : index
    %47 = vector.load %arg9[%c0_34, %c113] : memref<36x512xf32, #tpu.memory_space<vmem>>, vector<36x256xf32>
    %c15_i32 = arith.constant 15 : i32
    %48 = vector.broadcast %c15_i32 : i32 to vector<36x256xi32>
    %49 = arith.cmpi sge, %28, %48 : vector<36x256xi32>
    %cst_35 = arith.constant 0.000000e+00 : f32
    %50 = vector.broadcast %cst_35 : f32 to vector<36x256xf32>
    %51 = arith.select %49, %50, %47 : vector<36x256xi1>, vector<36x256xf32>
    %c0_36 = arith.constant 0 : index
    %c0_37 = arith.constant 0 : index
    %52 = vector.load %arg12[%c0_36, %c0_37] : memref<128x256xf32, #tpu.memory_space<vmem>>, vector<128x256xf32>
    %c2 = arith.constant 2 : index
    %c0_38 = arith.constant 0 : index
    %c0_39 = arith.constant 0 : index
    %53 = vector.load %arg5[%c2, %c0_38, %c0_39] : memref<9x128x36xf32, #tpu.memory_space<vmem>>, vector<1x128x36xf32>
    %54 = vector.shape_cast %53 : vector<1x128x36xf32> to vector<128x36xf32>
    %cst_40 = arith.constant dense<0.000000e+00> : vector<128x256xf32>
    %55 = tpu.matmul %54, %51, %cst_40 {dimension_numbers = #tpu.dot_dimension_numbers<[1], [0], [0], [1], [0, 0, 1, 1], [], []>} : vector<128x36xf32>, vector<36x256xf32>, vector<128x256xf32> -> vector<128x256xf32>
    %56 = arith.addf %52, %55 : vector<128x256xf32>
    %c0_41 = arith.constant 0 : index
    %c0_42 = arith.constant 0 : index
    %57 = vector.load %arg12[%c0_41, %c0_42] : memref<128x256xf32, #tpu.memory_space<vmem>>, vector<128x256xf32>
    tpu.vector_store %arg12[%c0_41, %c0_42], %56 {strides = array<i32>} : memref<128x256xf32, #tpu.memory_space<vmem>>, vector<128x256xf32>,
    %c0_43 = arith.constant 0 : index
    %c127 = arith.constant 127 : index
    %58 = vector.load %arg9[%c0_43, %c127] : memref<36x512xf32, #tpu.memory_space<vmem>>, vector<36x256xf32>
    %c1_i32_44 = arith.constant 1 : i32
    %59 = vector.broadcast %c1_i32_44 : i32 to vector<36x256xi32>
    %60 = arith.cmpi slt, %28, %59 : vector<36x256xi32>
    %cst_45 = arith.constant 0.000000e+00 : f32
    %61 = vector.broadcast %cst_45 : f32 to vector<36x256xf32>
    %62 = arith.select %60, %61, %58 : vector<36x256xi1>, vector<36x256xf32>
    %c0_46 = arith.constant 0 : index
    %c0_47 = arith.constant 0 : index
    %63 = vector.load %arg12[%c0_46, %c0_47] : memref<128x256xf32, #tpu.memory_space<vmem>>, vector<128x256xf32>
    %c3 = arith.constant 3 : index
    %c0_48 = arith.constant 0 : index
    %c0_49 = arith.constant 0 : index
    %64 = vector.load %arg5[%c3, %c0_48, %c0_49] : memref<9x128x36xf32, #tpu.memory_space<vmem>>, vector<1x128x36xf32>
    %65 = vector.shape_cast %64 : vector<1x128x36xf32> to vector<128x36xf32>
    %cst_50 = arith.constant dense<0.000000e+00> : vector<128x256xf32>
    %66 = tpu.matmul %65, %62, %cst_50 {dimension_numbers = #tpu.dot_dimension_numbers<[1], [0], [0], [1], [0, 0, 1, 1], [], []>} : vector<128x36xf32>, vector<36x256xf32>, vector<128x256xf32> -> vector<128x256xf32>
    %67 = arith.addf %63, %66 : vector<128x256xf32>
    %c0_51 = arith.constant 0 : index
    %c0_52 = arith.constant 0 : index
    %68 = vector.load %arg12[%c0_51, %c0_52] : memref<128x256xf32, #tpu.memory_space<vmem>>, vector<128x256xf32>
    tpu.vector_store %arg12[%c0_51, %c0_52], %67 {strides = array<i32>} : memref<128x256xf32, #tpu.memory_space<vmem>>, vector<128x256xf32>,
    %c0_53 = arith.constant 0 : index
    %c128_54 = arith.constant 128 : index
    %69 = vector.load %arg9[%c0_53, %c128_54] : memref<36x512xf32, #tpu.memory_space<vmem>>, vector<36x256xf32>
    %c0_55 = arith.constant 0 : index
    %c0_56 = arith.constant 0 : index
    %70 = vector.load %arg12[%c0_55, %c0_56] : memref<128x256xf32, #tpu.memory_space<vmem>>, vector<128x256xf32>
    %c4 = arith.constant 4 : index
    %c0_57 = arith.constant 0 : index
    %c0_58 = arith.constant 0 : index
    %71 = vector.load %arg5[%c4, %c0_57, %c0_58] : memref<9x128x36xf32, #tpu.memory_space<vmem>>, vector<1x128x36xf32>
    %72 = vector.shape_cast %71 : vector<1x128x36xf32> to vector<128x36xf32>
    %cst_59 = arith.constant dense<0.000000e+00> : vector<128x256xf32>
    %73 = tpu.matmul %72, %69, %cst_59 {dimension_numbers = #tpu.dot_dimension_numbers<[1], [0], [0], [1], [0, 0, 1, 1], [], []>} : vector<128x36xf32>, vector<36x256xf32>, vector<128x256xf32> -> vector<128x256xf32>
    %74 = arith.addf %70, %73 : vector<128x256xf32>
    %c0_60 = arith.constant 0 : index
    %c0_61 = arith.constant 0 : index
    %75 = vector.load %arg12[%c0_60, %c0_61] : memref<128x256xf32, #tpu.memory_space<vmem>>, vector<128x256xf32>
    tpu.vector_store %arg12[%c0_60, %c0_61], %74 {strides = array<i32>} : memref<128x256xf32, #tpu.memory_space<vmem>>, vector<128x256xf32>,
    %c0_62 = arith.constant 0 : index
    %c129 = arith.constant 129 : index
    %76 = vector.load %arg9[%c0_62, %c129] : memref<36x512xf32, #tpu.memory_space<vmem>>, vector<36x256xf32>
    %c15_i32_63 = arith.constant 15 : i32
    %77 = vector.broadcast %c15_i32_63 : i32 to vector<36x256xi32>
    %78 = arith.cmpi sge, %28, %77 : vector<36x256xi32>
    %cst_64 = arith.constant 0.000000e+00 : f32
    %79 = vector.broadcast %cst_64 : f32 to vector<36x256xf32>
    %80 = arith.select %78, %79, %76 : vector<36x256xi1>, vector<36x256xf32>
    %c0_65 = arith.constant 0 : index
    %c0_66 = arith.constant 0 : index
    %81 = vector.load %arg12[%c0_65, %c0_66] : memref<128x256xf32, #tpu.memory_space<vmem>>, vector<128x256xf32>
    %c5 = arith.constant 5 : index
    %c0_67 = arith.constant 0 : index
    %c0_68 = arith.constant 0 : index
    %82 = vector.load %arg5[%c5, %c0_67, %c0_68] : memref<9x128x36xf32, #tpu.memory_space<vmem>>, vector<1x128x36xf32>
    %83 = vector.shape_cast %82 : vector<1x128x36xf32> to vector<128x36xf32>
    %cst_69 = arith.constant dense<0.000000e+00> : vector<128x256xf32>
    %84 = tpu.matmul %83, %80, %cst_69 {dimension_numbers = #tpu.dot_dimension_numbers<[1], [0], [0], [1], [0, 0, 1, 1], [], []>} : vector<128x36xf32>, vector<36x256xf32>, vector<128x256xf32> -> vector<128x256xf32>
    %85 = arith.addf %81, %84 : vector<128x256xf32>
    %c0_70 = arith.constant 0 : index
    %c0_71 = arith.constant 0 : index
    %86 = vector.load %arg12[%c0_70, %c0_71] : memref<128x256xf32, #tpu.memory_space<vmem>>, vector<128x256xf32>
    tpu.vector_store %arg12[%c0_70, %c0_71], %85 {strides = array<i32>} : memref<128x256xf32, #tpu.memory_space<vmem>>, vector<128x256xf32>,
    %c0_72 = arith.constant 0 : index
    %c143 = arith.constant 143 : index
    %87 = vector.load %arg9[%c0_72, %c143] : memref<36x512xf32, #tpu.memory_space<vmem>>, vector<36x256xf32>
    %c1_i32_73 = arith.constant 1 : i32
    %88 = vector.broadcast %c1_i32_73 : i32 to vector<36x256xi32>
    %89 = arith.cmpi slt, %28, %88 : vector<36x256xi32>
    %cst_74 = arith.constant 0.000000e+00 : f32
    %90 = vector.broadcast %cst_74 : f32 to vector<36x256xf32>
    %91 = arith.select %89, %90, %87 : vector<36x256xi1>, vector<36x256xf32>
    %c0_75 = arith.constant 0 : index
    %c0_76 = arith.constant 0 : index
    %92 = vector.load %arg12[%c0_75, %c0_76] : memref<128x256xf32, #tpu.memory_space<vmem>>, vector<128x256xf32>
    %c6 = arith.constant 6 : index
    %c0_77 = arith.constant 0 : index
    %c0_78 = arith.constant 0 : index
    %93 = vector.load %arg5[%c6, %c0_77, %c0_78] : memref<9x128x36xf32, #tpu.memory_space<vmem>>, vector<1x128x36xf32>
    %94 = vector.shape_cast %93 : vector<1x128x36xf32> to vector<128x36xf32>
    %cst_79 = arith.constant dense<0.000000e+00> : vector<128x256xf32>
    %95 = tpu.matmul %94, %91, %cst_79 {dimension_numbers = #tpu.dot_dimension_numbers<[1], [0], [0], [1], [0, 0, 1, 1], [], []>} : vector<128x36xf32>, vector<36x256xf32>, vector<128x256xf32> -> vector<128x256xf32>
    %96 = arith.addf %92, %95 : vector<128x256xf32>
    %c0_80 = arith.constant 0 : index
    %c0_81 = arith.constant 0 : index
    %97 = vector.load %arg12[%c0_80, %c0_81] : memref<128x256xf32, #tpu.memory_space<vmem>>, vector<128x256xf32>
    tpu.vector_store %arg12[%c0_80, %c0_81], %96 {strides = array<i32>} : memref<128x256xf32, #tpu.memory_space<vmem>>, vector<128x256xf32>,
    %c0_82 = arith.constant 0 : index
    %c144 = arith.constant 144 : index
    %98 = vector.load %arg9[%c0_82, %c144] : memref<36x512xf32, #tpu.memory_space<vmem>>, vector<36x256xf32>
    %c0_83 = arith.constant 0 : index
    %c0_84 = arith.constant 0 : index
    %99 = vector.load %arg12[%c0_83, %c0_84] : memref<128x256xf32, #tpu.memory_space<vmem>>, vector<128x256xf32>
    %c7 = arith.constant 7 : index
    %c0_85 = arith.constant 0 : index
    %c0_86 = arith.constant 0 : index
    %100 = vector.load %arg5[%c7, %c0_85, %c0_86] : memref<9x128x36xf32, #tpu.memory_space<vmem>>, vector<1x128x36xf32>
    %101 = vector.shape_cast %100 : vector<1x128x36xf32> to vector<128x36xf32>
    %cst_87 = arith.constant dense<0.000000e+00> : vector<128x256xf32>
    %102 = tpu.matmul %101, %98, %cst_87 {dimension_numbers = #tpu.dot_dimension_numbers<[1], [0], [0], [1], [0, 0, 1, 1], [], []>} : vector<128x36xf32>, vector<36x256xf32>, vector<128x256xf32> -> vector<128x256xf32>
    %103 = arith.addf %99, %102 : vector<128x256xf32>
    %c0_88 = arith.constant 0 : index
    %c0_89 = arith.constant 0 : index
    %104 = vector.load %arg12[%c0_88, %c0_89] : memref<128x256xf32, #tpu.memory_space<vmem>>, vector<128x256xf32>
    tpu.vector_store %arg12[%c0_88, %c0_89], %103 {strides = array<i32>} : memref<128x256xf32, #tpu.memory_space<vmem>>, vector<128x256xf32>,
    %c0_90 = arith.constant 0 : index
    %c145 = arith.constant 145 : index
    %105 = vector.load %arg9[%c0_90, %c145] : memref<36x512xf32, #tpu.memory_space<vmem>>, vector<36x256xf32>
    %c15_i32_91 = arith.constant 15 : i32
    %106 = vector.broadcast %c15_i32_91 : i32 to vector<36x256xi32>
    %107 = arith.cmpi sge, %28, %106 : vector<36x256xi32>
    %cst_92 = arith.constant 0.000000e+00 : f32
    %108 = vector.broadcast %cst_92 : f32 to vector<36x256xf32>
    %109 = arith.select %107, %108, %105 : vector<36x256xi1>, vector<36x256xf32>
    %c0_93 = arith.constant 0 : index
    %c0_94 = arith.constant 0 : index
    %110 = vector.load %arg12[%c0_93, %c0_94] : memref<128x256xf32, #tpu.memory_space<vmem>>, vector<128x256xf32>
    %c8 = arith.constant 8 : index
    %c0_95 = arith.constant 0 : index
    %c0_96 = arith.constant 0 : index
    %111 = vector.load %arg5[%c8, %c0_95, %c0_96] : memref<9x128x36xf32, #tpu.memory_space<vmem>>, vector<1x128x36xf32>
    %112 = vector.shape_cast %111 : vector<1x128x36xf32> to vector<128x36xf32>
    %cst_97 = arith.constant dense<0.000000e+00> : vector<128x256xf32>
    %113 = tpu.matmul %112, %109, %cst_97 {dimension_numbers = #tpu.dot_dimension_numbers<[1], [0], [0], [1], [0, 0, 1, 1], [], []>} : vector<128x36xf32>, vector<36x256xf32>, vector<128x256xf32> -> vector<128x256xf32>
    %114 = arith.addf %110, %113 : vector<128x256xf32>
    %c0_98 = arith.constant 0 : index
    %c0_99 = arith.constant 0 : index
    %115 = vector.load %arg12[%c0_98, %c0_99] : memref<128x256xf32, #tpu.memory_space<vmem>>, vector<128x256xf32>
    tpu.vector_store %arg12[%c0_98, %c0_99], %114 {strides = array<i32>} : memref<128x256xf32, #tpu.memory_space<vmem>>, vector<128x256xf32>,
    %c0_100 = arith.constant 0 : index
    %c0_101 = arith.constant 0 : index
    %116 = vector.load %arg12[%c0_100, %c0_101] : memref<128x256xf32, #tpu.memory_space<vmem>>, vector<128x256xf32>
    %117 = vector.extract_strided_slice %116 {offsets = [0, 0], sizes = [32, 256], strides = [1, 1]} : vector<128x256xf32> to vector<32x256xf32>
    %118 = arith.negf %117 : vector<32x256xf32>
    %119 = math.exp %118 : vector<32x256xf32>
    %cst_102 = arith.constant 1.000000e+00 : f32
    %120 = vector.broadcast %cst_102 : f32 to vector<32x256xf32>
    %121 = arith.addf %120, %119 : vector<32x256xf32>
    %122 = arith.divf %120, %121 : vector<32x256xf32>
    %123 = vector.extract_strided_slice %116 {offsets = [32, 0], sizes = [32, 256], strides = [1, 1]} : vector<128x256xf32> to vector<32x256xf32>
    %124 = arith.negf %123 : vector<32x256xf32>
    %125 = math.exp %124 : vector<32x256xf32>
    %cst_103 = arith.constant 1.000000e+00 : f32
    %126 = vector.broadcast %cst_103 : f32 to vector<32x256xf32>
    %127 = arith.addf %126, %125 : vector<32x256xf32>
    %128 = arith.divf %126, %127 : vector<32x256xf32>
    %129 = vector.extract_strided_slice %116 {offsets = [64, 0], sizes = [32, 256], strides = [1, 1]} : vector<128x256xf32> to vector<32x256xf32>
    %130 = arith.negf %129 : vector<32x256xf32>
    %131 = math.exp %130 : vector<32x256xf32>
    %cst_104 = arith.constant 1.000000e+00 : f32
    %132 = vector.broadcast %cst_104 : f32 to vector<32x256xf32>
    %133 = arith.addf %132, %131 : vector<32x256xf32>
    %134 = arith.divf %132, %133 : vector<32x256xf32>
    %135 = vector.extract_strided_slice %116 {offsets = [96, 0], sizes = [32, 256], strides = [1, 1]} : vector<128x256xf32> to vector<32x256xf32>
    %136 = math.tanh %135 : vector<32x256xf32>
    %c0_105 = arith.constant 0 : index
    %c0_106 = arith.constant 0 : index
    %137 = vector.load %arg11[%c0_105, %c0_106] : memref<32x256xf32, #tpu.memory_space<vmem>>, vector<32x256xf32>
    %138 = arith.mulf %128, %137 : vector<32x256xf32>
    %139 = arith.mulf %122, %136 : vector<32x256xf32>
    %140 = arith.addf %138, %139 : vector<32x256xf32>
    %141 = math.tanh %140 : vector<32x256xf32>
    %142 = arith.mulf %134, %141 : vector<32x256xf32>
    %c0_107 = arith.constant 0 : index
    %c0_108 = arith.constant 0 : index
    %143 = vector.load %arg11[%c0_107, %c0_108] : memref<32x256xf32, #tpu.memory_space<vmem>>, vector<32x256xf32>
    tpu.vector_store %arg11[%c0_107, %c0_108], %140 {strides = array<i32>} : memref<32x256xf32, #tpu.memory_space<vmem>>, vector<32x256xf32>,
    %c0_109 = arith.constant 0 : index
    %c0_110 = arith.constant 0 : index
    %144 = vector.load %arg10[%c0_109, %c0_110] : memref<32x256xf32, #tpu.memory_space<vmem>>, vector<32x256xf32>
    tpu.vector_store %arg10[%c0_109, %c0_110], %142 {strides = array<i32>} : memref<32x256xf32, #tpu.memory_space<vmem>>, vector<32x256xf32>,
    %c0_111 = arith.constant 0 : index
    %c0_112 = arith.constant 0 : index
    %c0_113 = arith.constant 0 : index
    %c0_114 = arith.constant 0 : index
    %145 = vector.load %arg7[%c0_111, %c0_112, %c0_113, %c0_114] : memref<1x1x32x256xf32, #tpu.memory_space<vmem>>, vector<1x1x32x256xf32>
    %146 = vector.shape_cast %145 : vector<1x1x32x256xf32> to vector<32x256xf32>
    %147 = vector.shape_cast %142 : vector<32x256xf32> to vector<1x1x32x256xf32>
    tpu.vector_store %arg7[%c0_111, %c0_112, %c0_113, %c0_114], %147 {strides = array<i32>} : memref<1x1x32x256xf32, #tpu.memory_space<vmem>>, vector<1x1x32x256xf32>,
    %c7_i32 = arith.constant 7 : i32
    %148 = arith.cmpi eq, %arg1, %c7_i32 : i32
    %149 = arith.extui %148 : i1 to i32
    %c0_i32_115 = arith.constant 0 : i32
    %150 = arith.cmpi ne, %149, %c0_i32_115 : i32
    scf.if %150 {
      %c0_116 = arith.constant 0 : index
      %c0_117 = arith.constant 0 : index
      %c0_118 = arith.constant 0 : index
      %151 = vector.load %arg8[%c0_116, %c0_117, %c0_118] : memref<1x32x256xf32, #tpu.memory_space<vmem>>, vector<1x32x256xf32>
      %152 = vector.shape_cast %151 : vector<1x32x256xf32> to vector<32x256xf32>
      %153 = vector.shape_cast %140 : vector<32x256xf32> to vector<1x32x256xf32>
      tpu.vector_store %arg8[%c0_116, %c0_117, %c0_118], %153 {strides = array<i32>} : memref<1x32x256xf32, #tpu.memory_space<vmem>>, vector<1x32x256xf32>,
    } else {
    }
    return
  }
  func.func @transform_0(%arg0: i32, %arg1: i32) -> (i32, i32, i32, i32) {
    %c0_i32 = arith.constant 0 : i32
    %c0_i32_0 = arith.constant 0 : i32
    %c0_i32_1 = arith.constant 0 : i32
    return %arg1, %arg0, %c0_i32, %c0_i32_0 : i32, i32, i32, i32
  }
  func.func @transform_1(%arg0: i32, %arg1: i32) -> (i32, i32, i32) {
    %c0_i32 = arith.constant 0 : i32
    %c0_i32_0 = arith.constant 0 : i32
    %c0_i32_1 = arith.constant 0 : i32
    return %arg0, %c0_i32, %c0_i32_0 : i32, i32, i32
  }
  func.func @transform_2(%arg0: i32, %arg1: i32) -> (i32, i32, i32) {
    %c0_i32 = arith.constant 0 : i32
    %c0_i32_0 = arith.constant 0 : i32
    %c0_i32_1 = arith.constant 0 : i32
    return %arg0, %c0_i32, %c0_i32_0 : i32, i32, i32
  }
  func.func @transform_3(%arg0: i32, %arg1: i32) -> (i32, i32, i32) {
    %c0_i32 = arith.constant 0 : i32
    %c0_i32_0 = arith.constant 0 : i32
    %c0_i32_1 = arith.constant 0 : i32
    %c0_i32_2 = arith.constant 0 : i32
    return %c0_i32, %c0_i32_0, %c0_i32_1 : i32, i32, i32
  }
  func.func @transform_4(%arg0: i32, %arg1: i32) -> (i32, i32) {
    %c0_i32 = arith.constant 0 : i32
    %c0_i32_0 = arith.constant 0 : i32
    %c0_i32_1 = arith.constant 0 : i32
    return %c0_i32, %c0_i32_0 : i32, i32
  }
  func.func @transform_5(%arg0: i32, %arg1: i32) -> (i32, i32, i32, i32) {
    %c0_i32 = arith.constant 0 : i32
    %c0_i32_0 = arith.constant 0 : i32
    %c0_i32_1 = arith.constant 0 : i32
    return %arg1, %arg0, %c0_i32, %c0_i32_0 : i32, i32, i32, i32
  }
  func.func @transform_6(%arg0: i32, %arg1: i32) -> (i32, i32, i32) {
    %c0_i32 = arith.constant 0 : i32
    %c0_i32_0 = arith.constant 0 : i32
    %c0_i32_1 = arith.constant 0 : i32
    return %arg0, %c0_i32, %c0_i32_0 : i32, i32, i32
  }
}

</mosaic_0001>

<llo_original>
// kernel: tpu_custom_call.1
$region0: #{tpu_custom_call.1}
  #allocation0 [shape = 'u32[]', space=smem, size = 0x4, offset = 0x4, fixed_abs, tag = 'smem constant byte address 0x4 - core index']
  #allocation1 [shape = 'u32[144,128]{1,0:T(1,128)}', space=vmem, size = 0x12000, scoped, tag = 'internal scratch']
  #allocation2 [shape = 'f32[36,512]{1,0:T(8,128)}', space=vmem, size = 0x14000, scoped, tag = 'scratch operand']
  #allocation3 [shape = 'f32[32,256]{1,0:T(8,128)}', space=vmem, size = 0x8000, scoped, tag = 'scratch operand']
  #allocation4 [shape = 'f32[32,256]{1,0:T(8,128)}', space=vmem, size = 0x8000, scoped, tag = 'scratch operand']
  #allocation5 [shape = 'f32[128,256]{1,0:T(8,128)}', space=vmem, size = 0x20000, scoped, tag = 'scratch operand']
  %s0 = inlined_call_operand.vmem [shape: f32[8,2,4,256], index: 0, kind: input, shape index: {}]
  %s1 = inlined_call_operand.vmem [shape: f32[2,32,256], index: 1, kind: input, shape index: {}]
  %s2 = inlined_call_operand.vmem [shape: f32[2,32,256], index: 2, kind: input, shape index: {}]
  %s3 = inlined_call_operand.vmem [shape: f32[9,128,36], index: 3, kind: input, shape index: {}]
  %s4 = inlined_call_operand.vmem [shape: f32[128,1], index: 4, kind: input, shape index: {}]
  %s5 = inlined_call_operand.hbm [shape: f32[8,2,32,256], index: 5, kind: output, shape index: {0}]
  %s6 = inlined_call_operand.hbm [shape: f32[2,32,256], index: 6, kind: output, shape index: {1}]
  %7 = xla_tuple %s5, %s6
  %s8 = sld [smem:[#allocation0]]
  $region69: #{tpu_custom_call.1} parent=0
    _
  %s10 = ssub.s32 1, %s8
  %s11 = scalar_select 0, %s10, %s8
  $region1: #{tpu_custom_call.1} parent=0
    #allocation6 [shape = 'u8[65536]{0}', space=vmem, size = 0x10000, scoped, tag = 'output window, operand 0']
    #allocation7 [shape = 's32[2]{0}', space=sflag, size = 0x8, scoped, tag = 'scoped memory for tpu_custom_call.1']
    #allocation8 [shape = 'u8[65536]{0}', space=vmem, size = 0x10000, scoped, tag = 'output window, operand 1']
    #allocation9 [shape = 's32[2]{0}', space=sflag, size = 0x8, scoped, tag = 'scoped memory for tpu_custom_call.1']
    %12 = vsyncpa [#allocation7], 0
    %s13 = scalar_lea.sflag [#allocation7], 1
    %14 = vsyncpa %s13, 0
    %15 = vsyncpa [#allocation9], 0
    %s16 = scalar_lea.sflag [#allocation9], 1
    %17 = vsyncpa %s16, 0
    loop: start=0, step=1, limit=18
    $region2: #{tpu_custom_call.1} parent=1 // loop_pre_header
      _
    $region3: #{tpu_custom_call.1} parent=1 // loop_header
      %s19 = sphi 0, %s23
      %p20 = scmp.ge.s32.totalorder %s19, 18
      %s26 = sphi 0, %s38
      %s27 = sphi 0, %s34
      %s28 = sphi 0, %s26
      %s29 = sphi 0, %s27
      %s30 = sphi 0, %s28
      %s31 = sphi 0, %s29
      %s43 = sphi 0, %s45
      %s46 = sphi 0, %s43
      %s47 = sphi 0, %s46
      %s63 = sphi 0, %s47
      %s69 = sphi 0, %s71
      %s72 = sphi 0, %s69
      %s73 = sphi 0, %s72
      %s89 = sphi 0, %s73
      %s95 = sphi 0, %s97
      %s98 = sphi 0, %s95
      %s99 = sphi 0, %s98
      %s115 = sphi 0, %s99
      %s119 = sphi 0, %s119
      %s121 = sphi 0, %s119
      %s122 = sphi 0, %s121
      %s136 = sphi 0, %s122
      %s140 = sphi 0, %s140
      %s142 = sphi 0, %s140
      %s143 = sphi 0, %s142
      %s157 = sphi 0, %s143
      %s165 = sphi 0, %s167
      %s168 = sphi 0, %s165
      %s169 = sphi 0, %s168
      %s185 = sphi 0, %s169
      %s191 = sphi 0, %s193
      %s194 = sphi 0, %s191
      %s195 = sphi 0, %s194
      %s211 = sphi 0, %s195
    $region4: #{tpu_custom_call.1} parent=1 // loop_header_branch
      %22 = sbr.rel (%p20) target = $region8
    $region5: #{tpu_custom_call.1} parent=1 // loop_body
      %s24 = ssub.s32 %s19, 1
      %s25 = ssub.s32 %s19, 2
      %s32 = sadd.s32 1, %s27
      %p33 = scmp.ge.s32.totalorder %s32, 8
      %s34 = scalar_select %p33, 0, %s32
      %s35 = sadd.s32 1, %s26
      %s36 = scalar_select %p33, %s35, %s26
      %p37 = scmp.ge.s32.totalorder %s36, 2
      %s38 = scalar_select %p37, 0, %s36
      %s39 = ssub.s32 %s27, %s34
      %s40 = ssub.s32 %s26, %s38
      %s41 = sor.u32 %s39, %s40
      %p42 = scmp.eq.s32.totalorder %s41, 0
      %s44 = sadd.s32 %s43, 1
      %s45 = scalar_select %p42, %s43, %s44
      %p48 = pneg %p42
      %p49 = scmp.eq.s32.totalorder %s19, 15
      %p50 = por %p48, %p49
      %p51 = scmp.ne.s32.totalorder %s43, %s46
      %p52 = scmp.eq.s32.totalorder %s19, 0
      %p53 = por %p51, %p52
      %p54 = scmp.ne.s32.totalorder %s43, %s46
      %p55 = scmp.eq.s32.totalorder %s24, 15
      %p56 = por %p54, %p55
      %p57 = scmp.ne.s32.totalorder %s46, %s47
      %p58 = scmp.eq.s32.totalorder %s24, 0
      %p59 = por %p57, %p58
      %p60 = scmp.ne.s32.totalorder %s46, %s47
      %p61 = scmp.eq.s32.totalorder %s25, 15
      %p62 = por %p60, %p61
      %p64 = scmp.ne.s32.totalorder %s47, %s63
      %p65 = scmp.eq.s32.totalorder %s25, 0
      %p66 = por %p64, %p65
      %s67 = ssub.s32 %s26, %s38
      %p68 = scmp.eq.s32.totalorder %s67, 0
      %s70 = sadd.s32 %s69, 1
      %s71 = scalar_select %p68, %s69, %s70
      %p74 = pneg %p68
      %p75 = scmp.eq.s32.totalorder %s19, 15
      %p76 = por %p74, %p75
      %p77 = scmp.ne.s32.totalorder %s69, %s72
      %p78 = scmp.eq.s32.totalorder %s19, 0
      %p79 = por %p77, %p78
      %p80 = scmp.ne.s32.totalorder %s69, %s72
      %p81 = scmp.eq.s32.totalorder %s24, 15
      %p82 = por %p80, %p81
      %p83 = scmp.ne.s32.totalorder %s72, %s73
      %p84 = scmp.eq.s32.totalorder %s24, 0
      %p85 = por %p83, %p84
      %p86 = scmp.ne.s32.totalorder %s72, %s73
      %p87 = scmp.eq.s32.totalorder %s25, 15
      %p88 = por %p86, %p87
      %p90 = scmp.ne.s32.totalorder %s73, %s89
      %p91 = scmp.eq.s32.totalorder %s25, 0
      %p92 = por %p90, %p91
      %s93 = ssub.s32 %s26, %s38
      %p94 = scmp.eq.s32.totalorder %s93, 0
      %s96 = sadd.s32 %s95, 1
      %s97 = scalar_select %p94, %s95, %s96
      %p100 = pneg %p94
      %p101 = scmp.eq.s32.totalorder %s19, 15
      %p102 = por %p100, %p101
      %p103 = scmp.ne.s32.totalorder %s95, %s98
      %p104 = scmp.eq.s32.totalorder %s19, 0
      %p105 = por %p103, %p104
      %p106 = scmp.ne.s32.totalorder %s95, %s98
      %p107 = scmp.eq.s32.totalorder %s24, 15
      %p108 = por %p106, %p107
      %p109 = scmp.ne.s32.totalorder %s98, %s99
      %p110 = scmp.eq.s32.totalorder %s24, 0
      %p111 = por %p109, %p110
      %p112 = scmp.ne.s32.totalorder %s98, %s99
      %p113 = scmp.eq.s32.totalorder %s25, 15
      %p114 = por %p112, %p113
      %p116 = scmp.ne.s32.totalorder %s99, %s115
      %p117 = scmp.eq.s32.totalorder %s25, 0
      %p118 = por %p116, %p117
      %s120 = sadd.s32 %s119, 1
      %p123 = scmp.eq.s32.totalorder %s19, 15
      %p124 = scmp.ne.s32.totalorder %s119, %s121
      %p125 = scmp.eq.s32.totalorder %s19, 0
      %p126 = por %p124, %p125
      %p127 = scmp.ne.s32.totalorder %s119, %s121
      %p128 = scmp.eq.s32.totalorder %s24, 15
      %p129 = por %p127, %p128
      %p130 = scmp.ne.s32.totalorder %s121, %s122
      %p131 = scmp.eq.s32.totalorder %s24, 0
      %p132 = por %p130, %p131
      %p133 = scmp.ne.s32.totalorder %s121, %s122
      %p134 = scmp.eq.s32.totalorder %s25, 15
      %p135 = por %p133, %p134
      %p137 = scmp.ne.s32.totalorder %s122, %s136
      %p138 = scmp.eq.s32.totalorder %s25, 0
      %p139 = por %p137, %p138
      %s141 = sadd.s32 %s140, 1
      %p144 = scmp.eq.s32.totalorder %s19, 15
      %p145 = scmp.ne.s32.totalorder %s140, %s142
      %p146 = scmp.eq.s32.totalorder %s19, 0
      %p147 = por %p145, %p146
      %p148 = scmp.ne.s32.totalorder %s140, %s142
      %p149 = scmp.eq.s32.totalorder %s24, 15
      %p150 = por %p148, %p149
      %p151 = scmp.ne.s32.totalorder %s142, %s143
      %p152 = scmp.eq.s32.totalorder %s24, 0
      %p153 = por %p151, %p152
      %p154 = scmp.ne.s32.totalorder %s142, %s143
      %p155 = scmp.eq.s32.totalorder %s25, 15
      %p156 = por %p154, %p155
      %p158 = scmp.ne.s32.totalorder %s143, %s157
      %p159 = scmp.eq.s32.totalorder %s25, 0
      %p160 = por %p158, %p159
      %s161 = ssub.s32 %s27, %s34
      %s162 = ssub.s32 %s26, %s38
      %s163 = sor.u32 %s161, %s162
      %p164 = scmp.eq.s32.totalorder %s163, 0
      %s166 = sadd.s32 %s165, 1
      %s167 = scalar_select %p164, %s165, %s166
      %p170 = pneg %p164
      %p171 = scmp.eq.s32.totalorder %s19, 15
      %p172 = por %p170, %p171
      %p173 = scmp.ne.s32.totalorder %s165, %s168
      %p174 = scmp.eq.s32.totalorder %s19, 0
      %p175 = por %p173, %p174
      %p176 = scmp.ne.s32.totalorder %s165, %s168
      %p177 = scmp.eq.s32.totalorder %s24, 15
      %p178 = por %p176, %p177
      %p179 = scmp.ne.s32.totalorder %s168, %s169
      %p180 = scmp.eq.s32.totalorder %s24, 0
      %p181 = por %p179, %p180
      %p182 = scmp.ne.s32.totalorder %s168, %s169
      %p183 = scmp.eq.s32.totalorder %s25, 15
      %p184 = por %p182, %p183
      %p186 = scmp.ne.s32.totalorder %s169, %s185
      %p187 = scmp.eq.s32.totalorder %s25, 0
      %p188 = por %p186, %p187
      %s189 = ssub.s32 %s26, %s38
      %p190 = scmp.eq.s32.totalorder %s189, 0
      %s192 = sadd.s32 %s191, 1
      %s193 = scalar_select %p190, %s191, %s192
      %p196 = pneg %p190
      %p197 = scmp.eq.s32.totalorder %s19, 15
      %p198 = por %p196, %p197
      %p199 = scmp.ne.s32.totalorder %s191, %s194
      %p200 = scmp.eq.s32.totalorder %s19, 0
      %p201 = por %p199, %p200
      %p202 = scmp.ne.s32.totalorder %s191, %s194
      %p203 = scmp.eq.s32.totalorder %s24, 15
      %p204 = por %p202, %p203
      %p205 = scmp.ne.s32.totalorder %s194, %s195
      %p206 = scmp.eq.s32.totalorder %s24, 0
      %p207 = por %p205, %p206
      %p208 = scmp.ne.s32.totalorder %s194, %s195
      %p209 = scmp.eq.s32.totalorder %s25, 15
      %p210 = por %p208, %p209
      %p212 = scmp.ne.s32.totalorder %s195, %s211
      %p213 = scmp.eq.s32.totalorder %s25, 0
      %p214 = por %p212, %p213
      %p215 = scmp.le.s32.totalorder 1, %s19
      %p216 = scmp.lt.s32.totalorder %s19, 17
      %p217 = pnand %p215, %p216
      %p218 = pneg %p217
      // Predicated region
      $region9: #{tpu_custom_call.1} parent=5 // pred_check
        _
      $region10: #{tpu_custom_call.1} parent=5 // pred_check_branch
        %220 = sbr.rel (%p217) target = $region12
      $region11: #{tpu_custom_call.1} parent=5 // pred_region
        %s221 = ssub.s32 %s19, 1
        // Predicated region
        $region13: #{tpu_custom_call.1} parent=11 // pred_check
          %p222 = pneg %p132
        $region14: #{tpu_custom_call.1} parent=11 // pred_check_branch
          %224 = sbr.rel (%p222) target = $region16
        $region15: #{tpu_custom_call.1} parent=11 // pred_region
          _
        $region16: #{tpu_custom_call.1} parent=11 // pred_fallthru
          _
        // Predicated region
        $region17: #{tpu_custom_call.1} parent=11 // pred_check
          %p225 = pneg %p153
        $region18: #{tpu_custom_call.1} parent=11 // pred_check_branch
          %227 = sbr.rel (%p225) target = $region20
        $region19: #{tpu_custom_call.1} parent=11 // pred_region
          _
        $region20: #{tpu_custom_call.1} parent=11 // pred_fallthru
          _
      $region12: #{tpu_custom_call.1} parent=5 // pred_fallthru
        _
      %p228 = scmp.lt.s32.totalorder %s19, 16
      // Predicated region
      $region21: #{tpu_custom_call.1} parent=5 // pred_check
        %p229 = pneg %p228
      $region22: #{tpu_custom_call.1} parent=5 // pred_check_branch
        %231 = sbr.rel (%p229) target = $region24
      $region23: #{tpu_custom_call.1} parent=5 // pred_region
        // Predicated region
        $region25: #{tpu_custom_call.1} parent=23 // pred_check
          %p232 = pneg %p53
        $region26: #{tpu_custom_call.1} parent=23 // pred_check_branch
          %234 = sbr.rel (%p232) target = $region28
        $region27: #{tpu_custom_call.1} parent=23 // pred_region
          %p235 = scmp.lt.s32.totalorder %s27, 7
          %s236 = scalar_select %p235, %s27, 7
          %p237 = scmp.lt.s32.totalorder %s26, 1
          %s238 = scalar_select %p237, %s26, 1
          %s239 = smul.addr %s238, 2
          %s240 = smul.addr %s236, 4
          %s241 = sadd.s32 %s239, %s240
          %s242 = smul.addr %s241, 4
          %s243 = scalar_lea.vmem %s0, %s242
        $region28: #{tpu_custom_call.1} parent=23 // pred_fallthru
          _
        // Predicated region
        $region29: #{tpu_custom_call.1} parent=23 // pred_check
          %p244 = pneg %p79
        $region30: #{tpu_custom_call.1} parent=23 // pred_check_branch
          %246 = sbr.rel (%p244) target = $region32
        $region31: #{tpu_custom_call.1} parent=23 // pred_region
          %p247 = scmp.lt.s32.totalorder %s26, 1
          %s248 = scalar_select %p247, %s26, 1
          %s249 = smul.addr %s248, 8
          %s250 = smul.addr %s249, 8
          %s251 = scalar_lea.vmem %s1, %s250
        $region32: #{tpu_custom_call.1} parent=23 // pred_fallthru
          _
        // Predicated region
        $region33: #{tpu_custom_call.1} parent=23 // pred_check
          %p252 = pneg %p105
        $region34: #{tpu_custom_call.1} parent=23 // pred_check_branch
          %254 = sbr.rel (%p252) target = $region36
        $region35: #{tpu_custom_call.1} parent=23 // pred_region
          %p255 = scmp.lt.s32.totalorder %s26, 1
          %s256 = scalar_select %p255, %s26, 1
          %s257 = smul.addr %s256, 8
          %s258 = smul.addr %s257, 8
          %s259 = scalar_lea.vmem %s2, %s258
        $region36: #{tpu_custom_call.1} parent=23 // pred_fallthru
          _
      $region24: #{tpu_custom_call.1} parent=5 // pred_fallthru
        _
      %p260 = scmp.le.s32.totalorder 1, %s19
      %p261 = scmp.lt.s32.totalorder %s19, 17
      %p262 = pnand %p260, %p261
      %p263 = pneg %p262
      // Predicated region
      $region37: #{tpu_custom_call.1} parent=5 // pred_check
        _
      $region38: #{tpu_custom_call.1} parent=5 // pred_check_branch
        %265 = sbr.rel (%p262) target = $region40
      $region39: #{tpu_custom_call.1} parent=5 // pred_region
        %s266 = ssub.s32 %s19, 1
        %p267 = scmp.lt.s32.totalorder %s29, 7
        %s268 = scalar_select %p267, %s29, 7
        %p269 = scmp.lt.s32.totalorder %s28, 1
        %s270 = scalar_select %p269, %s28, 1
        %s271 = smul.addr %s270, 2
        %s272 = smul.addr %s268, 4
        %s273 = sadd.s32 %s271, %s272
        %s274 = smul.addr %s273, 4
        %s275 = scalar_lea.vmem %s0, %s274
        %p276 = pneg %p59
        %p277 = pneg %p56
        %p278 = scmp.lt.s32.totalorder %s28, 1
        %s279 = scalar_select %p278, %s28, 1
        %s280 = smul.addr %s279, 8
        %s281 = smul.addr %s280, 8
        %s282 = scalar_lea.vmem %s1, %s281
        %p283 = pneg %p85
        %p284 = pneg %p82
        %p285 = scmp.lt.s32.totalorder %s28, 1
        %s286 = scalar_select %p285, %s28, 1
        %s287 = smul.addr %s286, 8
        %s288 = smul.addr %s287, 8
        %s289 = scalar_lea.vmem %s2, %s288
        %p290 = pneg %p111
        %p291 = pneg %p108
        %p292 = pneg %p132
        %p293 = pneg %p129
        %p294 = pneg %p153
        %p295 = pneg %p150
        %p296 = pneg %p181
        %p297 = pneg %p178
        %s298 = sand.u32 %s168, 1
        %s299 = scalar_lea.sflag [#allocation7], %s298
        %s300 = sand.u32 %s168, 1
        %s301 = smul.addr %s300, 64
        %s302 = scalar_lea.vmem [#allocation6], %s301
        %p303 = pneg %p207
        %p304 = pneg %p204
        %s305 = sand.u32 %s194, 1
        %s306 = scalar_lea.sflag [#allocation9], %s305
        %s307 = sand.u32 %s194, 1
        %s308 = smul.addr %s307, 64
        %s309 = scalar_lea.vmem [#allocation8], %s308
        %p310 = scmp.lt.s32.totalorder %s29, 7
        %s311 = scalar_select %p310, %s29, 7
        %p312 = scmp.lt.s32.totalorder %s28, 1
        %s313 = scalar_select %p312, %s28, 1
        %s314 = smul.addr %s313, 2
        %s315 = smul.addr %s311, 4
        %s316 = sadd.s32 %s314, %s315
        %s317 = smul.addr %s316, 4
        %s318 = scalar_lea.vmem %s0, %s317
        %p319 = scmp.lt.s32.totalorder %s28, 1
        %s320 = scalar_select %p319, %s28, 1
        %s321 = smul.addr %s320, 8
        %s322 = smul.addr %s321, 8
        %s323 = scalar_lea.vmem %s1, %s322
        %p324 = scmp.lt.s32.totalorder %s28, 1
        %s325 = scalar_select %p324, %s28, 1
        %s326 = smul.addr %s325, 8
        %s327 = smul.addr %s326, 8
        %s328 = scalar_lea.vmem %s2, %s327
        %p329 = scmp.eq.s32.totalorder %s29, 0
        // Predicated region
        $region41: #{tpu_custom_call.1} parent=39 // pred_check
          %p330 = pneg %p329
        $region42: #{tpu_custom_call.1} parent=39 // pred_check_branch
          %332 = sbr.rel (%p330) target = $region44
        $region43: #{tpu_custom_call.1} parent=39 // pred_region
          %333 = vst [vmem:[#allocation2] sm:$0xff] 0.0
          %334 = vst [vmem:[#allocation2 + $0x8] sm:$0xff] 0.0
          %335 = vst [vmem:[#allocation2 + $0x10] sm:$0xff] 0.0
          %336 = vst [vmem:[#allocation2 + $0x18] sm:$0xff] 0.0
          %337 = vst [vmem:[#allocation2 + $0x20] sm:$0xff] 0.0
          %338 = vst [vmem:[#allocation2 + $0x28] sm:$0xff] 0.0
          %339 = vst [vmem:[#allocation2 + $0x30] sm:$0xff] 0.0
          %340 = vst [vmem:[#allocation2 + $0x38] sm:$0xff] 0.0
          %341 = vst [vmem:[#allocation2 + $0x40] sm:$0xff] 0.0
          %342 = vst [vmem:[#allocation2 + $0x48] sm:$0xff] 0.0
          %343 = vst [vmem:[#allocation2 + $0x50] sm:$0xff] 0.0
          %344 = vst [vmem:[#allocation2 + $0x58] sm:$0xff] 0.0
          %345 = vst [vmem:[#allocation2 + $0x60] sm:$0xff] 0.0
          %346 = vst [vmem:[#allocation2 + $0x68] sm:$0xff] 0.0
          %347 = vst [vmem:[#allocation2 + $0x70] sm:$0xff] 0.0
          %348 = vst [vmem:[#allocation2 + $0x78] sm:$0xff] 0.0
          %349 = vst [vmem:[#allocation2 + $0x80] sm:$0xf] 0.0
          %350 = vst [vmem:[#allocation2 + $0x88] sm:$0xf] 0.0
          %351 = vst [vmem:[#allocation2 + $0x90] sm:$0xf] 0.0
          %352 = vst [vmem:[#allocation2 + $0x98] sm:$0xf] 0.0
          %v353 = vld [vmem:[%s323] sm:$0xff]
          %v354 = vld [vmem:[%s323 + $0x8] sm:$0xff]
          %v355 = vld [vmem:[%s323 + $0x10] sm:$0xff]
          %v356 = vld [vmem:[%s323 + $0x18] sm:$0xff]
          %v357 = vld [vmem:[%s323 + $0x20] sm:$0xff]
          %v358 = vld [vmem:[%s323 + $0x28] sm:$0xff]
          %v359 = vld [vmem:[%s323 + $0x30] sm:$0xff]
          %v360 = vld [vmem:[%s323 + $0x38] sm:$0xff]
          %361 = vst [vmem:[#allocation3] sm:$0xff] %v353
          %362 = vst [vmem:[#allocation3 + $0x8] sm:$0xff] %v354
          %363 = vst [vmem:[#allocation3 + $0x10] sm:$0xff] %v355
          %364 = vst [vmem:[#allocation3 + $0x18] sm:$0xff] %v356
          %365 = vst [vmem:[#allocation3 + $0x20] sm:$0xff] %v357
          %366 = vst [vmem:[#allocation3 + $0x28] sm:$0xff] %v358
          %367 = vst [vmem:[#allocation3 + $0x30] sm:$0xff] %v359
          %368 = vst [vmem:[#allocation3 + $0x38] sm:$0xff] %v360
          %v369 = vld [vmem:[%s328] sm:$0xff]
          %v370 = vld [vmem:[%s328 + $0x8] sm:$0xff]
          %v371 = vld [vmem:[%s328 + $0x10] sm:$0xff]
          %v372 = vld [vmem:[%s328 + $0x18] sm:$0xff]
          %v373 = vld [vmem:[%s328 + $0x20] sm:$0xff]
          %v374 = vld [vmem:[%s328 + $0x28] sm:$0xff]
          %v375 = vld [vmem:[%s328 + $0x30] sm:$0xff]
          %v376 = vld [vmem:[%s328 + $0x38] sm:$0xff]
          %377 = vst [vmem:[#allocation4] sm:$0xff] %v369
          %378 = vst [vmem:[#allocation4 + $0x8] sm:$0xff] %v370
          %379 = vst [vmem:[#allocation4 + $0x10] sm:$0xff] %v371
          %380 = vst [vmem:[#allocation4 + $0x18] sm:$0xff] %v372
          %381 = vst [vmem:[#allocation4 + $0x20] sm:$0xff] %v373
          %382 = vst [vmem:[#allocation4 + $0x28] sm:$0xff] %v374
          %383 = vst [vmem:[#allocation4 + $0x30] sm:$0xff] %v375
          %384 = vst [vmem:[#allocation4 + $0x38] sm:$0xff] %v376
        $region44: #{tpu_custom_call.1} parent=39 // pred_fallthru
          _
        %v385 = vld [vmem:[#allocation3] sm:$0xff]
        %v386 = vld [vmem:[#allocation3 + $0x8] sm:$0xff]
        %v387 = vld [vmem:[#allocation3 + $0x10] sm:$0xff]
        %v388 = vld [vmem:[#allocation3 + $0x18] sm:$0xff]
        %v389 = vld [vmem:[#allocation3 + $0x20] sm:$0xff]
        %v390 = vld [vmem:[#allocation3 + $0x28] sm:$0xff]
        %v391 = vld [vmem:[#allocation3 + $0x30] sm:$0xff]
        %v392 = vld [vmem:[#allocation3 + $0x38] sm:$0xff]
        %393 = vst [vmem:[#allocation2 + $0x8] sm:$0xff] %v385
        %394 = vst [vmem:[#allocation2 + $0x10] sm:$0xff] %v386
        %395 = vst [vmem:[#allocation2 + $0x28] sm:$0xff] %v387
        %396 = vst [vmem:[#allocation2 + $0x30] sm:$0xff] %v388
        %397 = vst [vmem:[#allocation2 + $0x48] sm:$0xff] %v389
        %398 = vst [vmem:[#allocation2 + $0x50] sm:$0xff] %v390
        %399 = vst [vmem:[#allocation2 + $0x68] sm:$0xff] %v391
        %400 = vst [vmem:[#allocation2 + $0x70] sm:$0xff] %v392
        %v401 = vld [vmem:[%s318] sm:$0xff]
        %v403 = vcombine.high %v401, %v401
        %405 = vst [vmem:[#allocation2 + $0x88] sm:$0xf] %v401
        %406 = vst [vmem:[#allocation2 + $0x90] sm:$0xf] %v403
        %v407 = vld [vmem:[%s4] sm:$0xff]
        %v408 = vld [vmem:[%s4 + $0x8] sm:$0xff]
        %v409 = vld [vmem:[%s4 + $0x10] sm:$0xff]
        %v410 = vld [vmem:[%s4 + $0x18] sm:$0xff]
        %v411 = vld [vmem:[%s4 + $0x20] sm:$0xff]
        %v412 = vld [vmem:[%s4 + $0x28] sm:$0xff]
        %v413 = vld [vmem:[%s4 + $0x30] sm:$0xff]
        %v414 = vld [vmem:[%s4 + $0x38] sm:$0xff]
        %v415 = vld [vmem:[%s4 + $0x40] sm:$0xff]
        %v416 = vld [vmem:[%s4 + $0x48] sm:$0xff]
        %v417 = vld [vmem:[%s4 + $0x50] sm:$0xff]
        %v418 = vld [vmem:[%s4 + $0x58] sm:$0xff]
        %v419 = vld [vmem:[%s4 + $0x60] sm:$0xff]
        %v420 = vld [vmem:[%s4 + $0x68] sm:$0xff]
        %v421 = vld [vmem:[%s4 + $0x70] sm:$0xff]
        %v422 = vld [vmem:[%s4 + $0x78] sm:$0xff]
        %424 = vset.pattern.permute.xlu0 0
        %425 = vperm.xlu0 %424, %v407
        %v426 = vpop.permute.xlu0 %425
        %429 = vset.pattern.permute.xlu0 0
        %430 = vperm.xlu0 %429, %v408
        %v431 = vpop.permute.xlu0 %430
        %434 = vset.pattern.permute.xlu0 0
        %435 = vperm.xlu0 %434, %v409
        %v436 = vpop.permute.xlu0 %435
        %439 = vset.pattern.permute.xlu0 0
        %440 = vperm.xlu0 %439, %v410
        %v441 = vpop.permute.xlu0 %440
        %444 = vset.pattern.permute.xlu0 0
        %445 = vperm.xlu0 %444, %v411
        %v446 = vpop.permute.xlu0 %445
        %449 = vset.pattern.permute.xlu0 0
        %450 = vperm.xlu0 %449, %v412
        %v451 = vpop.permute.xlu0 %450
        %454 = vset.pattern.permute.xlu0 0
        %455 = vperm.xlu0 %454, %v413
        %v456 = vpop.permute.xlu0 %455
        %459 = vset.pattern.permute.xlu0 0
        %460 = vperm.xlu0 %459, %v414
        %v461 = vpop.permute.xlu0 %460
        %464 = vset.pattern.permute.xlu0 0
        %465 = vperm.xlu0 %464, %v415
        %v466 = vpop.permute.xlu0 %465
        %469 = vset.pattern.permute.xlu0 0
        %470 = vperm.xlu0 %469, %v416
        %v471 = vpop.permute.xlu0 %470
        %474 = vset.pattern.permute.xlu0 0
        %475 = vperm.xlu0 %474, %v417
        %v476 = vpop.permute.xlu0 %475
        %479 = vset.pattern.permute.xlu0 0
        %480 = vperm.xlu0 %479, %v418
        %v481 = vpop.permute.xlu0 %480
        %484 = vset.pattern.permute.xlu0 0
        %485 = vperm.xlu0 %484, %v419
        %v486 = vpop.permute.xlu0 %485
        %489 = vset.pattern.permute.xlu0 0
        %490 = vperm.xlu0 %489, %v420
        %v491 = vpop.permute.xlu0 %490
        %494 = vset.pattern.permute.xlu0 0
        %495 = vperm.xlu0 %494, %v421
        %v496 = vpop.permute.xlu0 %495
        %499 = vset.pattern.permute.xlu0 0
        %500 = vperm.xlu0 %499, %v422
        %v501 = vpop.permute.xlu0 %500
        %503 = vst [vmem:[#allocation5] sm:$0xff] %v426
        %504 = vst [vmem:[#allocation5 + $0x8] sm:$0xff] %v426
        %505 = vst [vmem:[#allocation5 + $0x10] sm:$0xff] %v431
        %506 = vst [vmem:[#allocation5 + $0x18] sm:$0xff] %v431
        %507 = vst [vmem:[#allocation5 + $0x20] sm:$0xff] %v436
        %508 = vst [vmem:[#allocation5 + $0x28] sm:$0xff] %v436
        %509 = vst [vmem:[#allocation5 + $0x30] sm:$0xff] %v441
        %510 = vst [vmem:[#allocation5 + $0x38] sm:$0xff] %v441
        %511 = vst [vmem:[#allocation5 + $0x40] sm:$0xff] %v446
        %512 = vst [vmem:[#allocation5 + $0x48] sm:$0xff] %v446
        %513 = vst [vmem:[#allocation5 + $0x50] sm:$0xff] %v451
        %514 = vst [vmem:[#allocation5 + $0x58] sm:$0xff] %v451
        %515 = vst [vmem:[#allocation5 + $0x60] sm:$0xff] %v456
        %516 = vst [vmem:[#allocation5 + $0x68] sm:$0xff] %v456
        %517 = vst [vmem:[#allocation5 + $0x70] sm:$0xff] %v461
        %518 = vst [vmem:[#allocation5 + $0x78] sm:$0xff] %v461
        %519 = vst [vmem:[#allocation5 + $0x80] sm:$0xff] %v466
        %520 = vst [vmem:[#allocation5 + $0x88] sm:$0xff] %v466
        %521 = vst [vmem:[#allocation5 + $0x90] sm:$0xff] %v471
        %522 = vst [vmem:[#allocation5 + $0x98] sm:$0xff] %v471
        %523 = vst [vmem:[#allocation5 + $0xa0] sm:$0xff] %v476
        %524 = vst [vmem:[#allocation5 + $0xa8] sm:$0xff] %v476
        %525 = vst [vmem:[#allocation5 + $0xb0] sm:$0xff] %v481
        %526 = vst [vmem:[#allocation5 + $0xb8] sm:$0xff] %v481
        %527 = vst [vmem:[#allocation5 + $0xc0] sm:$0xff] %v486
        %528 = vst [vmem:[#allocation5 + $0xc8] sm:$0xff] %v486
        %529 = vst [vmem:[#allocation5 + $0xd0] sm:$0xff] %v491
        %530 = vst [vmem:[#allocation5 + $0xd8] sm:$0xff] %v491
        %531 = vst [vmem:[#allocation5 + $0xe0] sm:$0xff] %v496
        %532 = vst [vmem:[#allocation5 + $0xe8] sm:$0xff] %v496
        %533 = vst [vmem:[#allocation5 + $0xf0] sm:$0xff] %v501
        %534 = vst [vmem:[#allocation5 + $0xf8] sm:$0xff] %v501
        %v535 = vlaneseq
        %v536 = vand.u32 %v535, 127
        %v537 = vadd.s32 %v536, 128
        %vm538 = vcmp.lt.s32.totalorder %v536, 0
        %v539 = vsub.s32 0, %v536
        %v540 = vsel %vm538, %v539, %v536
        %v541 = vshrl.u32 %v540, 4
        %v542 = vand.u32 %v540, 15
        %v543 = vsub.s32 0, %v542
        %v544 = vsel %vm538, %v543, %v542
        %vm545 = vcmp.lt.s32.totalorder %v537, 0
        %v546 = vsub.s32 0, %v537
        %v547 = vsel %vm545, %v546, %v537
        %v548 = vshrl.u32 %v547, 4
        %v549 = vand.u32 %v547, 15
        %v550 = vsub.s32 0, %v549
        %v551 = vsel %vm545, %v550, %v549
        %vm552 = vcmp.ne.s32.totalorder %v544, 0
        %vm553 = vcmp.ne.s32.totalorder %v551, 0
        %vm554 = vcmp.lt.s32.totalorder %v544, 0
        %vm555 = vcmp.lt.s32.totalorder %v551, 0
        %vm556 = vmand %vm554, %vm552
        %vm557 = vmand %vm555, %vm553
        %v558 = vadd.s32 %v544, 16
        %v559 = vadd.s32 %v551, 16
        %v560 = vsel %vm556, %v558, %v544
        %v561 = vsel %vm557, %v559, %v551
        %v562 = vld [vmem:[#allocation2] sm:$0xff]
        %v563 = vld [vmem:[#allocation2 + $0x8] sm:$0xff]
        %v564 = vld [vmem:[#allocation2 + $0x10] sm:$0xff]
        %v565 = vld [vmem:[#allocation2 + $0x20] sm:$0xff]
        %v566 = vld [vmem:[#allocation2 + $0x28] sm:$0xff]
        %v567 = vld [vmem:[#allocation2 + $0x30] sm:$0xff]
        %v568 = vld [vmem:[#allocation2 + $0x40] sm:$0xff]
        %v569 = vld [vmem:[#allocation2 + $0x48] sm:$0xff]
        %v570 = vld [vmem:[#allocation2 + $0x50] sm:$0xff]
        %v571 = vld [vmem:[#allocation2 + $0x60] sm:$0xff]
        %v572 = vld [vmem:[#allocation2 + $0x68] sm:$0xff]
        %v573 = vld [vmem:[#allocation2 + $0x70] sm:$0xff]
        %v574 = vld [vmem:[#allocation2 + $0x80] sm:$0xf]
        %v575 = vld [vmem:[#allocation2 + $0x88] sm:$0xf]
        %v576 = vld [vmem:[#allocation2 + $0x90] sm:$0xf]
        %vm577 = vcmp.lt.s32.totalorder %v560, 1
        %vm578 = vcmp.lt.s32.totalorder %v561, 1
        %594 = vrot.lane.b32.xlu0 %v562, 17
        %v595 = vpop.permute.xlu0 %594
        %596 = vrot.lane.b32.xlu0 %v563, 17
        %v597 = vpop.permute.xlu0 %596
        %598 = vrot.lane.b32.xlu0 %v564, 17
        %v599 = vpop.permute.xlu0 %598
        %600 = vrot.lane.b32.xlu0 %v565, 17
        %v601 = vpop.permute.xlu0 %600
        %602 = vrot.lane.b32.xlu0 %v566, 17
        %v603 = vpop.permute.xlu0 %602
        %604 = vrot.lane.b32.xlu0 %v567, 17
        %v605 = vpop.permute.xlu0 %604
        %606 = vrot.lane.b32.xlu0 %v568, 17
        %v607 = vpop.permute.xlu0 %606
        %608 = vrot.lane.b32.xlu0 %v569, 17
        %v609 = vpop.permute.xlu0 %608
        %610 = vrot.lane.b32.xlu0 %v570, 17
        %v611 = vpop.permute.xlu0 %610
        %612 = vrot.lane.b32.xlu0 %v571, 17
        %v613 = vpop.permute.xlu0 %612
        %614 = vrot.lane.b32.xlu0 %v572, 17
        %v615 = vpop.permute.xlu0 %614
        %616 = vrot.lane.b32.xlu0 %v573, 17
        %v617 = vpop.permute.xlu0 %616
        %618 = vrot.lane.b32.xlu0 %v574, 17
        %v619 = vpop.permute.xlu0 %618
        %620 = vrot.lane.b32.xlu0 %v575, 17
        %v621 = vpop.permute.xlu0 %620
        %622 = vrot.lane.b32.xlu0 %v576, 17
        %v623 = vpop.permute.xlu0 %622
        %vm624 = vcmask 138240
        %v625 = vsel %vm624, %v595, %v597
        %v626 = vsel %vm624, %v597, %v599
        %v627 = vsel %vm624, %v601, %v603
        %v628 = vsel %vm624, %v603, %v605
        %v629 = vsel %vm624, %v607, %v609
        %v630 = vsel %vm624, %v609, %v611
        %v631 = vsel %vm624, %v613, %v615
        %v632 = vsel %vm624, %v615, %v617
        %v633 = vsel %vm624, %v619, %v621
        %v634 = vsel %vm624, %v621, %v623
        %v645 = vsel %vm577, 0.0, %v625
        %v646 = vsel %vm578, 0.0, %v626
        %v647 = vsel %vm577, 0.0, %v627
        %v648 = vsel %vm578, 0.0, %v628
        %v649 = vsel %vm577, 0.0, %v629
        %v650 = vsel %vm578, 0.0, %v630
        %v651 = vsel %vm577, 0.0, %v631
        %v652 = vsel %vm578, 0.0, %v632
        %v653 = vsel %vm577, 0.0, %v633
        %v654 = vsel %vm578, 0.0, %v634
        %v655 = vld [vmem:[#allocation5] sm:$0xff]
        %v656 = vld [vmem:[#allocation5 + $0x8] sm:$0xff]
        %v657 = vld [vmem:[#allocation5 + $0x10] sm:$0xff]
        %v658 = vld [vmem:[#allocation5 + $0x18] sm:$0xff]
        %v659 = vld [vmem:[#allocation5 + $0x20] sm:$0xff]
        %v660 = vld [vmem:[#allocation5 + $0x28] sm:$0xff]
        %v661 = vld [vmem:[#allocation5 + $0x30] sm:$0xff]
        %v662 = vld [vmem:[#allocation5 + $0x38] sm:$0xff]
        %v663 = vld [vmem:[#allocation5 + $0x40] sm:$0xff]
        %v664 = vld [vmem:[#allocation5 + $0x48] sm:$0xff]
        %v665 = vld [vmem:[#allocation5 + $0x50] sm:$0xff]
        %v666 = vld [vmem:[#allocation5 + $0x58] sm:$0xff]
        %v667 = vld [vmem:[#allocation5 + $0x60] sm:$0xff]
        %v668 = vld [vmem:[#allocation5 + $0x68] sm:$0xff]
        %v669 = vld [vmem:[#allocation5 + $0x70] sm:$0xff]
        %v670 = vld [vmem:[#allocation5 + $0x78] sm:$0xff]
        %v671 = vld [vmem:[#allocation5 + $0x80] sm:$0xff]
        %v672 = vld [vmem:[#allocation5 + $0x88] sm:$0xff]
        %v673 = vld [vmem:[#allocation5 + $0x90] sm:$0xff]
        %v674 = vld [vmem:[#allocation5 + $0x98] sm:$0xff]
        %v675 = vld [vmem:[#allocation5 + $0xa0] sm:$0xff]
        %v676 = vld [vmem:[#allocation5 + $0xa8] sm:$0xff]
        %v677 = vld [vmem:[#allocation5 + $0xb0] sm:$0xff]
        %v678 = vld [vmem:[#allocation5 + $0xb8] sm:$0xff]
        %v679 = vld [vmem:[#allocation5 + $0xc0] sm:$0xff]
        %v680 = vld [vmem:[#allocation5 + $0xc8] sm:$0xff]
        %v681 = vld [vmem:[#allocation5 + $0xd0] sm:$0xff]
        %v682 = vld [vmem:[#allocation5 + $0xd8] sm:$0xff]
        %v683 = vld [vmem:[#allocation5 + $0xe0] sm:$0xff]
        %v684 = vld [vmem:[#allocation5 + $0xe8] sm:$0xff]
        %v685 = vld [vmem:[#allocation5 + $0xf0] sm:$0xff]
        %v686 = vld [vmem:[#allocation5 + $0xf8] sm:$0xff]
        %v687 = vld [vmem:[%s3] sm:$0xff]
        %v688 = vld [vmem:[%s3 + $0x8] sm:$0xff]
        %v689 = vld [vmem:[%s3 + $0x10] sm:$0xff]
        %v690 = vld [vmem:[%s3 + $0x18] sm:$0xff]
        %v691 = vld [vmem:[%s3 + $0x20] sm:$0xff]
        %v692 = vld [vmem:[%s3 + $0x28] sm:$0xff]
        %v693 = vld [vmem:[%s3 + $0x30] sm:$0xff]
        %v694 = vld [vmem:[%s3 + $0x38] sm:$0xff]
        %v695 = vld [vmem:[%s3 + $0x40] sm:$0xff]
        %v696 = vld [vmem:[%s3 + $0x48] sm:$0xff]
        %v697 = vld [vmem:[%s3 + $0x50] sm:$0xff]
        %v698 = vld [vmem:[%s3 + $0x58] sm:$0xff]
        %v699 = vld [vmem:[%s3 + $0x60] sm:$0xff]
        %v700 = vld [vmem:[%s3 + $0x68] sm:$0xff]
        %v701 = vld [vmem:[%s3 + $0x70] sm:$0xff]
        %v702 = vld [vmem:[%s3 + $0x78] sm:$0xff]
        %vm703 = vcmask 293888
        %v705 = vsel %vm703, %v687, 0
        %v708 = vsel %vm703, %v688, 0
        %v711 = vsel %vm703, %v689, 0
        %v714 = vsel %vm703, %v690, 0
        %v717 = vsel %vm703, %v691, 0
        %v720 = vsel %vm703, %v692, 0
        %v723 = vsel %vm703, %v693, 0
        %v726 = vsel %vm703, %v694, 0
        %v729 = vsel %vm703, %v695, 0
        %v732 = vsel %vm703, %v696, 0
        %v735 = vsel %vm703, %v697, 0
        %v738 = vsel %vm703, %v698, 0
        %v741 = vsel %vm703, %v699, 0
        %v744 = vsel %vm703, %v700, 0
        %v747 = vsel %vm703, %v701, 0
        %v750 = vsel %vm703, %v702, 0
        %vm752 = vcmask 1043456
        %v754 = vsel %vm752, %v653, 0
        %v757 = vsel %vm752, %v654, 0
        %759 = vmatprep.subr.mxu0 %v646
        %760 = vmatpush1.msra.mxu0 %v645
        %761 = vmatprep.subr.mxu0 %v648
        %762 = vmatpush1.msra.mxu0 %v647
        %763 = vmatprep.subr.mxu0 %v650
        %764 = vmatpush1.msra.mxu0 %v649
        %765 = vmatprep.subr.mxu0 %v652
        %766 = vmatpush1.msra.mxu0 %v651
        %767 = vmatprep.subr.mxu0 %v757
        %768 = vmatpush1.msra.mxu0 %v754
        %769 = vmatprep.subr.mxu0 0.0
        %770 = vmatpush1.msra.mxu0 0.0
        %771 = vmatprep.subr.mxu0 0.0
        %772 = vmatpush1.msra.mxu0 0.0
        %773 = vmatprep.subr.mxu0 0.0
        %774 = vmatpush1.msra.mxu0 0.0
        %775 = vmatprep.subr.mxu0 0.0
        %776 = vmatpush1.msra.mxu0 0.0
        %777 = vmatprep.subr.mxu0 0.0
        %778 = vmatpush1.msra.mxu0 0.0
        %779 = vmatprep.subr.mxu0 0.0
        %780 = vmatpush1.msra.mxu0 0.0
        %781 = vmatprep.subr.mxu0 0.0
        %782 = vmatpush1.msra.mxu0 0.0
        %783 = vmatprep.subr.mxu0 0.0
        %784 = vmatpush1.msra.mxu0 0.0
        %785 = vmatprep.subr.mxu0 0.0
        %786 = vmatpush1.msra.mxu0 0.0
        %787 = vmatprep.subr.mxu0 0.0
        %788 = vmatpush1.msra.mxu0 0.0
        %789 = vmatprep.subr.mxu0 0.0
        %790 = vmatpush1.msra.mxu0 0.0
        %791 = vmatprep.subr.mxu0 0.0
        %792 = vmatpush1.msra.mxu0 0.0
        %793 = vmatprep.subr.mxu0 0.0
        %794 = vmatpush1.msra.mxu0 0.0
        %795 = vmatprep.subr.mxu0 0.0
        %796 = vmatpush1.msra.mxu0 0.0
        %797 = vmatprep.subr.mxu0 0.0
        %798 = vmatpush1.msra.mxu0 0.0
        %799 = vmatprep.subr.mxu0 0.0
        %800 = vmatpush1.msra.mxu0 0.0
        %801 = vmatprep.subr.mxu0 0.0
        %802 = vmatpush1.msra.mxu0 0.0
        %803 = vmatprep.subr.mxu0 0.0
        %804 = vmatpush1.msra.mxu0 0.0
        %805 = vmatprep.subr.mxu0 0.0
        %806 = vmatpush1.msra.mxu0 0.0
        %807 = vmatprep.subr.mxu0 0.0
        %808 = vmatpush1.msra.mxu0 0.0
        %809 = vmatprep.subr.mxu0 0.0
        %810 = vmatpush1.msra.mxu0 0.0
        %811 = vmatprep.subr.mxu0 0.0
        %812 = vmatpush1.msra.mxu0 0.0
        %813 = vmatprep.subr.mxu0 0.0
        %814 = vmatpush1.msra.mxu0 0.0
        %815 = vmatprep.subr.mxu0 0.0
        %816 = vmatpush1.msra.mxu0 0.0
        %817 = vmatprep.subr.mxu0 0.0
        %818 = vmatpush1.msra.mxu0 0.0
        %819 = vmatprep.subr.mxu0 0.0
        %820 = vmatpush1.msra.mxu0 0.0
        %821 = vmatprep.subr.mxu0 0.0
        %822 = vmatpush1.msra.mxu0 0.0
        %823 = vmatprep.mubr.f32.mxu0 0.0
        %824 = vmatmul.mubr.f32.gmra.mrb[0].mxu0 %v705
        %v825 = vpop.f32.mrb[0].mxu0
        %v826 = vadd.f32 0.0, %v825
        %v827 = vpop.f32.mrb[0].mxu0
        %v828 = vadd.f32 0.0, %v827
        %829 = vmatprep.mubr.f32.mxu0 0.0
        %830 = vmatmul.mubr.f32.gmra.mrb[0].mxu0 %v708
        %v831 = vpop.f32.mrb[0].mxu0
        %v832 = vadd.f32 0.0, %v831
        %v833 = vpop.f32.mrb[0].mxu0
        %v834 = vadd.f32 0.0, %v833
        %835 = vmatprep.mubr.f32.mxu0 0.0
        %836 = vmatmul.mubr.f32.gmra.mrb[0].mxu0 %v711
        %v837 = vpop.f32.mrb[0].mxu0
        %v838 = vadd.f32 0.0, %v837
        %v839 = vpop.f32.mrb[0].mxu0
        %v840 = vadd.f32 0.0, %v839
        %841 = vmatprep.mubr.f32.mxu0 0.0
        %842 = vmatmul.mubr.f32.gmra.mrb[0].mxu0 %v714
        %v843 = vpop.f32.mrb[0].mxu0
        %v844 = vadd.f32 0.0, %v843
        %v845 = vpop.f32.mrb[0].mxu0
        %v846 = vadd.f32 0.0, %v845
        %847 = vmatprep.mubr.f32.mxu0 0.0
        %848 = vmatmul.mubr.f32.gmra.mrb[0].mxu0 %v717
        %v849 = vpop.f32.mrb[0].mxu0
        %v850 = vadd.f32 0.0, %v849
        %v851 = vpop.f32.mrb[0].mxu0
        %v852 = vadd.f32 0.0, %v851
        %853 = vmatprep.mubr.f32.mxu0 0.0
        %854 = vmatmul.mubr.f32.gmra.mrb[0].mxu0 %v720
        %v855 = vpop.f32.mrb[0].mxu0
        %v856 = vadd.f32 0.0, %v855
        %v857 = vpop.f32.mrb[0].mxu0
        %v858 = vadd.f32 0.0, %v857
        %859 = vmatprep.mubr.f32.mxu0 0.0
        %860 = vmatmul.mubr.f32.gmra.mrb[0].mxu0 %v723
        %v861 = vpop.f32.mrb[0].mxu0
        %v862 = vadd.f32 0.0, %v861
        %v863 = vpop.f32.mrb[0].mxu0
        %v864 = vadd.f32 0.0, %v863
        %865 = vmatprep.mubr.f32.mxu0 0.0
        %866 = vmatmul.mubr.f32.gmra.mrb[0].mxu0 %v726
        %v867 = vpop.f32.mrb[0].mxu0
        %v868 = vadd.f32 0.0, %v867
        %v869 = vpop.f32.mrb[0].mxu0
        %v870 = vadd.f32 0.0, %v869
        %871 = vmatprep.mubr.f32.mxu0 0.0
        %872 = vmatmul.mubr.f32.gmra.mrb[0].mxu0 %v729
        %v873 = vpop.f32.mrb[0].mxu0
        %v874 = vadd.f32 0.0, %v873
        %v875 = vpop.f32.mrb[0].mxu0
        %v876 = vadd.f32 0.0, %v875
        %877 = vmatprep.mubr.f32.mxu0 0.0
        %878 = vmatmul.mubr.f32.gmra.mrb[0].mxu0 %v732
        %v879 = vpop.f32.mrb[0].mxu0
        %v880 = vadd.f32 0.0, %v879
        %v881 = vpop.f32.mrb[0].mxu0
        %v882 = vadd.f32 0.0, %v881
        %883 = vmatprep.mubr.f32.mxu0 0.0
        %884 = vmatmul.mubr.f32.gmra.mrb[0].mxu0 %v735
        %v885 = vpop.f32.mrb[0].mxu0
        %v886 = vadd.f32 0.0, %v885
        %v887 = vpop.f32.mrb[0].mxu0
        %v888 = vadd.f32 0.0, %v887
        %889 = vmatprep.mubr.f32.mxu0 0.0
        %890 = vmatmul.mubr.f32.gmra.mrb[0].mxu0 %v738
        %v891 = vpop.f32.mrb[0].mxu0
        %v892 = vadd.f32 0.0, %v891
        %v893 = vpop.f32.mrb[0].mxu0
        %v894 = vadd.f32 0.0, %v893
        %895 = vmatprep.mubr.f32.mxu0 0.0
        %896 = vmatmul.mubr.f32.gmra.mrb[0].mxu0 %v741
        %v897 = vpop.f32.mrb[0].mxu0
        %v898 = vadd.f32 0.0, %v897
        %v899 = vpop.f32.mrb[0].mxu0
        %v900 = vadd.f32 0.0, %v899
        %901 = vmatprep.mubr.f32.mxu0 0.0
        %902 = vmatmul.mubr.f32.gmra.mrb[0].mxu0 %v744
        %v903 = vpop.f32.mrb[0].mxu0
        %v904 = vadd.f32 0.0, %v903
        %v905 = vpop.f32.mrb[0].mxu0
        %v906 = vadd.f32 0.0, %v905
        %907 = vmatprep.mubr.f32.mxu0 0.0
        %908 = vmatmul.mubr.f32.gmra.mrb[0].mxu0 %v747
        %v909 = vpop.f32.mrb[0].mxu0
        %v910 = vadd.f32 0.0, %v909
        %v911 = vpop.f32.mrb[0].mxu0
        %v912 = vadd.f32 0.0, %v911
        %913 = vmatprep.mubr.f32.mxu0 0.0
        %914 = vmatmul.mubr.f32.gmra.mrb[0].mxu0 %v750
        %v915 = vpop.f32.mrb[0].mxu0
        %v916 = vadd.f32 0.0, %v915
        %v917 = vpop.f32.mrb[0].mxu0
        %v918 = vadd.f32 0.0, %v917
        %919 = vdwg.mxu0
        %v920 = vadd.f32 %v655, %v826
        %v921 = vadd.f32 %v656, %v828
        %v922 = vadd.f32 %v657, %v832
        %v923 = vadd.f32 %v658, %v834
        %v924 = vadd.f32 %v659, %v838
        %v925 = vadd.f32 %v660, %v840
        %v926 = vadd.f32 %v661, %v844
        %v927 = vadd.f32 %v662, %v846
        %v928 = vadd.f32 %v663, %v850
        %v929 = vadd.f32 %v664, %v852
        %v930 = vadd.f32 %v665, %v856
        %v931 = vadd.f32 %v666, %v858
        %v932 = vadd.f32 %v667, %v862
        %v933 = vadd.f32 %v668, %v864
        %v934 = vadd.f32 %v669, %v868
        %v935 = vadd.f32 %v670, %v870
        %v936 = vadd.f32 %v671, %v874
        %v937 = vadd.f32 %v672, %v876
        %v938 = vadd.f32 %v673, %v880
        %v939 = vadd.f32 %v674, %v882
        %v940 = vadd.f32 %v675, %v886
        %v941 = vadd.f32 %v676, %v888
        %v942 = vadd.f32 %v677, %v892
        %v943 = vadd.f32 %v678, %v894
        %v944 = vadd.f32 %v679, %v898
        %v945 = vadd.f32 %v680, %v900
        %v946 = vadd.f32 %v681, %v904
        %v947 = vadd.f32 %v682, %v906
        %v948 = vadd.f32 %v683, %v910
        %v949 = vadd.f32 %v684, %v912
        %v950 = vadd.f32 %v685, %v916
        %v951 = vadd.f32 %v686, %v918
        %952 = vst [vmem:[#allocation5] sm:$0xff] %v920
        %953 = vst [vmem:[#allocation5 + $0x8] sm:$0xff] %v921
        %954 = vst [vmem:[#allocation5 + $0x10] sm:$0xff] %v922
        %955 = vst [vmem:[#allocation5 + $0x18] sm:$0xff] %v923
        %956 = vst [vmem:[#allocation5 + $0x20] sm:$0xff] %v924
        %957 = vst [vmem:[#allocation5 + $0x28] sm:$0xff] %v925
        %958 = vst [vmem:[#allocation5 + $0x30] sm:$0xff] %v926
        %959 = vst [vmem:[#allocation5 + $0x38] sm:$0xff] %v927
        %960 = vst [vmem:[#allocation5 + $0x40] sm:$0xff] %v928
        %961 = vst [vmem:[#allocation5 + $0x48] sm:$0xff] %v929
        %962 = vst [vmem:[#allocation5 + $0x50] sm:$0xff] %v930
        %963 = vst [vmem:[#allocation5 + $0x58] sm:$0xff] %v931
        %964 = vst [vmem:[#allocation5 + $0x60] sm:$0xff] %v932
        %965 = vst [vmem:[#allocation5 + $0x68] sm:$0xff] %v933
        %966 = vst [vmem:[#allocation5 + $0x70] sm:$0xff] %v934
        %967 = vst [vmem:[#allocation5 + $0x78] sm:$0xff] %v935
        %968 = vst [vmem:[#allocation5 + $0x80] sm:$0xff] %v936
        %969 = vst [vmem:[#allocation5 + $0x88] sm:$0xff] %v937
        %970 = vst [vmem:[#allocation5 + $0x90] sm:$0xff] %v938
        %971 = vst [vmem:[#allocation5 + $0x98] sm:$0xff] %v939
        %972 = vst [vmem:[#allocation5 + $0xa0] sm:$0xff] %v940
        %973 = vst [vmem:[#allocation5 + $0xa8] sm:$0xff] %v941
        %974 = vst [vmem:[#allocation5 + $0xb0] sm:$0xff] %v942
        %975 = vst [vmem:[#allocation5 + $0xb8] sm:$0xff] %v943
        %976 = vst [vmem:[#allocation5 + $0xc0] sm:$0xff] %v944
        %977 = vst [vmem:[#allocation5 + $0xc8] sm:$0xff] %v945
        %978 = vst [vmem:[#allocation5 + $0xd0] sm:$0xff] %v946
        %979 = vst [vmem:[#allocation5 + $0xd8] sm:$0xff] %v947
        %980 = vst [vmem:[#allocation5 + $0xe0] sm:$0xff] %v948
        %981 = vst [vmem:[#allocation5 + $0xe8] sm:$0xff] %v949
        %982 = vst [vmem:[#allocation5 + $0xf0] sm:$0xff] %v950
        %983 = vst [vmem:[#allocation5 + $0xf8] sm:$0xff] %v951
        %v984 = vld [vmem:[#allocation2] sm:$0xff]
        %v985 = vld [vmem:[#allocation2 + $0x8] sm:$0xff]
        %v986 = vld [vmem:[#allocation2 + $0x10] sm:$0xff]
        %v987 = vld [vmem:[#allocation2 + $0x20] sm:$0xff]
        %v988 = vld [vmem:[#allocation2 + $0x28] sm:$0xff]
        %v989 = vld [vmem:[#allocation2 + $0x30] sm:$0xff]
        %v990 = vld [vmem:[#allocation2 + $0x40] sm:$0xff]
        %v991 = vld [vmem:[#allocation2 + $0x48] sm:$0xff]
        %v992 = vld [vmem:[#allocation2 + $0x50] sm:$0xff]
        %v993 = vld [vmem:[#allocation2 + $0x60] sm:$0xff]
        %v994 = vld [vmem:[#allocation2 + $0x68] sm:$0xff]
        %v995 = vld [vmem:[#allocation2 + $0x70] sm:$0xff]
        %v996 = vld [vmem:[#allocation2 + $0x80] sm:$0xf]
        %v997 = vld [vmem:[#allocation2 + $0x88] sm:$0xf]
        %v998 = vld [vmem:[#allocation2 + $0x90] sm:$0xf]
        %v999 = vld [vmem:[#allocation5] sm:$0xff]
        %v1000 = vld [vmem:[#allocation5 + $0x8] sm:$0xff]
        %v1001 = vld [vmem:[#allocation5 + $0x10] sm:$0xff]
        %v1002 = vld [vmem:[#allocation5 + $0x18] sm:$0xff]
        %v1003 = vld [vmem:[#allocation5 + $0x20] sm:$0xff]
        %v1004 = vld [vmem:[#allocation5 + $0x28] sm:$0xff]
        %v1005 = vld [vmem:[#allocation5 + $0x30] sm:$0xff]
        %v1006 = vld [vmem:[#allocation5 + $0x38] sm:$0xff]
        %v1007 = vld [vmem:[#allocation5 + $0x40] sm:$0xff]
        %v1008 = vld [vmem:[#allocation5 + $0x48] sm:$0xff]
        %v1009 = vld [vmem:[#allocation5 + $0x50] sm:$0xff]
        %v1010 = vld [vmem:[#allocation5 + $0x58] sm:$0xff]
        %v1011 = vld [vmem:[#allocation5 + $0x60] sm:$0xff]
        %v1012 = vld [vmem:[#allocation5 + $0x68] sm:$0xff]
        %v1013 = vld [vmem:[#allocation5 + $0x70] sm:$0xff]
        %v1014 = vld [vmem:[#allocation5 + $0x78] sm:$0xff]
        %v1015 = vld [vmem:[#allocation5 + $0x80] sm:$0xff]
        %v1016 = vld [vmem:[#allocation5 + $0x88] sm:$0xff]
        %v1017 = vld [vmem:[#allocation5 + $0x90] sm:$0xff]
        %v1018 = vld [vmem:[#allocation5 + $0x98] sm:$0xff]
        %v1019 = vld [vmem:[#allocation5 + $0xa0] sm:$0xff]
        %v1020 = vld [vmem:[#allocation5 + $0xa8] sm:$0xff]
        %v1021 = vld [vmem:[#allocation5 + $0xb0] sm:$0xff]
        %v1022 = vld [vmem:[#allocation5 + $0xb8] sm:$0xff]
        %v1023 = vld [vmem:[#allocation5 + $0xc0] sm:$0xff]
        %v1024 = vld [vmem:[#allocation5 + $0xc8] sm:$0xff]
        %v1025 = vld [vmem:[#allocation5 + $0xd0] sm:$0xff]
        %v1026 = vld [vmem:[#allocation5 + $0xd8] sm:$0xff]
        %v1027 = vld [vmem:[#allocation5 + $0xe0] sm:$0xff]
        %v1028 = vld [vmem:[#allocation5 + $0xe8] sm:$0xff]
        %v1029 = vld [vmem:[#allocation5 + $0xf0] sm:$0xff]
        %v1030 = vld [vmem:[#allocation5 + $0xf8] sm:$0xff]
        %s1031 = scalar_lea.vmem %s3, 128
        %v1032 = vld [vmem:[%s1031] sm:$0xff]
        %v1033 = vld [vmem:[%s1031 + $0x8] sm:$0xff]
        %v1034 = vld [vmem:[%s1031 + $0x10] sm:$0xff]
        %v1035 = vld [vmem:[%s1031 + $0x18] sm:$0xff]
        %v1036 = vld [vmem:[%s1031 + $0x20] sm:$0xff]
        %v1037 = vld [vmem:[%s1031 + $0x28] sm:$0xff]
        %v1038 = vld [vmem:[%s1031 + $0x30] sm:$0xff]
        %v1039 = vld [vmem:[%s1031 + $0x38] sm:$0xff]
        %v1040 = vld [vmem:[%s1031 + $0x40] sm:$0xff]
        %v1041 = vld [vmem:[%s1031 + $0x48] sm:$0xff]
        %v1042 = vld [vmem:[%s1031 + $0x50] sm:$0xff]
        %v1043 = vld [vmem:[%s1031 + $0x58] sm:$0xff]
        %v1044 = vld [vmem:[%s1031 + $0x60] sm:$0xff]
        %v1045 = vld [vmem:[%s1031 + $0x68] sm:$0xff]
        %v1046 = vld [vmem:[%s1031 + $0x70] sm:$0xff]
        %v1047 = vld [vmem:[%s1031 + $0x78] sm:$0xff]
        %1063 = vrot.lane.b32.xlu0 %v984, 16
        %v1064 = vpop.permute.xlu0 %1063
        %1065 = vrot.lane.b32.xlu0 %v985, 16
        %v1066 = vpop.permute.xlu0 %1065
        %1067 = vrot.lane.b32.xlu0 %v986, 16
        %v1068 = vpop.permute.xlu0 %1067
        %1069 = vrot.lane.b32.xlu0 %v987, 16
        %v1070 = vpop.permute.xlu0 %1069
        %1071 = vrot.lane.b32.xlu0 %v988, 16
        %v1072 = vpop.permute.xlu0 %1071
        %1073 = vrot.lane.b32.xlu0 %v989, 16
        %v1074 = vpop.permute.xlu0 %1073
        %1075 = vrot.lane.b32.xlu0 %v990, 16
        %v1076 = vpop.permute.xlu0 %1075
        %1077 = vrot.lane.b32.xlu0 %v991, 16
        %v1078 = vpop.permute.xlu0 %1077
        %1079 = vrot.lane.b32.xlu0 %v992, 16
        %v1080 = vpop.permute.xlu0 %1079
        %1081 = vrot.lane.b32.xlu0 %v993, 16
        %v1082 = vpop.permute.xlu0 %1081
        %1083 = vrot.lane.b32.xlu0 %v994, 16
        %v1084 = vpop.permute.xlu0 %1083
        %1085 = vrot.lane.b32.xlu0 %v995, 16
        %v1086 = vpop.permute.xlu0 %1085
        %1087 = vrot.lane.b32.xlu0 %v996, 16
        %v1088 = vpop.permute.xlu0 %1087
        %1089 = vrot.lane.b32.xlu0 %v997, 16
        %v1090 = vpop.permute.xlu0 %1089
        %1091 = vrot.lane.b32.xlu0 %v998, 16
        %v1092 = vpop.permute.xlu0 %1091
        %vm1093 = vcmask 130048
        %v1094 = vsel %vm1093, %v1064, %v1066
        %v1095 = vsel %vm1093, %v1066, %v1068
        %v1096 = vsel %vm1093, %v1070, %v1072
        %v1097 = vsel %vm1093, %v1072, %v1074
        %v1098 = vsel %vm1093, %v1076, %v1078
        %v1099 = vsel %vm1093, %v1078, %v1080
        %v1100 = vsel %vm1093, %v1082, %v1084
        %v1101 = vsel %vm1093, %v1084, %v1086
        %v1102 = vsel %vm1093, %v1088, %v1090
        %v1103 = vsel %vm1093, %v1090, %v1092
        %v1113 = vsel %vm703, %v1032, 0
        %v1116 = vsel %vm703, %v1033, 0
        %v1119 = vsel %vm703, %v1034, 0
        %v1122 = vsel %vm703, %v1035, 0
        %v1125 = vsel %vm703, %v1036, 0
        %v1128 = vsel %vm703, %v1037, 0
        %v1131 = vsel %vm703, %v1038, 0
        %v1134 = vsel %vm703, %v1039, 0
        %v1137 = vsel %vm703, %v1040, 0
        %v1140 = vsel %vm703, %v1041, 0
        %v1143 = vsel %vm703, %v1042, 0
        %v1146 = vsel %vm703, %v1043, 0
        %v1149 = vsel %vm703, %v1044, 0
        %v1152 = vsel %vm703, %v1045, 0
        %v1155 = vsel %vm703, %v1046, 0
        %v1158 = vsel %vm703, %v1047, 0
        %v1160 = vsel %vm752, %v1102, 0
        %v1162 = vsel %vm752, %v1103, 0
        %1164 = vmatprep.subr.mxu0 %v1095
        %1165 = vmatpush1.msra.mxu0 %v1094
        %1166 = vmatprep.subr.mxu0 %v1097
        %1167 = vmatpush1.msra.mxu0 %v1096
        %1168 = vmatprep.subr.mxu0 %v1099
        %1169 = vmatpush1.msra.mxu0 %v1098
        %1170 = vmatprep.subr.mxu0 %v1101
        %1171 = vmatpush1.msra.mxu0 %v1100
        %1172 = vmatprep.subr.mxu0 %v1162
        %1173 = vmatpush1.msra.mxu0 %v1160
        %1174 = vmatprep.subr.mxu0 0.0
        %1175 = vmatpush1.msra.mxu0 0.0
        %1176 = vmatprep.subr.mxu0 0.0
        %1177 = vmatpush1.msra.mxu0 0.0
        %1178 = vmatprep.subr.mxu0 0.0
        %1179 = vmatpush1.msra.mxu0 0.0
        %1180 = vmatprep.subr.mxu0 0.0
        %1181 = vmatpush1.msra.mxu0 0.0
        %1182 = vmatprep.subr.mxu0 0.0
        %1183 = vmatpush1.msra.mxu0 0.0
        %1184 = vmatprep.subr.mxu0 0.0
        %1185 = vmatpush1.msra.mxu0 0.0
        %1186 = vmatprep.subr.mxu0 0.0
        %1187 = vmatpush1.msra.mxu0 0.0
        %1188 = vmatprep.subr.mxu0 0.0
        %1189 = vmatpush1.msra.mxu0 0.0
        %1190 = vmatprep.subr.mxu0 0.0
        %1191 = vmatpush1.msra.mxu0 0.0
        %1192 = vmatprep.subr.mxu0 0.0
        %1193 = vmatpush1.msra.mxu0 0.0
        %1194 = vmatprep.subr.mxu0 0.0
        %1195 = vmatpush1.msra.mxu0 0.0
        %1196 = vmatprep.subr.mxu0 0.0
        %1197 = vmatpush1.msra.mxu0 0.0
        %1198 = vmatprep.subr.mxu0 0.0
        %1199 = vmatpush1.msra.mxu0 0.0
        %1200 = vmatprep.subr.mxu0 0.0
        %1201 = vmatpush1.msra.mxu0 0.0
        %1202 = vmatprep.subr.mxu0 0.0
        %1203 = vmatpush1.msra.mxu0 0.0
        %1204 = vmatprep.subr.mxu0 0.0
        %1205 = vmatpush1.msra.mxu0 0.0
        %1206 = vmatprep.subr.mxu0 0.0
        %1207 = vmatpush1.msra.mxu0 0.0
        %1208 = vmatprep.subr.mxu0 0.0
        %1209 = vmatpush1.msra.mxu0 0.0
        %1210 = vmatprep.subr.mxu0 0.0
        %1211 = vmatpush1.msra.mxu0 0.0
        %1212 = vmatprep.subr.mxu0 0.0
        %1213 = vmatpush1.msra.mxu0 0.0
        %1214 = vmatprep.subr.mxu0 0.0
        %1215 = vmatpush1.msra.mxu0 0.0
        %1216 = vmatprep.subr.mxu0 0.0
        %1217 = vmatpush1.msra.mxu0 0.0
        %1218 = vmatprep.subr.mxu0 0.0
        %1219 = vmatpush1.msra.mxu0 0.0
        %1220 = vmatprep.subr.mxu0 0.0
        %1221 = vmatpush1.msra.mxu0 0.0
        %1222 = vmatprep.subr.mxu0 0.0
        %1223 = vmatpush1.msra.mxu0 0.0
        %1224 = vmatprep.subr.mxu0 0.0
        %1225 = vmatpush1.msra.mxu0 0.0
        %1226 = vmatprep.subr.mxu0 0.0
        %1227 = vmatpush1.msra.mxu0 0.0
        %1228 = vmatprep.mubr.f32.mxu0 0.0
        %1229 = vmatmul.mubr.f32.gmra.mrb[0].mxu0 %v1113
        %v1230 = vpop.f32.mrb[0].mxu0
        %v1231 = vadd.f32 0.0, %v1230
        %v1232 = vpop.f32.mrb[0].mxu0
        %v1233 = vadd.f32 0.0, %v1232
        %1234 = vmatprep.mubr.f32.mxu0 0.0
        %1235 = vmatmul.mubr.f32.gmra.mrb[0].mxu0 %v1116
        %v1236 = vpop.f32.mrb[0].mxu0
        %v1237 = vadd.f32 0.0, %v1236
        %v1238 = vpop.f32.mrb[0].mxu0
        %v1239 = vadd.f32 0.0, %v1238
        %1240 = vmatprep.mubr.f32.mxu0 0.0
        %1241 = vmatmul.mubr.f32.gmra.mrb[0].mxu0 %v1119
        %v1242 = vpop.f32.mrb[0].mxu0
        %v1243 = vadd.f32 0.0, %v1242
        %v1244 = vpop.f32.mrb[0].mxu0
        %v1245 = vadd.f32 0.0, %v1244
        %1246 = vmatprep.mubr.f32.mxu0 0.0
        %1247 = vmatmul.mubr.f32.gmra.mrb[0].mxu0 %v1122
        %v1248 = vpop.f32.mrb[0].mxu0
        %v1249 = vadd.f32 0.0, %v1248
        %v1250 = vpop.f32.mrb[0].mxu0
        %v1251 = vadd.f32 0.0, %v1250
        %1252 = vmatprep.mubr.f32.mxu0 0.0
        %1253 = vmatmul.mubr.f32.gmra.mrb[0].mxu0 %v1125
        %v1254 = vpop.f32.mrb[0].mxu0
        %v1255 = vadd.f32 0.0, %v1254
        %v1256 = vpop.f32.mrb[0].mxu0
        %v1257 = vadd.f32 0.0, %v1256
        %1258 = vmatprep.mubr.f32.mxu0 0.0
        %1259 = vmatmul.mubr.f32.gmra.mrb[0].mxu0 %v1128
        %v1260 = vpop.f32.mrb[0].mxu0
        %v1261 = vadd.f32 0.0, %v1260
        %v1262 = vpop.f32.mrb[0].mxu0
        %v1263 = vadd.f32 0.0, %v1262
        %1264 = vmatprep.mubr.f32.mxu0 0.0
        %1265 = vmatmul.mubr.f32.gmra.mrb[0].mxu0 %v1131
        %v1266 = vpop.f32.mrb[0].mxu0
        %v1267 = vadd.f32 0.0, %v1266
        %v1268 = vpop.f32.mrb[0].mxu0
        %v1269 = vadd.f32 0.0, %v1268
        %1270 = vmatprep.mubr.f32.mxu0 0.0
        %1271 = vmatmul.mubr.f32.gmra.mrb[0].mxu0 %v1134
        %v1272 = vpop.f32.mrb[0].mxu0
        %v1273 = vadd.f32 0.0, %v1272
        %v1274 = vpop.f32.mrb[0].mxu0
        %v1275 = vadd.f32 0.0, %v1274
        %1276 = vmatprep.mubr.f32.mxu0 0.0
        %1277 = vmatmul.mubr.f32.gmra.mrb[0].mxu0 %v1137
        %v1278 = vpop.f32.mrb[0].mxu0
        %v1279 = vadd.f32 0.0, %v1278
        %v1280 = vpop.f32.mrb[0].mxu0
        %v1281 = vadd.f32 0.0, %v1280
        %1282 = vmatprep.mubr.f32.mxu0 0.0
        %1283 = vmatmul.mubr.f32.gmra.mrb[0].mxu0 %v1140
        %v1284 = vpop.f32.mrb[0].mxu0
        %v1285 = vadd.f32 0.0, %v1284
        %v1286 = vpop.f32.mrb[0].mxu0
        %v1287 = vadd.f32 0.0, %v1286
        %1288 = vmatprep.mubr.f32.mxu0 0.0
        %1289 = vmatmul.mubr.f32.gmra.mrb[0].mxu0 %v1143
        %v1290 = vpop.f32.mrb[0].mxu0
        %v1291 = vadd.f32 0.0, %v1290
        %v1292 = vpop.f32.mrb[0].mxu0
        %v1293 = vadd.f32 0.0, %v1292
        %1294 = vmatprep.mubr.f32.mxu0 0.0
        %1295 = vmatmul.mubr.f32.gmra.mrb[0].mxu0 %v1146
        %v1296 = vpop.f32.mrb[0].mxu0
        %v1297 = vadd.f32 0.0, %v1296
        %v1298 = vpop.f32.mrb[0].mxu0
        %v1299 = vadd.f32 0.0, %v1298
        %1300 = vmatprep.mubr.f32.mxu0 0.0
        %1301 = vmatmul.mubr.f32.gmra.mrb[0].mxu0 %v1149
        %v1302 = vpop.f32.mrb[0].mxu0
        %v1303 = vadd.f32 0.0, %v1302
        %v1304 = vpop.f32.mrb[0].mxu0
        %v1305 = vadd.f32 0.0, %v1304
        %1306 = vmatprep.mubr.f32.mxu0 0.0
        %1307 = vmatmul.mubr.f32.gmra.mrb[0].mxu0 %v1152
        %v1308 = vpop.f32.mrb[0].mxu0
        %v1309 = vadd.f32 0.0, %v1308
        %v1310 = vpop.f32.mrb[0].mxu0
        %v1311 = vadd.f32 0.0, %v1310
        %1312 = vmatprep.mubr.f32.mxu0 0.0
        %1313 = vmatmul.mubr.f32.gmra.mrb[0].mxu0 %v1155
        %v1314 = vpop.f32.mrb[0].mxu0
        %v1315 = vadd.f32 0.0, %v1314
        %v1316 = vpop.f32.mrb[0].mxu0
        %v1317 = vadd.f32 0.0, %v1316
        %1318 = vmatprep.mubr.f32.mxu0 0.0
        %1319 = vmatmul.mubr.f32.gmra.mrb[0].mxu0 %v1158
        %v1320 = vpop.f32.mrb[0].mxu0
        %v1321 = vadd.f32 0.0, %v1320
        %v1322 = vpop.f32.mrb[0].mxu0
        %v1323 = vadd.f32 0.0, %v1322
        %1324 = vdwg.mxu0
        %v1325 = vadd.f32 %v999, %v1231
        %v1326 = vadd.f32 %v1000, %v1233
        %v1327 = vadd.f32 %v1001, %v1237
        %v1328 = vadd.f32 %v1002, %v1239
        %v1329 = vadd.f32 %v1003, %v1243
        %v1330 = vadd.f32 %v1004, %v1245
        %v1331 = vadd.f32 %v1005, %v1249
        %v1332 = vadd.f32 %v1006, %v1251
        %v1333 = vadd.f32 %v1007, %v1255
        %v1334 = vadd.f32 %v1008, %v1257
        %v1335 = vadd.f32 %v1009, %v1261
        %v1336 = vadd.f32 %v1010, %v1263
        %v1337 = vadd.f32 %v1011, %v1267
        %v1338 = vadd.f32 %v1012, %v1269
        %v1339 = vadd.f32 %v1013, %v1273
        %v1340 = vadd.f32 %v1014, %v1275
        %v1341 = vadd.f32 %v1015, %v1279
        %v1342 = vadd.f32 %v1016, %v1281
        %v1343 = vadd.f32 %v1017, %v1285
        %v1344 = vadd.f32 %v1018, %v1287
        %v1345 = vadd.f32 %v1019, %v1291
        %v1346 = vadd.f32 %v1020, %v1293
        %v1347 = vadd.f32 %v1021, %v1297
        %v1348 = vadd.f32 %v1022, %v1299
        %v1349 = vadd.f32 %v1023, %v1303
        %v1350 = vadd.f32 %v1024, %v1305
        %v1351 = vadd.f32 %v1025, %v1309
        %v1352 = vadd.f32 %v1026, %v1311
        %v1353 = vadd.f32 %v1027, %v1315
        %v1354 = vadd.f32 %v1028, %v1317
        %v1355 = vadd.f32 %v1029, %v1321
        %v1356 = vadd.f32 %v1030, %v1323
        %1357 = vst [vmem:[#allocation5] sm:$0xff] %v1325
        %1358 = vst [vmem:[#allocation5 + $0x8] sm:$0xff] %v1326
        %1359 = vst [vmem:[#allocation5 + $0x10] sm:$0xff] %v1327
        %1360 = vst [vmem:[#allocation5 + $0x18] sm:$0xff] %v1328
        %1361 = vst [vmem:[#allocation5 + $0x20] sm:$0xff] %v1329
        %1362 = vst [vmem:[#allocation5 + $0x28] sm:$0xff] %v1330
        %1363 = vst [vmem:[#allocation5 + $0x30] sm:$0xff] %v1331
        %1364 = vst [vmem:[#allocation5 + $0x38] sm:$0xff] %v1332
        %1365 = vst [vmem:[#allocation5 + $0x40] sm:$0xff] %v1333
        %1366 = vst [vmem:[#allocation5 + $0x48] sm:$0xff] %v1334
        %1367 = vst [vmem:[#allocation5 + $0x50] sm:$0xff] %v1335
        %1368 = vst [vmem:[#allocation5 + $0x58] sm:$0xff] %v1336
        %1369 = vst [vmem:[#allocation5 + $0x60] sm:$0xff] %v1337
        %1370 = vst [vmem:[#allocation5 + $0x68] sm:$0xff] %v1338
        %1371 = vst [vmem:[#allocation5 + $0x70] sm:$0xff] %v1339
        %1372 = vst [vmem:[#allocation5 + $0x78] sm:$0xff] %v1340
        %1373 = vst [vmem:[#allocation5 + $0x80] sm:$0xff] %v1341
        %1374 = vst [vmem:[#allocation5 + $0x88] sm:$0xff] %v1342
        %1375 = vst [vmem:[#allocation5 + $0x90] sm:$0xff] %v1343
        %1376 = vst [vmem:[#allocation5 + $0x98] sm:$0xff] %v1344
        %1377 = vst [vmem:[#allocation5 + $0xa0] sm:$0xff] %v1345
        %1378 = vst [vmem:[#allocation5 + $0xa8] sm:$0xff] %v1346
        %1379 = vst [vmem:[#allocation5 + $0xb0] sm:$0xff] %v1347
        %1380 = vst [vmem:[#allocation5 + $0xb8] sm:$0xff] %v1348
        %1381 = vst [vmem:[#allocation5 + $0xc0] sm:$0xff] %v1349
        %1382 = vst [vmem:[#allocation5 + $0xc8] sm:$0xff] %v1350
        %1383 = vst [vmem:[#allocation5 + $0xd0] sm:$0xff] %v1351
        %1384 = vst [vmem:[#allocation5 + $0xd8] sm:$0xff] %v1352
        %1385 = vst [vmem:[#allocation5 + $0xe0] sm:$0xff] %v1353
        %1386 = vst [vmem:[#allocation5 + $0xe8] sm:$0xff] %v1354
        %1387 = vst [vmem:[#allocation5 + $0xf0] sm:$0xff] %v1355
        %1388 = vst [vmem:[#allocation5 + $0xf8] sm:$0xff] %v1356
        %v1389 = vld [vmem:[#allocation2] sm:$0xff]
        %v1390 = vld [vmem:[#allocation2 + $0x8] sm:$0xff]
        %v1391 = vld [vmem:[#allocation2 + $0x10] sm:$0xff]
        %v1392 = vld [vmem:[#allocation2 + $0x20] sm:$0xff]
        %v1393 = vld [vmem:[#allocation2 + $0x28] sm:$0xff]
        %v1394 = vld [vmem:[#allocation2 + $0x30] sm:$0xff]
        %v1395 = vld [vmem:[#allocation2 + $0x40] sm:$0xff]
        %v1396 = vld [vmem:[#allocation2 + $0x48] sm:$0xff]
        %v1397 = vld [vmem:[#allocation2 + $0x50] sm:$0xff]
        %v1398 = vld [vmem:[#allocation2 + $0x60] sm:$0xff]
        %v1399 = vld [vmem:[#allocation2 + $0x68] sm:$0xff]
        %v1400 = vld [vmem:[#allocation2 + $0x70] sm:$0xff]
        %v1401 = vld [vmem:[#allocation2 + $0x80] sm:$0xf]
        %v1402 = vld [vmem:[#allocation2 + $0x88] sm:$0xf]
        %v1403 = vld [vmem:[#allocation2 + $0x90] sm:$0xf]
        %vm1404 = vcmp.ge.s32.totalorder %v560, 15
        %vm1405 = vcmp.ge.s32.totalorder %v561, 15
        %1421 = vrot.lane.b32.xlu0 %v1389, 15
        %v1422 = vpop.permute.xlu0 %1421
        %1423 = vrot.lane.b32.xlu0 %v1390, 15
        %v1424 = vpop.permute.xlu0 %1423
        %1425 = vrot.lane.b32.xlu0 %v1391, 15
        %v1426 = vpop.permute.xlu0 %1425
        %1427 = vrot.lane.b32.xlu0 %v1392, 15
        %v1428 = vpop.permute.xlu0 %1427
        %1429 = vrot.lane.b32.xlu0 %v1393, 15
        %v1430 = vpop.permute.xlu0 %1429
        %1431 = vrot.lane.b32.xlu0 %v1394, 15
        %v1432 = vpop.permute.xlu0 %1431
        %1433 = vrot.lane.b32.xlu0 %v1395, 15
        %v1434 = vpop.permute.xlu0 %1433
        %1435 = vrot.lane.b32.xlu0 %v1396, 15
        %v1436 = vpop.permute.xlu0 %1435
        %1437 = vrot.lane.b32.xlu0 %v1397, 15
        %v1438 = vpop.permute.xlu0 %1437
        %1439 = vrot.lane.b32.xlu0 %v1398, 15
        %v1440 = vpop.permute.xlu0 %1439
        %1441 = vrot.lane.b32.xlu0 %v1399, 15
        %v1442 = vpop.permute.xlu0 %1441
        %1443 = vrot.lane.b32.xlu0 %v1400, 15
        %v1444 = vpop.permute.xlu0 %1443
        %1445 = vrot.lane.b32.xlu0 %v1401, 15
        %v1446 = vpop.permute.xlu0 %1445
        %1447 = vrot.lane.b32.xlu0 %v1402, 15
        %v1448 = vpop.permute.xlu0 %1447
        %1449 = vrot.lane.b32.xlu0 %v1403, 15
        %v1450 = vpop.permute.xlu0 %1449
        %vm1451 = vcmask 121856
        %v1452 = vsel %vm1451, %v1422, %v1424
        %v1453 = vsel %vm1451, %v1424, %v1426
        %v1454 = vsel %vm1451, %v1428, %v1430
        %v1455 = vsel %vm1451, %v1430, %v1432
        %v1456 = vsel %vm1451, %v1434, %v1436
        %v1457 = vsel %vm1451, %v1436, %v1438
        %v1458 = vsel %vm1451, %v1440, %v1442
        %v1459 = vsel %vm1451, %v1442, %v1444
        %v1460 = vsel %vm1451, %v1446, %v1448
        %v1461 = vsel %vm1451, %v1448, %v1450
        %v1472 = vsel %vm1404, 0.0, %v1452
        %v1473 = vsel %vm1405, 0.0, %v1453
        %v1474 = vsel %vm1404, 0.0, %v1454
        %v1475 = vsel %vm1405, 0.0, %v1455
        %v1476 = vsel %vm1404, 0.0, %v1456
        %v1477 = vsel %vm1405, 0.0, %v1457
        %v1478 = vsel %vm1404, 0.0, %v1458
        %v1479 = vsel %vm1405, 0.0, %v1459
        %v1480 = vsel %vm1404, 0.0, %v1460
        %v1481 = vsel %vm1405, 0.0, %v1461
        %v1482 = vld [vmem:[#allocation5] sm:$0xff]
        %v1483 = vld [vmem:[#allocation5 + $0x8] sm:$0xff]
        %v1484 = vld [vmem:[#allocation5 + $0x10] sm:$0xff]
        %v1485 = vld [vmem:[#allocation5 + $0x18] sm:$0xff]
        %v1486 = vld [vmem:[#allocation5 + $0x20] sm:$0xff]
        %v1487 = vld [vmem:[#allocation5 + $0x28] sm:$0xff]
        %v1488 = vld [vmem:[#allocation5 + $0x30] sm:$0xff]
        %v1489 = vld [vmem:[#allocation5 + $0x38] sm:$0xff]
        %v1490 = vld [vmem:[#allocation5 + $0x40] sm:$0xff]
        %v1491 = vld [vmem:[#allocation5 + $0x48] sm:$0xff]
        %v1492 = vld [vmem:[#allocation5 + $0x50] sm:$0xff]
        %v1493 = vld [vmem:[#allocation5 + $0x58] sm:$0xff]
        %v1494 = vld [vmem:[#allocation5 + $0x60] sm:$0xff]
        %v1495 = vld [vmem:[#allocation5 + $0x68] sm:$0xff]
        %v1496 = vld [vmem:[#allocation5 + $0x70] sm:$0xff]
        %v1497 = vld [vmem:[#allocation5 + $0x78] sm:$0xff]
        %v1498 = vld [vmem:[#allocation5 + $0x80] sm:$0xff]
        %v1499 = vld [vmem:[#allocation5 + $0x88] sm:$0xff]
        %v1500 = vld [vmem:[#allocation5 + $0x90] sm:$0xff]
        %v1501 = vld [vmem:[#allocation5 + $0x98] sm:$0xff]
        %v1502 = vld [vmem:[#allocation5 + $0xa0] sm:$0xff]
        %v1503 = vld [vmem:[#allocation5 + $0xa8] sm:$0xff]
        %v1504 = vld [vmem:[#allocation5 + $0xb0] sm:$0xff]
        %v1505 = vld [vmem:[#allocation5 + $0xb8] sm:$0xff]
        %v1506 = vld [vmem:[#allocation5 + $0xc0] sm:$0xff]
        %v1507 = vld [vmem:[#allocation5 + $0xc8] sm:$0xff]
        %v1508 = vld [vmem:[#allocation5 + $0xd0] sm:$0xff]
        %v1509 = vld [vmem:[#allocation5 + $0xd8] sm:$0xff]
        %v1510 = vld [vmem:[#allocation5 + $0xe0] sm:$0xff]
        %v1511 = vld [vmem:[#allocation5 + $0xe8] sm:$0xff]
        %v1512 = vld [vmem:[#allocation5 + $0xf0] sm:$0xff]
        %v1513 = vld [vmem:[#allocation5 + $0xf8] sm:$0xff]
        %s1514 = scalar_lea.vmem %s3, 256
        %v1515 = vld [vmem:[%s1514] sm:$0xff]
        %v1516 = vld [vmem:[%s1514 + $0x8] sm:$0xff]
        %v1517 = vld [vmem:[%s1514 + $0x10] sm:$0xff]
        %v1518 = vld [vmem:[%s1514 + $0x18] sm:$0xff]
        %v1519 = vld [vmem:[%s1514 + $0x20] sm:$0xff]
        %v1520 = vld [vmem:[%s1514 + $0x28] sm:$0xff]
        %v1521 = vld [vmem:[%s1514 + $0x30] sm:$0xff]
        %v1522 = vld [vmem:[%s1514 + $0x38] sm:$0xff]
        %v1523 = vld [vmem:[%s1514 + $0x40] sm:$0xff]
        %v1524 = vld [vmem:[%s1514 + $0x48] sm:$0xff]
        %v1525 = vld [vmem:[%s1514 + $0x50] sm:$0xff]
        %v1526 = vld [vmem:[%s1514 + $0x58] sm:$0xff]
        %v1527 = vld [vmem:[%s1514 + $0x60] sm:$0xff]
        %v1528 = vld [vmem:[%s1514 + $0x68] sm:$0xff]
        %v1529 = vld [vmem:[%s1514 + $0x70] sm:$0xff]
        %v1530 = vld [vmem:[%s1514 + $0x78] sm:$0xff]
        %v1532 = vsel %vm703, %v1515, 0
        %v1535 = vsel %vm703, %v1516, 0
        %v1538 = vsel %vm703, %v1517, 0
        %v1541 = vsel %vm703, %v1518, 0
        %v1544 = vsel %vm703, %v1519, 0
        %v1547 = vsel %vm703, %v1520, 0
        %v1550 = vsel %vm703, %v1521, 0
        %v1553 = vsel %vm703, %v1522, 0
        %v1556 = vsel %vm703, %v1523, 0
        %v1559 = vsel %vm703, %v1524, 0
        %v1562 = vsel %vm703, %v1525, 0
        %v1565 = vsel %vm703, %v1526, 0
        %v1568 = vsel %vm703, %v1527, 0
        %v1571 = vsel %vm703, %v1528, 0
        %v1574 = vsel %vm703, %v1529, 0
        %v1577 = vsel %vm703, %v1530, 0
        %v1580 = vsel %vm752, %v1480, 0
        %v1583 = vsel %vm752, %v1481, 0
        %1585 = vmatprep.subr.mxu0 %v1473
        %1586 = vmatpush1.msra.mxu0 %v1472
        %1587 = vmatprep.subr.mxu0 %v1475
        %1588 = vmatpush1.msra.mxu0 %v1474
        %1589 = vmatprep.subr.mxu0 %v1477
        %1590 = vmatpush1.msra.mxu0 %v1476
        %1591 = vmatprep.subr.mxu0 %v1479
        %1592 = vmatpush1.msra.mxu0 %v1478
        %1593 = vmatprep.subr.mxu0 %v1583
        %1594 = vmatpush1.msra.mxu0 %v1580
        %1595 = vmatprep.subr.mxu0 0.0
        %1596 = vmatpush1.msra.mxu0 0.0
        %1597 = vmatprep.subr.mxu0 0.0
        %1598 = vmatpush1.msra.mxu0 0.0
        %1599 = vmatprep.subr.mxu0 0.0
        %1600 = vmatpush1.msra.mxu0 0.0
        %1601 = vmatprep.subr.mxu0 0.0
        %1602 = vmatpush1.msra.mxu0 0.0
        %1603 = vmatprep.subr.mxu0 0.0
        %1604 = vmatpush1.msra.mxu0 0.0
        %1605 = vmatprep.subr.mxu0 0.0
        %1606 = vmatpush1.msra.mxu0 0.0
        %1607 = vmatprep.subr.mxu0 0.0
        %1608 = vmatpush1.msra.mxu0 0.0
        %1609 = vmatprep.subr.mxu0 0.0
        %1610 = vmatpush1.msra.mxu0 0.0
        %1611 = vmatprep.subr.mxu0 0.0
        %1612 = vmatpush1.msra.mxu0 0.0
        %1613 = vmatprep.subr.mxu0 0.0
        %1614 = vmatpush1.msra.mxu0 0.0
        %1615 = vmatprep.subr.mxu0 0.0
        %1616 = vmatpush1.msra.mxu0 0.0
        %1617 = vmatprep.subr.mxu0 0.0
        %1618 = vmatpush1.msra.mxu0 0.0
        %1619 = vmatprep.subr.mxu0 0.0
        %1620 = vmatpush1.msra.mxu0 0.0
        %1621 = vmatprep.subr.mxu0 0.0
        %1622 = vmatpush1.msra.mxu0 0.0
        %1623 = vmatprep.subr.mxu0 0.0
        %1624 = vmatpush1.msra.mxu0 0.0
        %1625 = vmatprep.subr.mxu0 0.0
        %1626 = vmatpush1.msra.mxu0 0.0
        %1627 = vmatprep.subr.mxu0 0.0
        %1628 = vmatpush1.msra.mxu0 0.0
        %1629 = vmatprep.subr.mxu0 0.0
        %1630 = vmatpush1.msra.mxu0 0.0
        %1631 = vmatprep.subr.mxu0 0.0
        %1632 = vmatpush1.msra.mxu0 0.0
        %1633 = vmatprep.subr.mxu0 0.0
        %1634 = vmatpush1.msra.mxu0 0.0
        %1635 = vmatprep.subr.mxu0 0.0
        %1636 = vmatpush1.msra.mxu0 0.0
        %1637 = vmatprep.subr.mxu0 0.0
        %1638 = vmatpush1.msra.mxu0 0.0
        %1639 = vmatprep.subr.mxu0 0.0
        %1640 = vmatpush1.msra.mxu0 0.0
        %1641 = vmatprep.subr.mxu0 0.0
        %1642 = vmatpush1.msra.mxu0 0.0
        %1643 = vmatprep.subr.mxu0 0.0
        %1644 = vmatpush1.msra.mxu0 0.0
        %1645 = vmatprep.subr.mxu0 0.0
        %1646 = vmatpush1.msra.mxu0 0.0
        %1647 = vmatprep.subr.mxu0 0.0
        %1648 = vmatpush1.msra.mxu0 0.0
        %1649 = vmatprep.mubr.f32.mxu0 0.0
        %1650 = vmatmul.mubr.f32.gmra.mrb[0].mxu0 %v1532
        %v1651 = vpop.f32.mrb[0].mxu0
        %v1652 = vadd.f32 0.0, %v1651
        %v1653 = vpop.f32.mrb[0].mxu0
        %v1654 = vadd.f32 0.0, %v1653
        %1655 = vmatprep.mubr.f32.mxu0 0.0
        %1656 = vmatmul.mubr.f32.gmra.mrb[0].mxu0 %v1535
        %v1657 = vpop.f32.mrb[0].mxu0
        %v1658 = vadd.f32 0.0, %v1657
        %v1659 = vpop.f32.mrb[0].mxu0
        %v1660 = vadd.f32 0.0, %v1659
        %1661 = vmatprep.mubr.f32.mxu0 0.0
        %1662 = vmatmul.mubr.f32.gmra.mrb[0].mxu0 %v1538
        %v1663 = vpop.f32.mrb[0].mxu0
        %v1664 = vadd.f32 0.0, %v1663
        %v1665 = vpop.f32.mrb[0].mxu0
        %v1666 = vadd.f32 0.0, %v1665
        %1667 = vmatprep.mubr.f32.mxu0 0.0
        %1668 = vmatmul.mubr.f32.gmra.mrb[0].mxu0 %v1541
        %v1669 = vpop.f32.mrb[0].mxu0
        %v1670 = vadd.f32 0.0, %v1669
        %v1671 = vpop.f32.mrb[0].mxu0
        %v1672 = vadd.f32 0.0, %v1671
        %1673 = vmatprep.mubr.f32.mxu0 0.0
        %1674 = vmatmul.mubr.f32.gmra.mrb[0].mxu0 %v1544
        %v1675 = vpop.f32.mrb[0].mxu0
        %v1676 = vadd.f32 0.0, %v1675
        %v1677 = vpop.f32.mrb[0].mxu0
        %v1678 = vadd.f32 0.0, %v1677
        %1679 = vmatprep.mubr.f32.mxu0 0.0
        %1680 = vmatmul.mubr.f32.gmra.mrb[0].mxu0 %v1547
        %v1681 = vpop.f32.mrb[0].mxu0
        %v1682 = vadd.f32 0.0, %v1681
        %v1683 = vpop.f32.mrb[0].mxu0
        %v1684 = vadd.f32 0.0, %v1683
        %1685 = vmatprep.mubr.f32.mxu0 0.0
        %1686 = vmatmul.mubr.f32.gmra.mrb[0].mxu0 %v1550
        %v1687 = vpop.f32.mrb[0].mxu0
        %v1688 = vadd.f32 0.0, %v1687
        %v1689 = vpop.f32.mrb[0].mxu0
        %v1690 = vadd.f32 0.0, %v1689
        %1691 = vmatprep.mubr.f32.mxu0 0.0
        %1692 = vmatmul.mubr.f32.gmra.mrb[0].mxu0 %v1553
        %v1693 = vpop.f32.mrb[0].mxu0
        %v1694 = vadd.f32 0.0, %v1693
        %v1695 = vpop.f32.mrb[0].mxu0
        %v1696 = vadd.f32 0.0, %v1695
        %1697 = vmatprep.mubr.f32.mxu0 0.0
        %1698 = vmatmul.mubr.f32.gmra.mrb[0].mxu0 %v1556
        %v1699 = vpop.f32.mrb[0].mxu0
        %v1700 = vadd.f32 0.0, %v1699
        %v1701 = vpop.f32.mrb[0].mxu0
        %v1702 = vadd.f32 0.0, %v1701
        %1703 = vmatprep.mubr.f32.mxu0 0.0
        %1704 = vmatmul.mubr.f32.gmra.mrb[0].mxu0 %v1559
        %v1705 = vpop.f32.mrb[0].mxu0
        %v1706 = vadd.f32 0.0, %v1705
        %v1707 = vpop.f32.mrb[0].mxu0
        %v1708 = vadd.f32 0.0, %v1707
        %1709 = vmatprep.mubr.f32.mxu0 0.0
        %1710 = vmatmul.mubr.f32.gmra.mrb[0].mxu0 %v1562
        %v1711 = vpop.f32.mrb[0].mxu0
        %v1712 = vadd.f32 0.0, %v1711
        %v1713 = vpop.f32.mrb[0].mxu0
        %v1714 = vadd.f32 0.0, %v1713
        %1715 = vmatprep.mubr.f32.mxu0 0.0
        %1716 = vmatmul.mubr.f32.gmra.mrb[0].mxu0 %v1565
        %v1717 = vpop.f32.mrb[0].mxu0
        %v1718 = vadd.f32 0.0, %v1717
        %v1719 = vpop.f32.mrb[0].mxu0
        %v1720 = vadd.f32 0.0, %v1719
        %1721 = vmatprep.mubr.f32.mxu0 0.0
        %1722 = vmatmul.mubr.f32.gmra.mrb[0].mxu0 %v1568
        %v1723 = vpop.f32.mrb[0].mxu0
        %v1724 = vadd.f32 0.0, %v1723
        %v1725 = vpop.f32.mrb[0].mxu0
        %v1726 = vadd.f32 0.0, %v1725
        %1727 = vmatprep.mubr.f32.mxu0 0.0
        %1728 = vmatmul.mubr.f32.gmra.mrb[0].mxu0 %v1571
        %v1729 = vpop.f32.mrb[0].mxu0
        %v1730 = vadd.f32 0.0, %v1729
        %v1731 = vpop.f32.mrb[0].mxu0
        %v1732 = vadd.f32 0.0, %v1731
        %1733 = vmatprep.mubr.f32.mxu0 0.0
        %1734 = vmatmul.mubr.f32.gmra.mrb[0].mxu0 %v1574
        %v1735 = vpop.f32.mrb[0].mxu0
        %v1736 = vadd.f32 0.0, %v1735
        %v1737 = vpop.f32.mrb[0].mxu0
        %v1738 = vadd.f32 0.0, %v1737
        %1739 = vmatprep.mubr.f32.mxu0 0.0
        %1740 = vmatmul.mubr.f32.gmra.mrb[0].mxu0 %v1577
        %v1741 = vpop.f32.mrb[0].mxu0
        %v1742 = vadd.f32 0.0, %v1741
        %v1743 = vpop.f32.mrb[0].mxu0
        %v1744 = vadd.f32 0.0, %v1743
        %1745 = vdwg.mxu0
        %v1746 = vadd.f32 %v1482, %v1652
        %v1747 = vadd.f32 %v1483, %v1654
        %v1748 = vadd.f32 %v1484, %v1658
        %v1749 = vadd.f32 %v1485, %v1660
        %v1750 = vadd.f32 %v1486, %v1664
        %v1751 = vadd.f32 %v1487, %v1666
        %v1752 = vadd.f32 %v1488, %v1670
        %v1753 = vadd.f32 %v1489, %v1672
        %v1754 = vadd.f32 %v1490, %v1676
        %v1755 = vadd.f32 %v1491, %v1678
        %v1756 = vadd.f32 %v1492, %v1682
        %v1757 = vadd.f32 %v1493, %v1684
        %v1758 = vadd.f32 %v1494, %v1688
        %v1759 = vadd.f32 %v1495, %v1690
        %v1760 = vadd.f32 %v1496, %v1694
        %v1761 = vadd.f32 %v1497, %v1696
        %v1762 = vadd.f32 %v1498, %v1700
        %v1763 = vadd.f32 %v1499, %v1702
        %v1764 = vadd.f32 %v1500, %v1706
        %v1765 = vadd.f32 %v1501, %v1708
        %v1766 = vadd.f32 %v1502, %v1712
        %v1767 = vadd.f32 %v1503, %v1714
        %v1768 = vadd.f32 %v1504, %v1718
        %v1769 = vadd.f32 %v1505, %v1720
        %v1770 = vadd.f32 %v1506, %v1724
        %v1771 = vadd.f32 %v1507, %v1726
        %v1772 = vadd.f32 %v1508, %v1730
        %v1773 = vadd.f32 %v1509, %v1732
        %v1774 = vadd.f32 %v1510, %v1736
        %v1775 = vadd.f32 %v1511, %v1738
        %v1776 = vadd.f32 %v1512, %v1742
        %v1777 = vadd.f32 %v1513, %v1744
        %1778 = vst [vmem:[#allocation5] sm:$0xff] %v1746
        %1779 = vst [vmem:[#allocation5 + $0x8] sm:$0xff] %v1747
        %1780 = vst [vmem:[#allocation5 + $0x10] sm:$0xff] %v1748
        %1781 = vst [vmem:[#allocation5 + $0x18] sm:$0xff] %v1749
        %1782 = vst [vmem:[#allocation5 + $0x20] sm:$0xff] %v1750
        %1783 = vst [vmem:[#allocation5 + $0x28] sm:$0xff] %v1751
        %1784 = vst [vmem:[#allocation5 + $0x30] sm:$0xff] %v1752
        %1785 = vst [vmem:[#allocation5 + $0x38] sm:$0xff] %v1753
        %1786 = vst [vmem:[#allocation5 + $0x40] sm:$0xff] %v1754
        %1787 = vst [vmem:[#allocation5 + $0x48] sm:$0xff] %v1755
        %1788 = vst [vmem:[#allocation5 + $0x50] sm:$0xff] %v1756
        %1789 = vst [vmem:[#allocation5 + $0x58] sm:$0xff] %v1757
        %1790 = vst [vmem:[#allocation5 + $0x60] sm:$0xff] %v1758
        %1791 = vst [vmem:[#allocation5 + $0x68] sm:$0xff] %v1759
        %1792 = vst [vmem:[#allocation5 + $0x70] sm:$0xff] %v1760
        %1793 = vst [vmem:[#allocation5 + $0x78] sm:$0xff] %v1761
        %1794 = vst [vmem:[#allocation5 + $0x80] sm:$0xff] %v1762
        %1795 = vst [vmem:[#allocation5 + $0x88] sm:$0xff] %v1763
        %1796 = vst [vmem:[#allocation5 + $0x90] sm:$0xff] %v1764
        %1797 = vst [vmem:[#allocation5 + $0x98] sm:$0xff] %v1765
        %1798 = vst [vmem:[#allocation5 + $0xa0] sm:$0xff] %v1766
        %1799 = vst [vmem:[#allocation5 + $0xa8] sm:$0xff] %v1767
        %1800 = vst [vmem:[#allocation5 + $0xb0] sm:$0xff] %v1768
        %1801 = vst [vmem:[#allocation5 + $0xb8] sm:$0xff] %v1769
        %1802 = vst [vmem:[#allocation5 + $0xc0] sm:$0xff] %v1770
        %1803 = vst [vmem:[#allocation5 + $0xc8] sm:$0xff] %v1771
        %1804 = vst [vmem:[#allocation5 + $0xd0] sm:$0xff] %v1772
        %1805 = vst [vmem:[#allocation5 + $0xd8] sm:$0xff] %v1773
        %1806 = vst [vmem:[#allocation5 + $0xe0] sm:$0xff] %v1774
        %1807 = vst [vmem:[#allocation5 + $0xe8] sm:$0xff] %v1775
        %1808 = vst [vmem:[#allocation5 + $0xf0] sm:$0xff] %v1776
        %1809 = vst [vmem:[#allocation5 + $0xf8] sm:$0xff] %v1777
        %v1810 = vld [vmem:[#allocation2] sm:$0xff]
        %v1811 = vld [vmem:[#allocation2 + $0x8] sm:$0xff]
        %v1812 = vld [vmem:[#allocation2 + $0x10] sm:$0xff]
        %v1813 = vld [vmem:[#allocation2 + $0x20] sm:$0xff]
        %v1814 = vld [vmem:[#allocation2 + $0x28] sm:$0xff]
        %v1815 = vld [vmem:[#allocation2 + $0x30] sm:$0xff]
        %v1816 = vld [vmem:[#allocation2 + $0x40] sm:$0xff]
        %v1817 = vld [vmem:[#allocation2 + $0x48] sm:$0xff]
        %v1818 = vld [vmem:[#allocation2 + $0x50] sm:$0xff]
        %v1819 = vld [vmem:[#allocation2 + $0x60] sm:$0xff]
        %v1820 = vld [vmem:[#allocation2 + $0x68] sm:$0xff]
        %v1821 = vld [vmem:[#allocation2 + $0x70] sm:$0xff]
        %v1822 = vld [vmem:[#allocation2 + $0x80] sm:$0xf]
        %v1823 = vld [vmem:[#allocation2 + $0x88] sm:$0xf]
        %v1824 = vld [vmem:[#allocation2 + $0x90] sm:$0xf]
        %1840 = vrot.lane.b32.xlu0 %v1810, 1
        %v1841 = vpop.permute.xlu0 %1840
        %1842 = vrot.lane.b32.xlu0 %v1811, 1
        %v1843 = vpop.permute.xlu0 %1842
        %1844 = vrot.lane.b32.xlu0 %v1812, 1
        %v1845 = vpop.permute.xlu0 %1844
        %1846 = vrot.lane.b32.xlu0 %v1813, 1
        %v1847 = vpop.permute.xlu0 %1846
        %1848 = vrot.lane.b32.xlu0 %v1814, 1
        %v1849 = vpop.permute.xlu0 %1848
        %1850 = vrot.lane.b32.xlu0 %v1815, 1
        %v1851 = vpop.permute.xlu0 %1850
        %1852 = vrot.lane.b32.xlu0 %v1816, 1
        %v1853 = vpop.permute.xlu0 %1852
        %1854 = vrot.lane.b32.xlu0 %v1817, 1
        %v1855 = vpop.permute.xlu0 %1854
        %1856 = vrot.lane.b32.xlu0 %v1818, 1
        %v1857 = vpop.permute.xlu0 %1856
        %1858 = vrot.lane.b32.xlu0 %v1819, 1
        %v1859 = vpop.permute.xlu0 %1858
        %1860 = vrot.lane.b32.xlu0 %v1820, 1
        %v1861 = vpop.permute.xlu0 %1860
        %1862 = vrot.lane.b32.xlu0 %v1821, 1
        %v1863 = vpop.permute.xlu0 %1862
        %1864 = vrot.lane.b32.xlu0 %v1822, 1
        %v1865 = vpop.permute.xlu0 %1864
        %1866 = vrot.lane.b32.xlu0 %v1823, 1
        %v1867 = vpop.permute.xlu0 %1866
        %1868 = vrot.lane.b32.xlu0 %v1824, 1
        %v1869 = vpop.permute.xlu0 %1868
        %vm1870 = vcmask 7168
        %v1871 = vsel %vm1870, %v1841, %v1843
        %v1872 = vsel %vm1870, %v1843, %v1845
        %v1873 = vsel %vm1870, %v1847, %v1849
        %v1874 = vsel %vm1870, %v1849, %v1851
        %v1875 = vsel %vm1870, %v1853, %v1855
        %v1876 = vsel %vm1870, %v1855, %v1857
        %v1877 = vsel %vm1870, %v1859, %v1861
        %v1878 = vsel %vm1870, %v1861, %v1863
        %v1879 = vsel %vm1870, %v1865, %v1867
        %v1880 = vsel %vm1870, %v1867, %v1869
        %v1891 = vsel %vm577, 0.0, %v1871
        %v1892 = vsel %vm578, 0.0, %v1872
        %v1893 = vsel %vm577, 0.0, %v1873
        %v1894 = vsel %vm578, 0.0, %v1874
        %v1895 = vsel %vm577, 0.0, %v1875
        %v1896 = vsel %vm578, 0.0, %v1876
        %v1897 = vsel %vm577, 0.0, %v1877
        %v1898 = vsel %vm578, 0.0, %v1878
        %v1899 = vsel %vm577, 0.0, %v1879
        %v1900 = vsel %vm578, 0.0, %v1880
        %v1901 = vld [vmem:[#allocation5] sm:$0xff]
        %v1902 = vld [vmem:[#allocation5 + $0x8] sm:$0xff]
        %v1903 = vld [vmem:[#allocation5 + $0x10] sm:$0xff]
        %v1904 = vld [vmem:[#allocation5 + $0x18] sm:$0xff]
        %v1905 = vld [vmem:[#allocation5 + $0x20] sm:$0xff]
        %v1906 = vld [vmem:[#allocation5 + $0x28] sm:$0xff]
        %v1907 = vld [vmem:[#allocation5 + $0x30] sm:$0xff]
        %v1908 = vld [vmem:[#allocation5 + $0x38] sm:$0xff]
        %v1909 = vld [vmem:[#allocation5 + $0x40] sm:$0xff]
        %v1910 = vld [vmem:[#allocation5 + $0x48] sm:$0xff]
        %v1911 = vld [vmem:[#allocation5 + $0x50] sm:$0xff]
        %v1912 = vld [vmem:[#allocation5 + $0x58] sm:$0xff]
        %v1913 = vld [vmem:[#allocation5 + $0x60] sm:$0xff]
        %v1914 = vld [vmem:[#allocation5 + $0x68] sm:$0xff]
        %v1915 = vld [vmem:[#allocation5 + $0x70] sm:$0xff]
        %v1916 = vld [vmem:[#allocation5 + $0x78] sm:$0xff]
        %v1917 = vld [vmem:[#allocation5 + $0x80] sm:$0xff]
        %v1918 = vld [vmem:[#allocation5 + $0x88] sm:$0xff]
        %v1919 = vld [vmem:[#allocation5 + $0x90] sm:$0xff]
        %v1920 = vld [vmem:[#allocation5 + $0x98] sm:$0xff]
        %v1921 = vld [vmem:[#allocation5 + $0xa0] sm:$0xff]
        %v1922 = vld [vmem:[#allocation5 + $0xa8] sm:$0xff]
        %v1923 = vld [vmem:[#allocation5 + $0xb0] sm:$0xff]
        %v1924 = vld [vmem:[#allocation5 + $0xb8] sm:$0xff]
        %v1925 = vld [vmem:[#allocation5 + $0xc0] sm:$0xff]
        %v1926 = vld [vmem:[#allocation5 + $0xc8] sm:$0xff]
        %v1927 = vld [vmem:[#allocation5 + $0xd0] sm:$0xff]
        %v1928 = vld [vmem:[#allocation5 + $0xd8] sm:$0xff]
        %v1929 = vld [vmem:[#allocation5 + $0xe0] sm:$0xff]
        %v1930 = vld [vmem:[#allocation5 + $0xe8] sm:$0xff]
        %v1931 = vld [vmem:[#allocation5 + $0xf0] sm:$0xff]
        %v1932 = vld [vmem:[#allocation5 + $0xf8] sm:$0xff]
        %s1933 = scalar_lea.vmem %s3, 384
        %v1934 = vld [vmem:[%s1933] sm:$0xff]
        %v1935 = vld [vmem:[%s1933 + $0x8] sm:$0xff]
        %v1936 = vld [vmem:[%s1933 + $0x10] sm:$0xff]
        %v1937 = vld [vmem:[%s1933 + $0x18] sm:$0xff]
        %v1938 = vld [vmem:[%s1933 + $0x20] sm:$0xff]
        %v1939 = vld [vmem:[%s1933 + $0x28] sm:$0xff]
        %v1940 = vld [vmem:[%s1933 + $0x30] sm:$0xff]
        %v1941 = vld [vmem:[%s1933 + $0x38] sm:$0xff]
        %v1942 = vld [vmem:[%s1933 + $0x40] sm:$0xff]
        %v1943 = vld [vmem:[%s1933 + $0x48] sm:$0xff]
        %v1944 = vld [vmem:[%s1933 + $0x50] sm:$0xff]
        %v1945 = vld [vmem:[%s1933 + $0x58] sm:$0xff]
        %v1946 = vld [vmem:[%s1933 + $0x60] sm:$0xff]
        %v1947 = vld [vmem:[%s1933 + $0x68] sm:$0xff]
        %v1948 = vld [vmem:[%s1933 + $0x70] sm:$0xff]
        %v1949 = vld [vmem:[%s1933 + $0x78] sm:$0xff]
        %v1951 = vsel %vm703, %v1934, 0
        %v1954 = vsel %vm703, %v1935, 0
        %v1957 = vsel %vm703, %v1936, 0
        %v1960 = vsel %vm703, %v1937, 0
        %v1963 = vsel %vm703, %v1938, 0
        %v1966 = vsel %vm703, %v1939, 0
        %v1969 = vsel %vm703, %v1940, 0
        %v1972 = vsel %vm703, %v1941, 0
        %v1975 = vsel %vm703, %v1942, 0
        %v1978 = vsel %vm703, %v1943, 0
        %v1981 = vsel %vm703, %v1944, 0
        %v1984 = vsel %vm703, %v1945, 0
        %v1987 = vsel %vm703, %v1946, 0
        %v1990 = vsel %vm703, %v1947, 0
        %v1993 = vsel %vm703, %v1948, 0
        %v1996 = vsel %vm703, %v1949, 0
        %v1999 = vsel %vm752, %v1899, 0
        %v2002 = vsel %vm752, %v1900, 0
        %2004 = vmatprep.subr.mxu0 %v1892
        %2005 = vmatpush1.msra.mxu0 %v1891
        %2006 = vmatprep.subr.mxu0 %v1894
        %2007 = vmatpush1.msra.mxu0 %v1893
        %2008 = vmatprep.subr.mxu0 %v1896
        %2009 = vmatpush1.msra.mxu0 %v1895
        %2010 = vmatprep.subr.mxu0 %v1898
        %2011 = vmatpush1.msra.mxu0 %v1897
        %2012 = vmatprep.subr.mxu0 %v2002
        %2013 = vmatpush1.msra.mxu0 %v1999
        %2014 = vmatprep.subr.mxu0 0.0
        %2015 = vmatpush1.msra.mxu0 0.0
        %2016 = vmatprep.subr.mxu0 0.0
        %2017 = vmatpush1.msra.mxu0 0.0
        %2018 = vmatprep.subr.mxu0 0.0
        %2019 = vmatpush1.msra.mxu0 0.0
        %2020 = vmatprep.subr.mxu0 0.0
        %2021 = vmatpush1.msra.mxu0 0.0
        %2022 = vmatprep.subr.mxu0 0.0
        %2023 = vmatpush1.msra.mxu0 0.0
        %2024 = vmatprep.subr.mxu0 0.0
        %2025 = vmatpush1.msra.mxu0 0.0
        %2026 = vmatprep.subr.mxu0 0.0
        %2027 = vmatpush1.msra.mxu0 0.0
        %2028 = vmatprep.subr.mxu0 0.0
        %2029 = vmatpush1.msra.mxu0 0.0
        %2030 = vmatprep.subr.mxu0 0.0
        %2031 = vmatpush1.msra.mxu0 0.0
        %2032 = vmatprep.subr.mxu0 0.0
        %2033 = vmatpush1.msra.mxu0 0.0
        %2034 = vmatprep.subr.mxu0 0.0
        %2035 = vmatpush1.msra.mxu0 0.0
        %2036 = vmatprep.subr.mxu0 0.0
        %2037 = vmatpush1.msra.mxu0 0.0
        %2038 = vmatprep.subr.mxu0 0.0
        %2039 = vmatpush1.msra.mxu0 0.0
        %2040 = vmatprep.subr.mxu0 0.0
        %2041 = vmatpush1.msra.mxu0 0.0
        %2042 = vmatprep.subr.mxu0 0.0
        %2043 = vmatpush1.msra.mxu0 0.0
        %2044 = vmatprep.subr.mxu0 0.0
        %2045 = vmatpush1.msra.mxu0 0.0
        %2046 = vmatprep.subr.mxu0 0.0
        %2047 = vmatpush1.msra.mxu0 0.0
        %2048 = vmatprep.subr.mxu0 0.0
        %2049 = vmatpush1.msra.mxu0 0.0
        %2050 = vmatprep.subr.mxu0 0.0
        %2051 = vmatpush1.msra.mxu0 0.0
        %2052 = vmatprep.subr.mxu0 0.0
        %2053 = vmatpush1.msra.mxu0 0.0
        %2054 = vmatprep.subr.mxu0 0.0
        %2055 = vmatpush1.msra.mxu0 0.0
        %2056 = vmatprep.subr.mxu0 0.0
        %2057 = vmatpush1.msra.mxu0 0.0
        %2058 = vmatprep.subr.mxu0 0.0
        %2059 = vmatpush1.msra.mxu0 0.0
        %2060 = vmatprep.subr.mxu0 0.0
        %2061 = vmatpush1.msra.mxu0 0.0
        %2062 = vmatprep.subr.mxu0 0.0
        %2063 = vmatpush1.msra.mxu0 0.0
        %2064 = vmatprep.subr.mxu0 0.0
        %2065 = vmatpush1.msra.mxu0 0.0
        %2066 = vmatprep.subr.mxu0 0.0
        %2067 = vmatpush1.msra.mxu0 0.0
        %2068 = vmatprep.mubr.f32.mxu0 0.0
        %2069 = vmatmul.mubr.f32.gmra.mrb[0].mxu0 %v1951
        %v2070 = vpop.f32.mrb[0].mxu0
        %v2071 = vadd.f32 0.0, %v2070
        %v2072 = vpop.f32.mrb[0].mxu0
        %v2073 = vadd.f32 0.0, %v2072
        %2074 = vmatprep.mubr.f32.mxu0 0.0
        %2075 = vmatmul.mubr.f32.gmra.mrb[0].mxu0 %v1954
        %v2076 = vpop.f32.mrb[0].mxu0
        %v2077 = vadd.f32 0.0, %v2076
        %v2078 = vpop.f32.mrb[0].mxu0
        %v2079 = vadd.f32 0.0, %v2078
        %2080 = vmatprep.mubr.f32.mxu0 0.0
        %2081 = vmatmul.mubr.f32.gmra.mrb[0].mxu0 %v1957
        %v2082 = vpop.f32.mrb[0].mxu0
        %v2083 = vadd.f32 0.0, %v2082
        %v2084 = vpop.f32.mrb[0].mxu0
        %v2085 = vadd.f32 0.0, %v2084
        %2086 = vmatprep.mubr.f32.mxu0 0.0
        %2087 = vmatmul.mubr.f32.gmra.mrb[0].mxu0 %v1960
        %v2088 = vpop.f32.mrb[0].mxu0
        %v2089 = vadd.f32 0.0, %v2088
        %v2090 = vpop.f32.mrb[0].mxu0
        %v2091 = vadd.f32 0.0, %v2090
        %2092 = vmatprep.mubr.f32.mxu0 0.0
        %2093 = vmatmul.mubr.f32.gmra.mrb[0].mxu0 %v1963
        %v2094 = vpop.f32.mrb[0].mxu0
        %v2095 = vadd.f32 0.0, %v2094
        %v2096 = vpop.f32.mrb[0].mxu0
        %v2097 = vadd.f32 0.0, %v2096
        %2098 = vmatprep.mubr.f32.mxu0 0.0
        %2099 = vmatmul.mubr.f32.gmra.mrb[0].mxu0 %v1966
        %v2100 = vpop.f32.mrb[0].mxu0
        %v2101 = vadd.f32 0.0, %v2100
        %v2102 = vpop.f32.mrb[0].mxu0
        %v2103 = vadd.f32 0.0, %v2102
        %2104 = vmatprep.mubr.f32.mxu0 0.0
        %2105 = vmatmul.mubr.f32.gmra.mrb[0].mxu0 %v1969
        %v2106 = vpop.f32.mrb[0].mxu0
        %v2107 = vadd.f32 0.0, %v2106
        %v2108 = vpop.f32.mrb[0].mxu0
        %v2109 = vadd.f32 0.0, %v2108
        %2110 = vmatprep.mubr.f32.mxu0 0.0
        %2111 = vmatmul.mubr.f32.gmra.mrb[0].mxu0 %v1972
        %v2112 = vpop.f32.mrb[0].mxu0
        %v2113 = vadd.f32 0.0, %v2112
        %v2114 = vpop.f32.mrb[0].mxu0
        %v2115 = vadd.f32 0.0, %v2114
        %2116 = vmatprep.mubr.f32.mxu0 0.0
        %2117 = vmatmul.mubr.f32.gmra.mrb[0].mxu0 %v1975
        %v2118 = vpop.f32.mrb[0].mxu0
        %v2119 = vadd.f32 0.0, %v2118
        %v2120 = vpop.f32.mrb[0].mxu0
        %v2121 = vadd.f32 0.0, %v2120
        %2122 = vmatprep.mubr.f32.mxu0 0.0
        %2123 = vmatmul.mubr.f32.gmra.mrb[0].mxu0 %v1978
        %v2124 = vpop.f32.mrb[0].mxu0
        %v2125 = vadd.f32 0.0, %v2124
        %v2126 = vpop.f32.mrb[0].mxu0
        %v2127 = vadd.f32 0.0, %v2126
        %2128 = vmatprep.mubr.f32.mxu0 0.0
        %2129 = vmatmul.mubr.f32.gmra.mrb[0].mxu0 %v1981
        %v2130 = vpop.f32.mrb[0].mxu0
        %v2131 = vadd.f32 0.0, %v2130
        %v2132 = vpop.f32.mrb[0].mxu0
        %v2133 = vadd.f32 0.0, %v2132
        %2134 = vmatprep.mubr.f32.mxu0 0.0
        %2135 = vmatmul.mubr.f32.gmra.mrb[0].mxu0 %v1984
        %v2136 = vpop.f32.mrb[0].mxu0
        %v2137 = vadd.f32 0.0, %v2136
        %v2138 = vpop.f32.mrb[0].mxu0
        %v2139 = vadd.f32 0.0, %v2138
        %2140 = vmatprep.mubr.f32.mxu0 0.0
        %2141 = vmatmul.mubr.f32.gmra.mrb[0].mxu0 %v1987
        %v2142 = vpop.f32.mrb[0].mxu0
        %v2143 = vadd.f32 0.0, %v2142
        %v2144 = vpop.f32.mrb[0].mxu0
        %v2145 = vadd.f32 0.0, %v2144
        %2146 = vmatprep.mubr.f32.mxu0 0.0
        %2147 = vmatmul.mubr.f32.gmra.mrb[0].mxu0 %v1990
        %v2148 = vpop.f32.mrb[0].mxu0
        %v2149 = vadd.f32 0.0, %v2148
        %v2150 = vpop.f32.mrb[0].mxu0
        %v2151 = vadd.f32 0.0, %v2150
        %2152 = vmatprep.mubr.f32.mxu0 0.0
        %2153 = vmatmul.mubr.f32.gmra.mrb[0].mxu0 %v1993
        %v2154 = vpop.f32.mrb[0].mxu0
        %v2155 = vadd.f32 0.0, %v2154
        %v2156 = vpop.f32.mrb[0].mxu0
        %v2157 = vadd.f32 0.0, %v2156
        %2158 = vmatprep.mubr.f32.mxu0 0.0
        %2159 = vmatmul.mubr.f32.gmra.mrb[0].mxu0 %v1996
        %v2160 = vpop.f32.mrb[0].mxu0
        %v2161 = vadd.f32 0.0, %v2160
        %v2162 = vpop.f32.mrb[0].mxu0
        %v2163 = vadd.f32 0.0, %v2162
        %2164 = vdwg.mxu0
        %v2165 = vadd.f32 %v1901, %v2071
        %v2166 = vadd.f32 %v1902, %v2073
        %v2167 = vadd.f32 %v1903, %v2077
        %v2168 = vadd.f32 %v1904, %v2079
        %v2169 = vadd.f32 %v1905, %v2083
        %v2170 = vadd.f32 %v1906, %v2085
        %v2171 = vadd.f32 %v1907, %v2089
        %v2172 = vadd.f32 %v1908, %v2091
        %v2173 = vadd.f32 %v1909, %v2095
        %v2174 = vadd.f32 %v1910, %v2097
        %v2175 = vadd.f32 %v1911, %v2101
        %v2176 = vadd.f32 %v1912, %v2103
        %v2177 = vadd.f32 %v1913, %v2107
        %v2178 = vadd.f32 %v1914, %v2109
        %v2179 = vadd.f32 %v1915, %v2113
        %v2180 = vadd.f32 %v1916, %v2115
        %v2181 = vadd.f32 %v1917, %v2119
        %v2182 = vadd.f32 %v1918, %v2121
        %v2183 = vadd.f32 %v1919, %v2125
        %v2184 = vadd.f32 %v1920, %v2127
        %v2185 = vadd.f32 %v1921, %v2131
        %v2186 = vadd.f32 %v1922, %v2133
        %v2187 = vadd.f32 %v1923, %v2137
        %v2188 = vadd.f32 %v1924, %v2139
        %v2189 = vadd.f32 %v1925, %v2143
        %v2190 = vadd.f32 %v1926, %v2145
        %v2191 = vadd.f32 %v1927, %v2149
        %v2192 = vadd.f32 %v1928, %v2151
        %v2193 = vadd.f32 %v1929, %v2155
        %v2194 = vadd.f32 %v1930, %v2157
        %v2195 = vadd.f32 %v1931, %v2161
        %v2196 = vadd.f32 %v1932, %v2163
        %2197 = vst [vmem:[#allocation5] sm:$0xff] %v2165
        %2198 = vst [vmem:[#allocation5 + $0x8] sm:$0xff] %v2166
        %2199 = vst [vmem:[#allocation5 + $0x10] sm:$0xff] %v2167
        %2200 = vst [vmem:[#allocation5 + $0x18] sm:$0xff] %v2168
        %2201 = vst [vmem:[#allocation5 + $0x20] sm:$0xff] %v2169
        %2202 = vst [vmem:[#allocation5 + $0x28] sm:$0xff] %v2170
        %2203 = vst [vmem:[#allocation5 + $0x30] sm:$0xff] %v2171
        %2204 = vst [vmem:[#allocation5 + $0x38] sm:$0xff] %v2172
        %2205 = vst [vmem:[#allocation5 + $0x40] sm:$0xff] %v2173
        %2206 = vst [vmem:[#allocation5 + $0x48] sm:$0xff] %v2174
        %2207 = vst [vmem:[#allocation5 + $0x50] sm:$0xff] %v2175
        %2208 = vst [vmem:[#allocation5 + $0x58] sm:$0xff] %v2176
        %2209 = vst [vmem:[#allocation5 + $0x60] sm:$0xff] %v2177
        %2210 = vst [vmem:[#allocation5 + $0x68] sm:$0xff] %v2178
        %2211 = vst [vmem:[#allocation5 + $0x70] sm:$0xff] %v2179
        %2212 = vst [vmem:[#allocation5 + $0x78] sm:$0xff] %v2180
        %2213 = vst [vmem:[#allocation5 + $0x80] sm:$0xff] %v2181
        %2214 = vst [vmem:[#allocation5 + $0x88] sm:$0xff] %v2182
        %2215 = vst [vmem:[#allocation5 + $0x90] sm:$0xff] %v2183
        %2216 = vst [vmem:[#allocation5 + $0x98] sm:$0xff] %v2184
        %2217 = vst [vmem:[#allocation5 + $0xa0] sm:$0xff] %v2185
        %2218 = vst [vmem:[#allocation5 + $0xa8] sm:$0xff] %v2186
        %2219 = vst [vmem:[#allocation5 + $0xb0] sm:$0xff] %v2187
        %2220 = vst [vmem:[#allocation5 + $0xb8] sm:$0xff] %v2188
        %2221 = vst [vmem:[#allocation5 + $0xc0] sm:$0xff] %v2189
        %2222 = vst [vmem:[#allocation5 + $0xc8] sm:$0xff] %v2190
        %2223 = vst [vmem:[#allocation5 + $0xd0] sm:$0xff] %v2191
        %2224 = vst [vmem:[#allocation5 + $0xd8] sm:$0xff] %v2192
        %2225 = vst [vmem:[#allocation5 + $0xe0] sm:$0xff] %v2193
        %2226 = vst [vmem:[#allocation5 + $0xe8] sm:$0xff] %v2194
        %2227 = vst [vmem:[#allocation5 + $0xf0] sm:$0xff] %v2195
        %2228 = vst [vmem:[#allocation5 + $0xf8] sm:$0xff] %v2196
        %v2229 = vld [vmem:[#allocation2 + $0x8] sm:$0xff]
        %v2230 = vld [vmem:[#allocation2 + $0x10] sm:$0xff]
        %v2231 = vld [vmem:[#allocation2 + $0x28] sm:$0xff]
        %v2232 = vld [vmem:[#allocation2 + $0x30] sm:$0xff]
        %v2233 = vld [vmem:[#allocation2 + $0x48] sm:$0xff]
        %v2234 = vld [vmem:[#allocation2 + $0x50] sm:$0xff]
        %v2235 = vld [vmem:[#allocation2 + $0x68] sm:$0xff]
        %v2236 = vld [vmem:[#allocation2 + $0x70] sm:$0xff]
        %v2237 = vld [vmem:[#allocation2 + $0x88] sm:$0xf]
        %v2238 = vld [vmem:[#allocation2 + $0x90] sm:$0xf]
        %v2239 = vld [vmem:[#allocation5] sm:$0xff]
        %v2240 = vld [vmem:[#allocation5 + $0x8] sm:$0xff]
        %v2241 = vld [vmem:[#allocation5 + $0x10] sm:$0xff]
        %v2242 = vld [vmem:[#allocation5 + $0x18] sm:$0xff]
        %v2243 = vld [vmem:[#allocation5 + $0x20] sm:$0xff]
        %v2244 = vld [vmem:[#allocation5 + $0x28] sm:$0xff]
        %v2245 = vld [vmem:[#allocation5 + $0x30] sm:$0xff]
        %v2246 = vld [vmem:[#allocation5 + $0x38] sm:$0xff]
        %v2247 = vld [vmem:[#allocation5 + $0x40] sm:$0xff]
        %v2248 = vld [vmem:[#allocation5 + $0x48] sm:$0xff]
        %v2249 = vld [vmem:[#allocation5 + $0x50] sm:$0xff]
        %v2250 = vld [vmem:[#allocation5 + $0x58] sm:$0xff]
        %v2251 = vld [vmem:[#allocation5 + $0x60] sm:$0xff]
        %v2252 = vld [vmem:[#allocation5 + $0x68] sm:$0xff]
        %v2253 = vld [vmem:[#allocation5 + $0x70] sm:$0xff]
        %v2254 = vld [vmem:[#allocation5 + $0x78] sm:$0xff]
        %v2255 = vld [vmem:[#allocation5 + $0x80] sm:$0xff]
        %v2256 = vld [vmem:[#allocation5 + $0x88] sm:$0xff]
        %v2257 = vld [vmem:[#allocation5 + $0x90] sm:$0xff]
        %v2258 = vld [vmem:[#allocation5 + $0x98] sm:$0xff]
        %v2259 = vld [vmem:[#allocation5 + $0xa0] sm:$0xff]
        %v2260 = vld [vmem:[#allocation5 + $0xa8] sm:$0xff]
        %v2261 = vld [vmem:[#allocation5 + $0xb0] sm:$0xff]
        %v2262 = vld [vmem:[#allocation5 + $0xb8] sm:$0xff]
        %v2263 = vld [vmem:[#allocation5 + $0xc0] sm:$0xff]
        %v2264 = vld [vmem:[#allocation5 + $0xc8] sm:$0xff]
        %v2265 = vld [vmem:[#allocation5 + $0xd0] sm:$0xff]
        %v2266 = vld [vmem:[#allocation5 + $0xd8] sm:$0xff]
        %v2267 = vld [vmem:[#allocation5 + $0xe0] sm:$0xff]
        %v2268 = vld [vmem:[#allocation5 + $0xe8] sm:$0xff]
        %v2269 = vld [vmem:[#allocation5 + $0xf0] sm:$0xff]
        %v2270 = vld [vmem:[#allocation5 + $0xf8] sm:$0xff]
        %s2271 = scalar_lea.vmem %s3, 512
        %v2272 = vld [vmem:[%s2271] sm:$0xff]
        %v2273 = vld [vmem:[%s2271 + $0x8] sm:$0xff]
        %v2274 = vld [vmem:[%s2271 + $0x10] sm:$0xff]
        %v2275 = vld [vmem:[%s2271 + $0x18] sm:$0xff]
        %v2276 = vld [vmem:[%s2271 + $0x20] sm:$0xff]
        %v2277 = vld [vmem:[%s2271 + $0x28] sm:$0xff]
        %v2278 = vld [vmem:[%s2271 + $0x30] sm:$0xff]
        %v2279 = vld [vmem:[%s2271 + $0x38] sm:$0xff]
        %v2280 = vld [vmem:[%s2271 + $0x40] sm:$0xff]
        %v2281 = vld [vmem:[%s2271 + $0x48] sm:$0xff]
        %v2282 = vld [vmem:[%s2271 + $0x50] sm:$0xff]
        %v2283 = vld [vmem:[%s2271 + $0x58] sm:$0xff]
        %v2284 = vld [vmem:[%s2271 + $0x60] sm:$0xff]
        %v2285 = vld [vmem:[%s2271 + $0x68] sm:$0xff]
        %v2286 = vld [vmem:[%s2271 + $0x70] sm:$0xff]
        %v2287 = vld [vmem:[%s2271 + $0x78] sm:$0xff]
        %v2289 = vsel %vm703, %v2272, 0
        %v2292 = vsel %vm703, %v2273, 0
        %v2295 = vsel %vm703, %v2274, 0
        %v2298 = vsel %vm703, %v2275, 0
        %v2301 = vsel %vm703, %v2276, 0
        %v2304 = vsel %vm703, %v2277, 0
        %v2307 = vsel %vm703, %v2278, 0
        %v2310 = vsel %vm703, %v2279, 0
        %v2313 = vsel %vm703, %v2280, 0
        %v2316 = vsel %vm703, %v2281, 0
        %v2319 = vsel %vm703, %v2282, 0
        %v2322 = vsel %vm703, %v2283, 0
        %v2325 = vsel %vm703, %v2284, 0
        %v2328 = vsel %vm703, %v2285, 0
        %v2331 = vsel %vm703, %v2286, 0
        %v2334 = vsel %vm703, %v2287, 0
        %v2337 = vsel %vm752, %v2237, 0
        %v2340 = vsel %vm752, %v2238, 0
        %2342 = vmatprep.subr.mxu0 %v2230
        %2343 = vmatpush1.msra.mxu0 %v2229
        %2344 = vmatprep.subr.mxu0 %v2232
        %2345 = vmatpush1.msra.mxu0 %v2231
        %2346 = vmatprep.subr.mxu0 %v2234
        %2347 = vmatpush1.msra.mxu0 %v2233
        %2348 = vmatprep.subr.mxu0 %v2236
        %2349 = vmatpush1.msra.mxu0 %v2235
        %2350 = vmatprep.subr.mxu0 %v2340
        %2351 = vmatpush1.msra.mxu0 %v2337
        %2352 = vmatprep.subr.mxu0 0.0
        %2353 = vmatpush1.msra.mxu0 0.0
        %2354 = vmatprep.subr.mxu0 0.0
        %2355 = vmatpush1.msra.mxu0 0.0
        %2356 = vmatprep.subr.mxu0 0.0
        %2357 = vmatpush1.msra.mxu0 0.0
        %2358 = vmatprep.subr.mxu0 0.0
        %2359 = vmatpush1.msra.mxu0 0.0
        %2360 = vmatprep.subr.mxu0 0.0
        %2361 = vmatpush1.msra.mxu0 0.0
        %2362 = vmatprep.subr.mxu0 0.0
        %2363 = vmatpush1.msra.mxu0 0.0
        %2364 = vmatprep.subr.mxu0 0.0
        %2365 = vmatpush1.msra.mxu0 0.0
        %2366 = vmatprep.subr.mxu0 0.0
        %2367 = vmatpush1.msra.mxu0 0.0
        %2368 = vmatprep.subr.mxu0 0.0
        %2369 = vmatpush1.msra.mxu0 0.0
        %2370 = vmatprep.subr.mxu0 0.0
        %2371 = vmatpush1.msra.mxu0 0.0
        %2372 = vmatprep.subr.mxu0 0.0
        %2373 = vmatpush1.msra.mxu0 0.0
        %2374 = vmatprep.subr.mxu0 0.0
        %2375 = vmatpush1.msra.mxu0 0.0
        %2376 = vmatprep.subr.mxu0 0.0
        %2377 = vmatpush1.msra.mxu0 0.0
        %2378 = vmatprep.subr.mxu0 0.0
        %2379 = vmatpush1.msra.mxu0 0.0
        %2380 = vmatprep.subr.mxu0 0.0
        %2381 = vmatpush1.msra.mxu0 0.0
        %2382 = vmatprep.subr.mxu0 0.0
        %2383 = vmatpush1.msra.mxu0 0.0
        %2384 = vmatprep.subr.mxu0 0.0
        %2385 = vmatpush1.msra.mxu0 0.0
        %2386 = vmatprep.subr.mxu0 0.0
        %2387 = vmatpush1.msra.mxu0 0.0
        %2388 = vmatprep.subr.mxu0 0.0
        %2389 = vmatpush1.msra.mxu0 0.0
        %2390 = vmatprep.subr.mxu0 0.0
        %2391 = vmatpush1.msra.mxu0 0.0
        %2392 = vmatprep.subr.mxu0 0.0
        %2393 = vmatpush1.msra.mxu0 0.0
        %2394 = vmatprep.subr.mxu0 0.0
        %2395 = vmatpush1.msra.mxu0 0.0
        %2396 = vmatprep.subr.mxu0 0.0
        %2397 = vmatpush1.msra.mxu0 0.0
        %2398 = vmatprep.subr.mxu0 0.0
        %2399 = vmatpush1.msra.mxu0 0.0
        %2400 = vmatprep.subr.mxu0 0.0
        %2401 = vmatpush1.msra.mxu0 0.0
        %2402 = vmatprep.subr.mxu0 0.0
        %2403 = vmatpush1.msra.mxu0 0.0
        %2404 = vmatprep.subr.mxu0 0.0
        %2405 = vmatpush1.msra.mxu0 0.0
        %2406 = vmatprep.mubr.f32.mxu0 0.0
        %2407 = vmatmul.mubr.f32.gmra.mrb[0].mxu0 %v2289
        %v2408 = vpop.f32.mrb[0].mxu0
        %v2409 = vadd.f32 0.0, %v2408
        %v2410 = vpop.f32.mrb[0].mxu0
        %v2411 = vadd.f32 0.0, %v2410
        %2412 = vmatprep.mubr.f32.mxu0 0.0
        %2413 = vmatmul.mubr.f32.gmra.mrb[0].mxu0 %v2292
        %v2414 = vpop.f32.mrb[0].mxu0
        %v2415 = vadd.f32 0.0, %v2414
        %v2416 = vpop.f32.mrb[0].mxu0
        %v2417 = vadd.f32 0.0, %v2416
        %2418 = vmatprep.mubr.f32.mxu0 0.0
        %2419 = vmatmul.mubr.f32.gmra.mrb[0].mxu0 %v2295
        %v2420 = vpop.f32.mrb[0].mxu0
        %v2421 = vadd.f32 0.0, %v2420
        %v2422 = vpop.f32.mrb[0].mxu0
        %v2423 = vadd.f32 0.0, %v2422
        %2424 = vmatprep.mubr.f32.mxu0 0.0
        %2425 = vmatmul.mubr.f32.gmra.mrb[0].mxu0 %v2298
        %v2426 = vpop.f32.mrb[0].mxu0
        %v2427 = vadd.f32 0.0, %v2426
        %v2428 = vpop.f32.mrb[0].mxu0
        %v2429 = vadd.f32 0.0, %v2428
        %2430 = vmatprep.mubr.f32.mxu0 0.0
        %2431 = vmatmul.mubr.f32.gmra.mrb[0].mxu0 %v2301
        %v2432 = vpop.f32.mrb[0].mxu0
        %v2433 = vadd.f32 0.0, %v2432
        %v2434 = vpop.f32.mrb[0].mxu0
        %v2435 = vadd.f32 0.0, %v2434
        %2436 = vmatprep.mubr.f32.mxu0 0.0
        %2437 = vmatmul.mubr.f32.gmra.mrb[0].mxu0 %v2304
        %v2438 = vpop.f32.mrb[0].mxu0
        %v2439 = vadd.f32 0.0, %v2438
        %v2440 = vpop.f32.mrb[0].mxu0
        %v2441 = vadd.f32 0.0, %v2440
        %2442 = vmatprep.mubr.f32.mxu0 0.0
        %2443 = vmatmul.mubr.f32.gmra.mrb[0].mxu0 %v2307
        %v2444 = vpop.f32.mrb[0].mxu0
        %v2445 = vadd.f32 0.0, %v2444
        %v2446 = vpop.f32.mrb[0].mxu0
        %v2447 = vadd.f32 0.0, %v2446
        %2448 = vmatprep.mubr.f32.mxu0 0.0
        %2449 = vmatmul.mubr.f32.gmra.mrb[0].mxu0 %v2310
        %v2450 = vpop.f32.mrb[0].mxu0
        %v2451 = vadd.f32 0.0, %v2450
        %v2452 = vpop.f32.mrb[0].mxu0
        %v2453 = vadd.f32 0.0, %v2452
        %2454 = vmatprep.mubr.f32.mxu0 0.0
        %2455 = vmatmul.mubr.f32.gmra.mrb[0].mxu0 %v2313
        %v2456 = vpop.f32.mrb[0].mxu0
        %v2457 = vadd.f32 0.0, %v2456
        %v2458 = vpop.f32.mrb[0].mxu0
        %v2459 = vadd.f32 0.0, %v2458
        %2460 = vmatprep.mubr.f32.mxu0 0.0
        %2461 = vmatmul.mubr.f32.gmra.mrb[0].mxu0 %v2316
        %v2462 = vpop.f32.mrb[0].mxu0
        %v2463 = vadd.f32 0.0, %v2462
        %v2464 = vpop.f32.mrb[0].mxu0
        %v2465 = vadd.f32 0.0, %v2464
        %2466 = vmatprep.mubr.f32.mxu0 0.0
        %2467 = vmatmul.mubr.f32.gmra.mrb[0].mxu0 %v2319
        %v2468 = vpop.f32.mrb[0].mxu0
        %v2469 = vadd.f32 0.0, %v2468
        %v2470 = vpop.f32.mrb[0].mxu0
        %v2471 = vadd.f32 0.0, %v2470
        %2472 = vmatprep.mubr.f32.mxu0 0.0
        %2473 = vmatmul.mubr.f32.gmra.mrb[0].mxu0 %v2322
        %v2474 = vpop.f32.mrb[0].mxu0
        %v2475 = vadd.f32 0.0, %v2474
        %v2476 = vpop.f32.mrb[0].mxu0
        %v2477 = vadd.f32 0.0, %v2476
        %2478 = vmatprep.mubr.f32.mxu0 0.0
        %2479 = vmatmul.mubr.f32.gmra.mrb[0].mxu0 %v2325
        %v2480 = vpop.f32.mrb[0].mxu0
        %v2481 = vadd.f32 0.0, %v2480
        %v2482 = vpop.f32.mrb[0].mxu0
        %v2483 = vadd.f32 0.0, %v2482
        %2484 = vmatprep.mubr.f32.mxu0 0.0
        %2485 = vmatmul.mubr.f32.gmra.mrb[0].mxu0 %v2328
        %v2486 = vpop.f32.mrb[0].mxu0
        %v2487 = vadd.f32 0.0, %v2486
        %v2488 = vpop.f32.mrb[0].mxu0
        %v2489 = vadd.f32 0.0, %v2488
        %2490 = vmatprep.mubr.f32.mxu0 0.0
        %2491 = vmatmul.mubr.f32.gmra.mrb[0].mxu0 %v2331
        %v2492 = vpop.f32.mrb[0].mxu0
        %v2493 = vadd.f32 0.0, %v2492
        %v2494 = vpop.f32.mrb[0].mxu0
        %v2495 = vadd.f32 0.0, %v2494
        %2496 = vmatprep.mubr.f32.mxu0 0.0
        %2497 = vmatmul.mubr.f32.gmra.mrb[0].mxu0 %v2334
        %v2498 = vpop.f32.mrb[0].mxu0
        %v2499 = vadd.f32 0.0, %v2498
        %v2500 = vpop.f32.mrb[0].mxu0
        %v2501 = vadd.f32 0.0, %v2500
        %2502 = vdwg.mxu0
        %v2503 = vadd.f32 %v2239, %v2409
        %v2504 = vadd.f32 %v2240, %v2411
        %v2505 = vadd.f32 %v2241, %v2415
        %v2506 = vadd.f32 %v2242, %v2417
        %v2507 = vadd.f32 %v2243, %v2421
        %v2508 = vadd.f32 %v2244, %v2423
        %v2509 = vadd.f32 %v2245, %v2427
        %v2510 = vadd.f32 %v2246, %v2429
        %v2511 = vadd.f32 %v2247, %v2433
        %v2512 = vadd.f32 %v2248, %v2435
        %v2513 = vadd.f32 %v2249, %v2439
        %v2514 = vadd.f32 %v2250, %v2441
        %v2515 = vadd.f32 %v2251, %v2445
        %v2516 = vadd.f32 %v2252, %v2447
        %v2517 = vadd.f32 %v2253, %v2451
        %v2518 = vadd.f32 %v2254, %v2453
        %v2519 = vadd.f32 %v2255, %v2457
        %v2520 = vadd.f32 %v2256, %v2459
        %v2521 = vadd.f32 %v2257, %v2463
        %v2522 = vadd.f32 %v2258, %v2465
        %v2523 = vadd.f32 %v2259, %v2469
        %v2524 = vadd.f32 %v2260, %v2471
        %v2525 = vadd.f32 %v2261, %v2475
        %v2526 = vadd.f32 %v2262, %v2477
        %v2527 = vadd.f32 %v2263, %v2481
        %v2528 = vadd.f32 %v2264, %v2483
        %v2529 = vadd.f32 %v2265, %v2487
        %v2530 = vadd.f32 %v2266, %v2489
        %v2531 = vadd.f32 %v2267, %v2493
        %v2532 = vadd.f32 %v2268, %v2495
        %v2533 = vadd.f32 %v2269, %v2499
        %v2534 = vadd.f32 %v2270, %v2501
        %2535 = vst [vmem:[#allocation5] sm:$0xff] %v2503
        %2536 = vst [vmem:[#allocation5 + $0x8] sm:$0xff] %v2504
        %2537 = vst [vmem:[#allocation5 + $0x10] sm:$0xff] %v2505
        %2538 = vst [vmem:[#allocation5 + $0x18] sm:$0xff] %v2506
        %2539 = vst [vmem:[#allocation5 + $0x20] sm:$0xff] %v2507
        %2540 = vst [vmem:[#allocation5 + $0x28] sm:$0xff] %v2508
        %2541 = vst [vmem:[#allocation5 + $0x30] sm:$0xff] %v2509
        %2542 = vst [vmem:[#allocation5 + $0x38] sm:$0xff] %v2510
        %2543 = vst [vmem:[#allocation5 + $0x40] sm:$0xff] %v2511
        %2544 = vst [vmem:[#allocation5 + $0x48] sm:$0xff] %v2512
        %2545 = vst [vmem:[#allocation5 + $0x50] sm:$0xff] %v2513
        %2546 = vst [vmem:[#allocation5 + $0x58] sm:$0xff] %v2514
        %2547 = vst [vmem:[#allocation5 + $0x60] sm:$0xff] %v2515
        %2548 = vst [vmem:[#allocation5 + $0x68] sm:$0xff] %v2516
        %2549 = vst [vmem:[#allocation5 + $0x70] sm:$0xff] %v2517
        %2550 = vst [vmem:[#allocation5 + $0x78] sm:$0xff] %v2518
        %2551 = vst [vmem:[#allocation5 + $0x80] sm:$0xff] %v2519
        %2552 = vst [vmem:[#allocation5 + $0x88] sm:$0xff] %v2520
        %2553 = vst [vmem:[#allocation5 + $0x90] sm:$0xff] %v2521
        %2554 = vst [vmem:[#allocation5 + $0x98] sm:$0xff] %v2522
        %2555 = vst [vmem:[#allocation5 + $0xa0] sm:$0xff] %v2523
        %2556 = vst [vmem:[#allocation5 + $0xa8] sm:$0xff] %v2524
        %2557 = vst [vmem:[#allocation5 + $0xb0] sm:$0xff] %v2525
        %2558 = vst [vmem:[#allocation5 + $0xb8] sm:$0xff] %v2526
        %2559 = vst [vmem:[#allocation5 + $0xc0] sm:$0xff] %v2527
        %2560 = vst [vmem:[#allocation5 + $0xc8] sm:$0xff] %v2528
        %2561 = vst [vmem:[#allocation5 + $0xd0] sm:$0xff] %v2529
        %2562 = vst [vmem:[#allocation5 + $0xd8] sm:$0xff] %v2530
        %2563 = vst [vmem:[#allocation5 + $0xe0] sm:$0xff] %v2531
        %2564 = vst [vmem:[#allocation5 + $0xe8] sm:$0xff] %v2532
        %2565 = vst [vmem:[#allocation5 + $0xf0] sm:$0xff] %v2533
        %2566 = vst [vmem:[#allocation5 + $0xf8] sm:$0xff] %v2534
        %v2567 = vld [vmem:[#allocation2 + $0x8] sm:$0xff]
        %v2568 = vld [vmem:[#allocation2 + $0x10] sm:$0xff]
        %v2569 = vld [vmem:[#allocation2 + $0x18] sm:$0xff]
        %v2570 = vld [vmem:[#allocation2 + $0x28] sm:$0xff]
        %v2571 = vld [vmem:[#allocation2 + $0x30] sm:$0xff]
        %v2572 = vld [vmem:[#allocation2 + $0x38] sm:$0xff]
        %v2573 = vld [vmem:[#allocation2 + $0x48] sm:$0xff]
        %v2574 = vld [vmem:[#allocation2 + $0x50] sm:$0xff]
        %v2575 = vld [vmem:[#allocation2 + $0x58] sm:$0xff]
        %v2576 = vld [vmem:[#allocation2 + $0x68] sm:$0xff]
        %v2577 = vld [vmem:[#allocation2 + $0x70] sm:$0xff]
        %v2578 = vld [vmem:[#allocation2 + $0x78] sm:$0xff]
        %v2579 = vld [vmem:[#allocation2 + $0x88] sm:$0xf]
        %v2580 = vld [vmem:[#allocation2 + $0x90] sm:$0xf]
        %v2581 = vld [vmem:[#allocation2 + $0x98] sm:$0xf]
        %2597 = vrot.lane.b32.xlu0 %v2567, 127
        %v2598 = vpop.permute.xlu0 %2597
        %2599 = vrot.lane.b32.xlu0 %v2568, 127
        %v2600 = vpop.permute.xlu0 %2599
        %2601 = vrot.lane.b32.xlu0 %v2569, 127
        %v2602 = vpop.permute.xlu0 %2601
        %2603 = vrot.lane.b32.xlu0 %v2570, 127
        %v2604 = vpop.permute.xlu0 %2603
        %2605 = vrot.lane.b32.xlu0 %v2571, 127
        %v2606 = vpop.permute.xlu0 %2605
        %2607 = vrot.lane.b32.xlu0 %v2572, 127
        %v2608 = vpop.permute.xlu0 %2607
        %2609 = vrot.lane.b32.xlu0 %v2573, 127
        %v2610 = vpop.permute.xlu0 %2609
        %2611 = vrot.lane.b32.xlu0 %v2574, 127
        %v2612 = vpop.permute.xlu0 %2611
        %2613 = vrot.lane.b32.xlu0 %v2575, 127
        %v2614 = vpop.permute.xlu0 %2613
        %2615 = vrot.lane.b32.xlu0 %v2576, 127
        %v2616 = vpop.permute.xlu0 %2615
        %2617 = vrot.lane.b32.xlu0 %v2577, 127
        %v2618 = vpop.permute.xlu0 %2617
        %2619 = vrot.lane.b32.xlu0 %v2578, 127
        %v2620 = vpop.permute.xlu0 %2619
        %2621 = vrot.lane.b32.xlu0 %v2579, 127
        %v2622 = vpop.permute.xlu0 %2621
        %2623 = vrot.lane.b32.xlu0 %v2580, 127
        %v2624 = vpop.permute.xlu0 %2623
        %2625 = vrot.lane.b32.xlu0 %v2581, 127
        %v2626 = vpop.permute.xlu0 %2625
        %vm2627 = vcmask 1039360
        %v2628 = vsel %vm2627, %v2598, %v2600
        %v2629 = vsel %vm2627, %v2600, %v2602
        %v2630 = vsel %vm2627, %v2604, %v2606
        %v2631 = vsel %vm2627, %v2606, %v2608
        %v2632 = vsel %vm2627, %v2610, %v2612
        %v2633 = vsel %vm2627, %v2612, %v2614
        %v2634 = vsel %vm2627, %v2616, %v2618
        %v2635 = vsel %vm2627, %v2618, %v2620
        %v2636 = vsel %vm2627, %v2622, %v2624
        %v2637 = vsel %vm2627, %v2624, %v2626
        %v2648 = vsel %vm1404, 0.0, %v2628
        %v2649 = vsel %vm1405, 0.0, %v2629
        %v2650 = vsel %vm1404, 0.0, %v2630
        %v2651 = vsel %vm1405, 0.0, %v2631
        %v2652 = vsel %vm1404, 0.0, %v2632
        %v2653 = vsel %vm1405, 0.0, %v2633
        %v2654 = vsel %vm1404, 0.0, %v2634
        %v2655 = vsel %vm1405, 0.0, %v2635
        %v2656 = vsel %vm1404, 0.0, %v2636
        %v2657 = vsel %vm1405, 0.0, %v2637
        %v2658 = vld [vmem:[#allocation5] sm:$0xff]
        %v2659 = vld [vmem:[#allocation5 + $0x8] sm:$0xff]
        %v2660 = vld [vmem:[#allocation5 + $0x10] sm:$0xff]
        %v2661 = vld [vmem:[#allocation5 + $0x18] sm:$0xff]
        %v2662 = vld [vmem:[#allocation5 + $0x20] sm:$0xff]
        %v2663 = vld [vmem:[#allocation5 + $0x28] sm:$0xff]
        %v2664 = vld [vmem:[#allocation5 + $0x30] sm:$0xff]
        %v2665 = vld [vmem:[#allocation5 + $0x38] sm:$0xff]
        %v2666 = vld [vmem:[#allocation5 + $0x40] sm:$0xff]
        %v2667 = vld [vmem:[#allocation5 + $0x48] sm:$0xff]
        %v2668 = vld [vmem:[#allocation5 + $0x50] sm:$0xff]
        %v2669 = vld [vmem:[#allocation5 + $0x58] sm:$0xff]
        %v2670 = vld [vmem:[#allocation5 + $0x60] sm:$0xff]
        %v2671 = vld [vmem:[#allocation5 + $0x68] sm:$0xff]
        %v2672 = vld [vmem:[#allocation5 + $0x70] sm:$0xff]
        %v2673 = vld [vmem:[#allocation5 + $0x78] sm:$0xff]
        %v2674 = vld [vmem:[#allocation5 + $0x80] sm:$0xff]
        %v2675 = vld [vmem:[#allocation5 + $0x88] sm:$0xff]
        %v2676 = vld [vmem:[#allocation5 + $0x90] sm:$0xff]
        %v2677 = vld [vmem:[#allocation5 + $0x98] sm:$0xff]
        %v2678 = vld [vmem:[#allocation5 + $0xa0] sm:$0xff]
        %v2679 = vld [vmem:[#allocation5 + $0xa8] sm:$0xff]
        %v2680 = vld [vmem:[#allocation5 + $0xb0] sm:$0xff]
        %v2681 = vld [vmem:[#allocation5 + $0xb8] sm:$0xff]
        %v2682 = vld [vmem:[#allocation5 + $0xc0] sm:$0xff]
        %v2683 = vld [vmem:[#allocation5 + $0xc8] sm:$0xff]
        %v2684 = vld [vmem:[#allocation5 + $0xd0] sm:$0xff]
        %v2685 = vld [vmem:[#allocation5 + $0xd8] sm:$0xff]
        %v2686 = vld [vmem:[#allocation5 + $0xe0] sm:$0xff]
        %v2687 = vld [vmem:[#allocation5 + $0xe8] sm:$0xff]
        %v2688 = vld [vmem:[#allocation5 + $0xf0] sm:$0xff]
        %v2689 = vld [vmem:[#allocation5 + $0xf8] sm:$0xff]
        %s2690 = scalar_lea.vmem %s3, 640
        %v2691 = vld [vmem:[%s2690] sm:$0xff]
        %v2692 = vld [vmem:[%s2690 + $0x8] sm:$0xff]
        %v2693 = vld [vmem:[%s2690 + $0x10] sm:$0xff]
        %v2694 = vld [vmem:[%s2690 + $0x18] sm:$0xff]
        %v2695 = vld [vmem:[%s2690 + $0x20] sm:$0xff]
        %v2696 = vld [vmem:[%s2690 + $0x28] sm:$0xff]
        %v2697 = vld [vmem:[%s2690 + $0x30] sm:$0xff]
        %v2698 = vld [vmem:[%s2690 + $0x38] sm:$0xff]
        %v2699 = vld [vmem:[%s2690 + $0x40] sm:$0xff]
        %v2700 = vld [vmem:[%s2690 + $0x48] sm:$0xff]
        %v2701 = vld [vmem:[%s2690 + $0x50] sm:$0xff]
        %v2702 = vld [vmem:[%s2690 + $0x58] sm:$0xff]
        %v2703 = vld [vmem:[%s2690 + $0x60] sm:$0xff]
        %v2704 = vld [vmem:[%s2690 + $0x68] sm:$0xff]
        %v2705 = vld [vmem:[%s2690 + $0x70] sm:$0xff]
        %v2706 = vld [vmem:[%s2690 + $0x78] sm:$0xff]
        %v2708 = vsel %vm703, %v2691, 0
        %v2711 = vsel %vm703, %v2692, 0
        %v2714 = vsel %vm703, %v2693, 0
        %v2717 = vsel %vm703, %v2694, 0
        %v2720 = vsel %vm703, %v2695, 0
        %v2723 = vsel %vm703, %v2696, 0
        %v2726 = vsel %vm703, %v2697, 0
        %v2729 = vsel %vm703, %v2698, 0
        %v2732 = vsel %vm703, %v2699, 0
        %v2735 = vsel %vm703, %v2700, 0
        %v2738 = vsel %vm703, %v2701, 0
        %v2741 = vsel %vm703, %v2702, 0
        %v2744 = vsel %vm703, %v2703, 0
        %v2747 = vsel %vm703, %v2704, 0
        %v2750 = vsel %vm703, %v2705, 0
        %v2753 = vsel %vm703, %v2706, 0
        %v2756 = vsel %vm752, %v2656, 0
        %v2759 = vsel %vm752, %v2657, 0
        %2761 = vmatprep.subr.mxu0 %v2649
        %2762 = vmatpush1.msra.mxu0 %v2648
        %2763 = vmatprep.subr.mxu0 %v2651
        %2764 = vmatpush1.msra.mxu0 %v2650
        %2765 = vmatprep.subr.mxu0 %v2653
        %2766 = vmatpush1.msra.mxu0 %v2652
        %2767 = vmatprep.subr.mxu0 %v2655
        %2768 = vmatpush1.msra.mxu0 %v2654
        %2769 = vmatprep.subr.mxu0 %v2759
        %2770 = vmatpush1.msra.mxu0 %v2756
        %2771 = vmatprep.subr.mxu0 0.0
        %2772 = vmatpush1.msra.mxu0 0.0
        %2773 = vmatprep.subr.mxu0 0.0
        %2774 = vmatpush1.msra.mxu0 0.0
        %2775 = vmatprep.subr.mxu0 0.0
        %2776 = vmatpush1.msra.mxu0 0.0
        %2777 = vmatprep.subr.mxu0 0.0
        %2778 = vmatpush1.msra.mxu0 0.0
        %2779 = vmatprep.subr.mxu0 0.0
        %2780 = vmatpush1.msra.mxu0 0.0
        %2781 = vmatprep.subr.mxu0 0.0
        %2782 = vmatpush1.msra.mxu0 0.0
        %2783 = vmatprep.subr.mxu0 0.0
        %2784 = vmatpush1.msra.mxu0 0.0
        %2785 = vmatprep.subr.mxu0 0.0
        %2786 = vmatpush1.msra.mxu0 0.0
        %2787 = vmatprep.subr.mxu0 0.0
        %2788 = vmatpush1.msra.mxu0 0.0
        %2789 = vmatprep.subr.mxu0 0.0
        %2790 = vmatpush1.msra.mxu0 0.0
        %2791 = vmatprep.subr.mxu0 0.0
        %2792 = vmatpush1.msra.mxu0 0.0
        %2793 = vmatprep.subr.mxu0 0.0
        %2794 = vmatpush1.msra.mxu0 0.0
        %2795 = vmatprep.subr.mxu0 0.0
        %2796 = vmatpush1.msra.mxu0 0.0
        %2797 = vmatprep.subr.mxu0 0.0
        %2798 = vmatpush1.msra.mxu0 0.0
        %2799 = vmatprep.subr.mxu0 0.0
        %2800 = vmatpush1.msra.mxu0 0.0
        %2801 = vmatprep.subr.mxu0 0.0
        %2802 = vmatpush1.msra.mxu0 0.0
        %2803 = vmatprep.subr.mxu0 0.0
        %2804 = vmatpush1.msra.mxu0 0.0
        %2805 = vmatprep.subr.mxu0 0.0
        %2806 = vmatpush1.msra.mxu0 0.0
        %2807 = vmatprep.subr.mxu0 0.0
        %2808 = vmatpush1.msra.mxu0 0.0
        %2809 = vmatprep.subr.mxu0 0.0
        %2810 = vmatpush1.msra.mxu0 0.0
        %2811 = vmatprep.subr.mxu0 0.0
        %2812 = vmatpush1.msra.mxu0 0.0
        %2813 = vmatprep.subr.mxu0 0.0
        %2814 = vmatpush1.msra.mxu0 0.0
        %2815 = vmatprep.subr.mxu0 0.0
        %2816 = vmatpush1.msra.mxu0 0.0
        %2817 = vmatprep.subr.mxu0 0.0
        %2818 = vmatpush1.msra.mxu0 0.0
        %2819 = vmatprep.subr.mxu0 0.0
        %2820 = vmatpush1.msra.mxu0 0.0
        %2821 = vmatprep.subr.mxu0 0.0
        %2822 = vmatpush1.msra.mxu0 0.0
        %2823 = vmatprep.subr.mxu0 0.0
        %2824 = vmatpush1.msra.mxu0 0.0
        %2825 = vmatprep.mubr.f32.mxu0 0.0
        %2826 = vmatmul.mubr.f32.gmra.mrb[0].mxu0 %v2708
        %v2827 = vpop.f32.mrb[0].mxu0
        %v2828 = vadd.f32 0.0, %v2827
        %v2829 = vpop.f32.mrb[0].mxu0
        %v2830 = vadd.f32 0.0, %v2829
        %2831 = vmatprep.mubr.f32.mxu0 0.0
        %2832 = vmatmul.mubr.f32.gmra.mrb[0].mxu0 %v2711
        %v2833 = vpop.f32.mrb[0].mxu0
        %v2834 = vadd.f32 0.0, %v2833
        %v2835 = vpop.f32.mrb[0].mxu0
        %v2836 = vadd.f32 0.0, %v2835
        %2837 = vmatprep.mubr.f32.mxu0 0.0
        %2838 = vmatmul.mubr.f32.gmra.mrb[0].mxu0 %v2714
        %v2839 = vpop.f32.mrb[0].mxu0
        %v2840 = vadd.f32 0.0, %v2839
        %v2841 = vpop.f32.mrb[0].mxu0
        %v2842 = vadd.f32 0.0, %v2841
        %2843 = vmatprep.mubr.f32.mxu0 0.0
        %2844 = vmatmul.mubr.f32.gmra.mrb[0].mxu0 %v2717
        %v2845 = vpop.f32.mrb[0].mxu0
        %v2846 = vadd.f32 0.0, %v2845
        %v2847 = vpop.f32.mrb[0].mxu0
        %v2848 = vadd.f32 0.0, %v2847
        %2849 = vmatprep.mubr.f32.mxu0 0.0
        %2850 = vmatmul.mubr.f32.gmra.mrb[0].mxu0 %v2720
        %v2851 = vpop.f32.mrb[0].mxu0
        %v2852 = vadd.f32 0.0, %v2851
        %v2853 = vpop.f32.mrb[0].mxu0
        %v2854 = vadd.f32 0.0, %v2853
        %2855 = vmatprep.mubr.f32.mxu0 0.0
        %2856 = vmatmul.mubr.f32.gmra.mrb[0].mxu0 %v2723
        %v2857 = vpop.f32.mrb[0].mxu0
        %v2858 = vadd.f32 0.0, %v2857
        %v2859 = vpop.f32.mrb[0].mxu0
        %v2860 = vadd.f32 0.0, %v2859
        %2861 = vmatprep.mubr.f32.mxu0 0.0
        %2862 = vmatmul.mubr.f32.gmra.mrb[0].mxu0 %v2726
        %v2863 = vpop.f32.mrb[0].mxu0
        %v2864 = vadd.f32 0.0, %v2863
        %v2865 = vpop.f32.mrb[0].mxu0
        %v2866 = vadd.f32 0.0, %v2865
        %2867 = vmatprep.mubr.f32.mxu0 0.0
        %2868 = vmatmul.mubr.f32.gmra.mrb[0].mxu0 %v2729
        %v2869 = vpop.f32.mrb[0].mxu0
        %v2870 = vadd.f32 0.0, %v2869
        %v2871 = vpop.f32.mrb[0].mxu0
        %v2872 = vadd.f32 0.0, %v2871
        %2873 = vmatprep.mubr.f32.mxu0 0.0
        %2874 = vmatmul.mubr.f32.gmra.mrb[0].mxu0 %v2732
        %v2875 = vpop.f32.mrb[0].mxu0
        %v2876 = vadd.f32 0.0, %v2875
        %v2877 = vpop.f32.mrb[0].mxu0
        %v2878 = vadd.f32 0.0, %v2877
        %2879 = vmatprep.mubr.f32.mxu0 0.0
        %2880 = vmatmul.mubr.f32.gmra.mrb[0].mxu0 %v2735
        %v2881 = vpop.f32.mrb[0].mxu0
        %v2882 = vadd.f32 0.0, %v2881
        %v2883 = vpop.f32.mrb[0].mxu0
        %v2884 = vadd.f32 0.0, %v2883
        %2885 = vmatprep.mubr.f32.mxu0 0.0
        %2886 = vmatmul.mubr.f32.gmra.mrb[0].mxu0 %v2738
        %v2887 = vpop.f32.mrb[0].mxu0
        %v2888 = vadd.f32 0.0, %v2887
        %v2889 = vpop.f32.mrb[0].mxu0
        %v2890 = vadd.f32 0.0, %v2889
        %2891 = vmatprep.mubr.f32.mxu0 0.0
        %2892 = vmatmul.mubr.f32.gmra.mrb[0].mxu0 %v2741
        %v2893 = vpop.f32.mrb[0].mxu0
        %v2894 = vadd.f32 0.0, %v2893
        %v2895 = vpop.f32.mrb[0].mxu0
        %v2896 = vadd.f32 0.0, %v2895
        %2897 = vmatprep.mubr.f32.mxu0 0.0
        %2898 = vmatmul.mubr.f32.gmra.mrb[0].mxu0 %v2744
        %v2899 = vpop.f32.mrb[0].mxu0
        %v2900 = vadd.f32 0.0, %v2899
        %v2901 = vpop.f32.mrb[0].mxu0
        %v2902 = vadd.f32 0.0, %v2901
        %2903 = vmatprep.mubr.f32.mxu0 0.0
        %2904 = vmatmul.mubr.f32.gmra.mrb[0].mxu0 %v2747
        %v2905 = vpop.f32.mrb[0].mxu0
        %v2906 = vadd.f32 0.0, %v2905
        %v2907 = vpop.f32.mrb[0].mxu0
        %v2908 = vadd.f32 0.0, %v2907
        %2909 = vmatprep.mubr.f32.mxu0 0.0
        %2910 = vmatmul.mubr.f32.gmra.mrb[0].mxu0 %v2750
        %v2911 = vpop.f32.mrb[0].mxu0
        %v2912 = vadd.f32 0.0, %v2911
        %v2913 = vpop.f32.mrb[0].mxu0
        %v2914 = vadd.f32 0.0, %v2913
        %2915 = vmatprep.mubr.f32.mxu0 0.0
        %2916 = vmatmul.mubr.f32.gmra.mrb[0].mxu0 %v2753
        %v2917 = vpop.f32.mrb[0].mxu0
        %v2918 = vadd.f32 0.0, %v2917
        %v2919 = vpop.f32.mrb[0].mxu0
        %v2920 = vadd.f32 0.0, %v2919
        %2921 = vdwg.mxu0
        %v2922 = vadd.f32 %v2658, %v2828
        %v2923 = vadd.f32 %v2659, %v2830
        %v2924 = vadd.f32 %v2660, %v2834
        %v2925 = vadd.f32 %v2661, %v2836
        %v2926 = vadd.f32 %v2662, %v2840
        %v2927 = vadd.f32 %v2663, %v2842
        %v2928 = vadd.f32 %v2664, %v2846
        %v2929 = vadd.f32 %v2665, %v2848
        %v2930 = vadd.f32 %v2666, %v2852
        %v2931 = vadd.f32 %v2667, %v2854
        %v2932 = vadd.f32 %v2668, %v2858
        %v2933 = vadd.f32 %v2669, %v2860
        %v2934 = vadd.f32 %v2670, %v2864
        %v2935 = vadd.f32 %v2671, %v2866
        %v2936 = vadd.f32 %v2672, %v2870
        %v2937 = vadd.f32 %v2673, %v2872
        %v2938 = vadd.f32 %v2674, %v2876
        %v2939 = vadd.f32 %v2675, %v2878
        %v2940 = vadd.f32 %v2676, %v2882
        %v2941 = vadd.f32 %v2677, %v2884
        %v2942 = vadd.f32 %v2678, %v2888
        %v2943 = vadd.f32 %v2679, %v2890
        %v2944 = vadd.f32 %v2680, %v2894
        %v2945 = vadd.f32 %v2681, %v2896
        %v2946 = vadd.f32 %v2682, %v2900
        %v2947 = vadd.f32 %v2683, %v2902
        %v2948 = vadd.f32 %v2684, %v2906
        %v2949 = vadd.f32 %v2685, %v2908
        %v2950 = vadd.f32 %v2686, %v2912
        %v2951 = vadd.f32 %v2687, %v2914
        %v2952 = vadd.f32 %v2688, %v2918
        %v2953 = vadd.f32 %v2689, %v2920
        %2954 = vst [vmem:[#allocation5] sm:$0xff] %v2922
        %2955 = vst [vmem:[#allocation5 + $0x8] sm:$0xff] %v2923
        %2956 = vst [vmem:[#allocation5 + $0x10] sm:$0xff] %v2924
        %2957 = vst [vmem:[#allocation5 + $0x18] sm:$0xff] %v2925
        %2958 = vst [vmem:[#allocation5 + $0x20] sm:$0xff] %v2926
        %2959 = vst [vmem:[#allocation5 + $0x28] sm:$0xff] %v2927
        %2960 = vst [vmem:[#allocation5 + $0x30] sm:$0xff] %v2928
        %2961 = vst [vmem:[#allocation5 + $0x38] sm:$0xff] %v2929
        %2962 = vst [vmem:[#allocation5 + $0x40] sm:$0xff] %v2930
        %2963 = vst [vmem:[#allocation5 + $0x48] sm:$0xff] %v2931
        %2964 = vst [vmem:[#allocation5 + $0x50] sm:$0xff] %v2932
        %2965 = vst [vmem:[#allocation5 + $0x58] sm:$0xff] %v2933
        %2966 = vst [vmem:[#allocation5 + $0x60] sm:$0xff] %v2934
        %2967 = vst [vmem:[#allocation5 + $0x68] sm:$0xff] %v2935
        %2968 = vst [vmem:[#allocation5 + $0x70] sm:$0xff] %v2936
        %2969 = vst [vmem:[#allocation5 + $0x78] sm:$0xff] %v2937
        %2970 = vst [vmem:[#allocation5 + $0x80] sm:$0xff] %v2938
        %2971 = vst [vmem:[#allocation5 + $0x88] sm:$0xff] %v2939
        %2972 = vst [vmem:[#allocation5 + $0x90] sm:$0xff] %v2940
        %2973 = vst [vmem:[#allocation5 + $0x98] sm:$0xff] %v2941
        %2974 = vst [vmem:[#allocation5 + $0xa0] sm:$0xff] %v2942
        %2975 = vst [vmem:[#allocation5 + $0xa8] sm:$0xff] %v2943
        %2976 = vst [vmem:[#allocation5 + $0xb0] sm:$0xff] %v2944
        %2977 = vst [vmem:[#allocation5 + $0xb8] sm:$0xff] %v2945
        %2978 = vst [vmem:[#allocation5 + $0xc0] sm:$0xff] %v2946
        %2979 = vst [vmem:[#allocation5 + $0xc8] sm:$0xff] %v2947
        %2980 = vst [vmem:[#allocation5 + $0xd0] sm:$0xff] %v2948
        %2981 = vst [vmem:[#allocation5 + $0xd8] sm:$0xff] %v2949
        %2982 = vst [vmem:[#allocation5 + $0xe0] sm:$0xff] %v2950
        %2983 = vst [vmem:[#allocation5 + $0xe8] sm:$0xff] %v2951
        %2984 = vst [vmem:[#allocation5 + $0xf0] sm:$0xff] %v2952
        %2985 = vst [vmem:[#allocation5 + $0xf8] sm:$0xff] %v2953
        %v2986 = vld [vmem:[#allocation2 + $0x8] sm:$0xff]
        %v2987 = vld [vmem:[#allocation2 + $0x10] sm:$0xff]
        %v2988 = vld [vmem:[#allocation2 + $0x18] sm:$0xff]
        %v2989 = vld [vmem:[#allocation2 + $0x28] sm:$0xff]
        %v2990 = vld [vmem:[#allocation2 + $0x30] sm:$0xff]
        %v2991 = vld [vmem:[#allocation2 + $0x38] sm:$0xff]
        %v2992 = vld [vmem:[#allocation2 + $0x48] sm:$0xff]
        %v2993 = vld [vmem:[#allocation2 + $0x50] sm:$0xff]
        %v2994 = vld [vmem:[#allocation2 + $0x58] sm:$0xff]
        %v2995 = vld [vmem:[#allocation2 + $0x68] sm:$0xff]
        %v2996 = vld [vmem:[#allocation2 + $0x70] sm:$0xff]
        %v2997 = vld [vmem:[#allocation2 + $0x78] sm:$0xff]
        %v2998 = vld [vmem:[#allocation2 + $0x88] sm:$0xf]
        %v2999 = vld [vmem:[#allocation2 + $0x90] sm:$0xf]
        %v3000 = vld [vmem:[#allocation2 + $0x98] sm:$0xf]
        %3016 = vrot.lane.b32.xlu0 %v2986, 113
        %v3017 = vpop.permute.xlu0 %3016
        %3018 = vrot.lane.b32.xlu0 %v2987, 113
        %v3019 = vpop.permute.xlu0 %3018
        %3020 = vrot.lane.b32.xlu0 %v2988, 113
        %v3021 = vpop.permute.xlu0 %3020
        %3022 = vrot.lane.b32.xlu0 %v2989, 113
        %v3023 = vpop.permute.xlu0 %3022
        %3024 = vrot.lane.b32.xlu0 %v2990, 113
        %v3025 = vpop.permute.xlu0 %3024
        %3026 = vrot.lane.b32.xlu0 %v2991, 113
        %v3027 = vpop.permute.xlu0 %3026
        %3028 = vrot.lane.b32.xlu0 %v2992, 113
        %v3029 = vpop.permute.xlu0 %3028
        %3030 = vrot.lane.b32.xlu0 %v2993, 113
        %v3031 = vpop.permute.xlu0 %3030
        %3032 = vrot.lane.b32.xlu0 %v2994, 113
        %v3033 = vpop.permute.xlu0 %3032
        %3034 = vrot.lane.b32.xlu0 %v2995, 113
        %v3035 = vpop.permute.xlu0 %3034
        %3036 = vrot.lane.b32.xlu0 %v2996, 113
        %v3037 = vpop.permute.xlu0 %3036
        %3038 = vrot.lane.b32.xlu0 %v2997, 113
        %v3039 = vpop.permute.xlu0 %3038
        %3040 = vrot.lane.b32.xlu0 %v2998, 113
        %v3041 = vpop.permute.xlu0 %3040
        %3042 = vrot.lane.b32.xlu0 %v2999, 113
        %v3043 = vpop.permute.xlu0 %3042
        %3044 = vrot.lane.b32.xlu0 %v3000, 113
        %v3045 = vpop.permute.xlu0 %3044
        %vm3046 = vcmask 924672
        %v3047 = vsel %vm3046, %v3017, %v3019
        %v3048 = vsel %vm3046, %v3019, %v3021
        %v3049 = vsel %vm3046, %v3023, %v3025
        %v3050 = vsel %vm3046, %v3025, %v3027
        %v3051 = vsel %vm3046, %v3029, %v3031
        %v3052 = vsel %vm3046, %v3031, %v3033
        %v3053 = vsel %vm3046, %v3035, %v3037
        %v3054 = vsel %vm3046, %v3037, %v3039
        %v3055 = vsel %vm3046, %v3041, %v3043
        %v3056 = vsel %vm3046, %v3043, %v3045
        %v3067 = vsel %vm577, 0.0, %v3047
        %v3068 = vsel %vm578, 0.0, %v3048
        %v3069 = vsel %vm577, 0.0, %v3049
        %v3070 = vsel %vm578, 0.0, %v3050
        %v3071 = vsel %vm577, 0.0, %v3051
        %v3072 = vsel %vm578, 0.0, %v3052
        %v3073 = vsel %vm577, 0.0, %v3053
        %v3074 = vsel %vm578, 0.0, %v3054
        %v3075 = vsel %vm577, 0.0, %v3055
        %v3076 = vsel %vm578, 0.0, %v3056
        %v3077 = vld [vmem:[#allocation5] sm:$0xff]
        %v3078 = vld [vmem:[#allocation5 + $0x8] sm:$0xff]
        %v3079 = vld [vmem:[#allocation5 + $0x10] sm:$0xff]
        %v3080 = vld [vmem:[#allocation5 + $0x18] sm:$0xff]
        %v3081 = vld [vmem:[#allocation5 + $0x20] sm:$0xff]
        %v3082 = vld [vmem:[#allocation5 + $0x28] sm:$0xff]
        %v3083 = vld [vmem:[#allocation5 + $0x30] sm:$0xff]
        %v3084 = vld [vmem:[#allocation5 + $0x38] sm:$0xff]
        %v3085 = vld [vmem:[#allocation5 + $0x40] sm:$0xff]
        %v3086 = vld [vmem:[#allocation5 + $0x48] sm:$0xff]
        %v3087 = vld [vmem:[#allocation5 + $0x50] sm:$0xff]
        %v3088 = vld [vmem:[#allocation5 + $0x58] sm:$0xff]
        %v3089 = vld [vmem:[#allocation5 + $0x60] sm:$0xff]
        %v3090 = vld [vmem:[#allocation5 + $0x68] sm:$0xff]
        %v3091 = vld [vmem:[#allocation5 + $0x70] sm:$0xff]
        %v3092 = vld [vmem:[#allocation5 + $0x78] sm:$0xff]
        %v3093 = vld [vmem:[#allocation5 + $0x80] sm:$0xff]
        %v3094 = vld [vmem:[#allocation5 + $0x88] sm:$0xff]
        %v3095 = vld [vmem:[#allocation5 + $0x90] sm:$0xff]
        %v3096 = vld [vmem:[#allocation5 + $0x98] sm:$0xff]
        %v3097 = vld [vmem:[#allocation5 + $0xa0] sm:$0xff]
        %v3098 = vld [vmem:[#allocation5 + $0xa8] sm:$0xff]
        %v3099 = vld [vmem:[#allocation5 + $0xb0] sm:$0xff]
        %v3100 = vld [vmem:[#allocation5 + $0xb8] sm:$0xff]
        %v3101 = vld [vmem:[#allocation5 + $0xc0] sm:$0xff]
        %v3102 = vld [vmem:[#allocation5 + $0xc8] sm:$0xff]
        %v3103 = vld [vmem:[#allocation5 + $0xd0] sm:$0xff]
        %v3104 = vld [vmem:[#allocation5 + $0xd8] sm:$0xff]
        %v3105 = vld [vmem:[#allocation5 + $0xe0] sm:$0xff]
        %v3106 = vld [vmem:[#allocation5 + $0xe8] sm:$0xff]
        %v3107 = vld [vmem:[#allocation5 + $0xf0] sm:$0xff]
        %v3108 = vld [vmem:[#allocation5 + $0xf8] sm:$0xff]
        %s3109 = scalar_lea.vmem %s3, 768
        %v3110 = vld [vmem:[%s3109] sm:$0xff]
        %v3111 = vld [vmem:[%s3109 + $0x8] sm:$0xff]
        %v3112 = vld [vmem:[%s3109 + $0x10] sm:$0xff]
        %v3113 = vld [vmem:[%s3109 + $0x18] sm:$0xff]
        %v3114 = vld [vmem:[%s3109 + $0x20] sm:$0xff]
        %v3115 = vld [vmem:[%s3109 + $0x28] sm:$0xff]
        %v3116 = vld [vmem:[%s3109 + $0x30] sm:$0xff]
        %v3117 = vld [vmem:[%s3109 + $0x38] sm:$0xff]
        %v3118 = vld [vmem:[%s3109 + $0x40] sm:$0xff]
        %v3119 = vld [vmem:[%s3109 + $0x48] sm:$0xff]
        %v3120 = vld [vmem:[%s3109 + $0x50] sm:$0xff]
        %v3121 = vld [vmem:[%s3109 + $0x58] sm:$0xff]
        %v3122 = vld [vmem:[%s3109 + $0x60] sm:$0xff]
        %v3123 = vld [vmem:[%s3109 + $0x68] sm:$0xff]
        %v3124 = vld [vmem:[%s3109 + $0x70] sm:$0xff]
        %v3125 = vld [vmem:[%s3109 + $0x78] sm:$0xff]
        %v3127 = vsel %vm703, %v3110, 0
        %v3130 = vsel %vm703, %v3111, 0
        %v3133 = vsel %vm703, %v3112, 0
        %v3136 = vsel %vm703, %v3113, 0
        %v3139 = vsel %vm703, %v3114, 0
        %v3142 = vsel %vm703, %v3115, 0
        %v3145 = vsel %vm703, %v3116, 0
        %v3148 = vsel %vm703, %v3117, 0
        %v3151 = vsel %vm703, %v3118, 0
        %v3154 = vsel %vm703, %v3119, 0
        %v3157 = vsel %vm703, %v3120, 0
        %v3160 = vsel %vm703, %v3121, 0
        %v3163 = vsel %vm703, %v3122, 0
        %v3166 = vsel %vm703, %v3123, 0
        %v3169 = vsel %vm703, %v3124, 0
        %v3172 = vsel %vm703, %v3125, 0
        %v3175 = vsel %vm752, %v3075, 0
        %v3178 = vsel %vm752, %v3076, 0
        %3180 = vmatprep.subr.mxu0 %v3068
        %3181 = vmatpush1.msra.mxu0 %v3067
        %3182 = vmatprep.subr.mxu0 %v3070
        %3183 = vmatpush1.msra.mxu0 %v3069
        %3184 = vmatprep.subr.mxu0 %v3072
        %3185 = vmatpush1.msra.mxu0 %v3071
        %3186 = vmatprep.subr.mxu0 %v3074
        %3187 = vmatpush1.msra.mxu0 %v3073
        %3188 = vmatprep.subr.mxu0 %v3178
        %3189 = vmatpush1.msra.mxu0 %v3175
        %3190 = vmatprep.subr.mxu0 0.0
        %3191 = vmatpush1.msra.mxu0 0.0
        %3192 = vmatprep.subr.mxu0 0.0
        %3193 = vmatpush1.msra.mxu0 0.0
        %3194 = vmatprep.subr.mxu0 0.0
        %3195 = vmatpush1.msra.mxu0 0.0
        %3196 = vmatprep.subr.mxu0 0.0
        %3197 = vmatpush1.msra.mxu0 0.0
        %3198 = vmatprep.subr.mxu0 0.0
        %3199 = vmatpush1.msra.mxu0 0.0
        %3200 = vmatprep.subr.mxu0 0.0
        %3201 = vmatpush1.msra.mxu0 0.0
        %3202 = vmatprep.subr.mxu0 0.0
        %3203 = vmatpush1.msra.mxu0 0.0
        %3204 = vmatprep.subr.mxu0 0.0
        %3205 = vmatpush1.msra.mxu0 0.0
        %3206 = vmatprep.subr.mxu0 0.0
        %3207 = vmatpush1.msra.mxu0 0.0
        %3208 = vmatprep.subr.mxu0 0.0
        %3209 = vmatpush1.msra.mxu0 0.0
        %3210 = vmatprep.subr.mxu0 0.0
        %3211 = vmatpush1.msra.mxu0 0.0
        %3212 = vmatprep.subr.mxu0 0.0
        %3213 = vmatpush1.msra.mxu0 0.0
        %3214 = vmatprep.subr.mxu0 0.0
        %3215 = vmatpush1.msra.mxu0 0.0
        %3216 = vmatprep.subr.mxu0 0.0
        %3217 = vmatpush1.msra.mxu0 0.0
        %3218 = vmatprep.subr.mxu0 0.0
        %3219 = vmatpush1.msra.mxu0 0.0
        %3220 = vmatprep.subr.mxu0 0.0
        %3221 = vmatpush1.msra.mxu0 0.0
        %3222 = vmatprep.subr.mxu0 0.0
        %3223 = vmatpush1.msra.mxu0 0.0
        %3224 = vmatprep.subr.mxu0 0.0
        %3225 = vmatpush1.msra.mxu0 0.0
        %3226 = vmatprep.subr.mxu0 0.0
        %3227 = vmatpush1.msra.mxu0 0.0
        %3228 = vmatprep.subr.mxu0 0.0
        %3229 = vmatpush1.msra.mxu0 0.0
        %3230 = vmatprep.subr.mxu0 0.0
        %3231 = vmatpush1.msra.mxu0 0.0
        %3232 = vmatprep.subr.mxu0 0.0
        %3233 = vmatpush1.msra.mxu0 0.0
        %3234 = vmatprep.subr.mxu0 0.0
        %3235 = vmatpush1.msra.mxu0 0.0
        %3236 = vmatprep.subr.mxu0 0.0
        %3237 = vmatpush1.msra.mxu0 0.0
        %3238 = vmatprep.subr.mxu0 0.0
        %3239 = vmatpush1.msra.mxu0 0.0
        %3240 = vmatprep.subr.mxu0 0.0
        %3241 = vmatpush1.msra.mxu0 0.0
        %3242 = vmatprep.subr.mxu0 0.0
        %3243 = vmatpush1.msra.mxu0 0.0
        %3244 = vmatprep.mubr.f32.mxu0 0.0
        %3245 = vmatmul.mubr.f32.gmra.mrb[0].mxu0 %v3127
        %v3246 = vpop.f32.mrb[0].mxu0
        %v3247 = vadd.f32 0.0, %v3246
        %v3248 = vpop.f32.mrb[0].mxu0
        %v3249 = vadd.f32 0.0, %v3248
        %3250 = vmatprep.mubr.f32.mxu0 0.0
        %3251 = vmatmul.mubr.f32.gmra.mrb[0].mxu0 %v3130
        %v3252 = vpop.f32.mrb[0].mxu0
        %v3253 = vadd.f32 0.0, %v3252
        %v3254 = vpop.f32.mrb[0].mxu0
        %v3255 = vadd.f32 0.0, %v3254
        %3256 = vmatprep.mubr.f32.mxu0 0.0
        %3257 = vmatmul.mubr.f32.gmra.mrb[0].mxu0 %v3133
        %v3258 = vpop.f32.mrb[0].mxu0
        %v3259 = vadd.f32 0.0, %v3258
        %v3260 = vpop.f32.mrb[0].mxu0
        %v3261 = vadd.f32 0.0, %v3260
        %3262 = vmatprep.mubr.f32.mxu0 0.0
        %3263 = vmatmul.mubr.f32.gmra.mrb[0].mxu0 %v3136
        %v3264 = vpop.f32.mrb[0].mxu0
        %v3265 = vadd.f32 0.0, %v3264
        %v3266 = vpop.f32.mrb[0].mxu0
        %v3267 = vadd.f32 0.0, %v3266
        %3268 = vmatprep.mubr.f32.mxu0 0.0
        %3269 = vmatmul.mubr.f32.gmra.mrb[0].mxu0 %v3139
        %v3270 = vpop.f32.mrb[0].mxu0
        %v3271 = vadd.f32 0.0, %v3270
        %v3272 = vpop.f32.mrb[0].mxu0
        %v3273 = vadd.f32 0.0, %v3272
        %3274 = vmatprep.mubr.f32.mxu0 0.0
        %3275 = vmatmul.mubr.f32.gmra.mrb[0].mxu0 %v3142
        %v3276 = vpop.f32.mrb[0].mxu0
        %v3277 = vadd.f32 0.0, %v3276
        %v3278 = vpop.f32.mrb[0].mxu0
        %v3279 = vadd.f32 0.0, %v3278
        %3280 = vmatprep.mubr.f32.mxu0 0.0
        %3281 = vmatmul.mubr.f32.gmra.mrb[0].mxu0 %v3145
        %v3282 = vpop.f32.mrb[0].mxu0
        %v3283 = vadd.f32 0.0, %v3282
        %v3284 = vpop.f32.mrb[0].mxu0
        %v3285 = vadd.f32 0.0, %v3284
        %3286 = vmatprep.mubr.f32.mxu0 0.0
        %3287 = vmatmul.mubr.f32.gmra.mrb[0].mxu0 %v3148
        %v3288 = vpop.f32.mrb[0].mxu0
        %v3289 = vadd.f32 0.0, %v3288
        %v3290 = vpop.f32.mrb[0].mxu0
        %v3291 = vadd.f32 0.0, %v3290
        %3292 = vmatprep.mubr.f32.mxu0 0.0
        %3293 = vmatmul.mubr.f32.gmra.mrb[0].mxu0 %v3151
        %v3294 = vpop.f32.mrb[0].mxu0
        %v3295 = vadd.f32 0.0, %v3294
        %v3296 = vpop.f32.mrb[0].mxu0
        %v3297 = vadd.f32 0.0, %v3296
        %3298 = vmatprep.mubr.f32.mxu0 0.0
        %3299 = vmatmul.mubr.f32.gmra.mrb[0].mxu0 %v3154
        %v3300 = vpop.f32.mrb[0].mxu0
        %v3301 = vadd.f32 0.0, %v3300
        %v3302 = vpop.f32.mrb[0].mxu0
        %v3303 = vadd.f32 0.0, %v3302
        %3304 = vmatprep.mubr.f32.mxu0 0.0
        %3305 = vmatmul.mubr.f32.gmra.mrb[0].mxu0 %v3157
        %v3306 = vpop.f32.mrb[0].mxu0
        %v3307 = vadd.f32 0.0, %v3306
        %v3308 = vpop.f32.mrb[0].mxu0
        %v3309 = vadd.f32 0.0, %v3308
        %3310 = vmatprep.mubr.f32.mxu0 0.0
        %3311 = vmatmul.mubr.f32.gmra.mrb[0].mxu0 %v3160
        %v3312 = vpop.f32.mrb[0].mxu0
        %v3313 = vadd.f32 0.0, %v3312
        %v3314 = vpop.f32.mrb[0].mxu0
        %v3315 = vadd.f32 0.0, %v3314
        %3316 = vmatprep.mubr.f32.mxu0 0.0
        %3317 = vmatmul.mubr.f32.gmra.mrb[0].mxu0 %v3163
        %v3318 = vpop.f32.mrb[0].mxu0
        %v3319 = vadd.f32 0.0, %v3318
        %v3320 = vpop.f32.mrb[0].mxu0
        %v3321 = vadd.f32 0.0, %v3320
        %3322 = vmatprep.mubr.f32.mxu0 0.0
        %3323 = vmatmul.mubr.f32.gmra.mrb[0].mxu0 %v3166
        %v3324 = vpop.f32.mrb[0].mxu0
        %v3325 = vadd.f32 0.0, %v3324
        %v3326 = vpop.f32.mrb[0].mxu0
        %v3327 = vadd.f32 0.0, %v3326
        %3328 = vmatprep.mubr.f32.mxu0 0.0
        %3329 = vmatmul.mubr.f32.gmra.mrb[0].mxu0 %v3169
        %v3330 = vpop.f32.mrb[0].mxu0
        %v3331 = vadd.f32 0.0, %v3330
        %v3332 = vpop.f32.mrb[0].mxu0
        %v3333 = vadd.f32 0.0, %v3332
        %3334 = vmatprep.mubr.f32.mxu0 0.0
        %3335 = vmatmul.mubr.f32.gmra.mrb[0].mxu0 %v3172
        %v3336 = vpop.f32.mrb[0].mxu0
        %v3337 = vadd.f32 0.0, %v3336
        %v3338 = vpop.f32.mrb[0].mxu0
        %v3339 = vadd.f32 0.0, %v3338
        %3340 = vdwg.mxu0
        %v3341 = vadd.f32 %v3077, %v3247
        %v3342 = vadd.f32 %v3078, %v3249
        %v3343 = vadd.f32 %v3079, %v3253
        %v3344 = vadd.f32 %v3080, %v3255
        %v3345 = vadd.f32 %v3081, %v3259
        %v3346 = vadd.f32 %v3082, %v3261
        %v3347 = vadd.f32 %v3083, %v3265
        %v3348 = vadd.f32 %v3084, %v3267
        %v3349 = vadd.f32 %v3085, %v3271
        %v3350 = vadd.f32 %v3086, %v3273
        %v3351 = vadd.f32 %v3087, %v3277
        %v3352 = vadd.f32 %v3088, %v3279
        %v3353 = vadd.f32 %v3089, %v3283
        %v3354 = vadd.f32 %v3090, %v3285
        %v3355 = vadd.f32 %v3091, %v3289
        %v3356 = vadd.f32 %v3092, %v3291
        %v3357 = vadd.f32 %v3093, %v3295
        %v3358 = vadd.f32 %v3094, %v3297
        %v3359 = vadd.f32 %v3095, %v3301
        %v3360 = vadd.f32 %v3096, %v3303
        %v3361 = vadd.f32 %v3097, %v3307
        %v3362 = vadd.f32 %v3098, %v3309
        %v3363 = vadd.f32 %v3099, %v3313
        %v3364 = vadd.f32 %v3100, %v3315
        %v3365 = vadd.f32 %v3101, %v3319
        %v3366 = vadd.f32 %v3102, %v3321
        %v3367 = vadd.f32 %v3103, %v3325
        %v3368 = vadd.f32 %v3104, %v3327
        %v3369 = vadd.f32 %v3105, %v3331
        %v3370 = vadd.f32 %v3106, %v3333
        %v3371 = vadd.f32 %v3107, %v3337
        %v3372 = vadd.f32 %v3108, %v3339
        %3373 = vst [vmem:[#allocation5] sm:$0xff] %v3341
        %3374 = vst [vmem:[#allocation5 + $0x8] sm:$0xff] %v3342
        %3375 = vst [vmem:[#allocation5 + $0x10] sm:$0xff] %v3343
        %3376 = vst [vmem:[#allocation5 + $0x18] sm:$0xff] %v3344
        %3377 = vst [vmem:[#allocation5 + $0x20] sm:$0xff] %v3345
        %3378 = vst [vmem:[#allocation5 + $0x28] sm:$0xff] %v3346
        %3379 = vst [vmem:[#allocation5 + $0x30] sm:$0xff] %v3347
        %3380 = vst [vmem:[#allocation5 + $0x38] sm:$0xff] %v3348
        %3381 = vst [vmem:[#allocation5 + $0x40] sm:$0xff] %v3349
        %3382 = vst [vmem:[#allocation5 + $0x48] sm:$0xff] %v3350
        %3383 = vst [vmem:[#allocation5 + $0x50] sm:$0xff] %v3351
        %3384 = vst [vmem:[#allocation5 + $0x58] sm:$0xff] %v3352
        %3385 = vst [vmem:[#allocation5 + $0x60] sm:$0xff] %v3353
        %3386 = vst [vmem:[#allocation5 + $0x68] sm:$0xff] %v3354
        %3387 = vst [vmem:[#allocation5 + $0x70] sm:$0xff] %v3355
        %3388 = vst [vmem:[#allocation5 + $0x78] sm:$0xff] %v3356
        %3389 = vst [vmem:[#allocation5 + $0x80] sm:$0xff] %v3357
        %3390 = vst [vmem:[#allocation5 + $0x88] sm:$0xff] %v3358
        %3391 = vst [vmem:[#allocation5 + $0x90] sm:$0xff] %v3359
        %3392 = vst [vmem:[#allocation5 + $0x98] sm:$0xff] %v3360
        %3393 = vst [vmem:[#allocation5 + $0xa0] sm:$0xff] %v3361
        %3394 = vst [vmem:[#allocation5 + $0xa8] sm:$0xff] %v3362
        %3395 = vst [vmem:[#allocation5 + $0xb0] sm:$0xff] %v3363
        %3396 = vst [vmem:[#allocation5 + $0xb8] sm:$0xff] %v3364
        %3397 = vst [vmem:[#allocation5 + $0xc0] sm:$0xff] %v3365
        %3398 = vst [vmem:[#allocation5 + $0xc8] sm:$0xff] %v3366
        %3399 = vst [vmem:[#allocation5 + $0xd0] sm:$0xff] %v3367
        %3400 = vst [vmem:[#allocation5 + $0xd8] sm:$0xff] %v3368
        %3401 = vst [vmem:[#allocation5 + $0xe0] sm:$0xff] %v3369
        %3402 = vst [vmem:[#allocation5 + $0xe8] sm:$0xff] %v3370
        %3403 = vst [vmem:[#allocation5 + $0xf0] sm:$0xff] %v3371
        %3404 = vst [vmem:[#allocation5 + $0xf8] sm:$0xff] %v3372
        %v3405 = vld [vmem:[#allocation2 + $0x8] sm:$0xff]
        %v3406 = vld [vmem:[#allocation2 + $0x10] sm:$0xff]
        %v3407 = vld [vmem:[#allocation2 + $0x18] sm:$0xff]
        %v3408 = vld [vmem:[#allocation2 + $0x28] sm:$0xff]
        %v3409 = vld [vmem:[#allocation2 + $0x30] sm:$0xff]
        %v3410 = vld [vmem:[#allocation2 + $0x38] sm:$0xff]
        %v3411 = vld [vmem:[#allocation2 + $0x48] sm:$0xff]
        %v3412 = vld [vmem:[#allocation2 + $0x50] sm:$0xff]
        %v3413 = vld [vmem:[#allocation2 + $0x58] sm:$0xff]
        %v3414 = vld [vmem:[#allocation2 + $0x68] sm:$0xff]
        %v3415 = vld [vmem:[#allocation2 + $0x70] sm:$0xff]
        %v3416 = vld [vmem:[#allocation2 + $0x78] sm:$0xff]
        %v3417 = vld [vmem:[#allocation2 + $0x88] sm:$0xf]
        %v3418 = vld [vmem:[#allocation2 + $0x90] sm:$0xf]
        %v3419 = vld [vmem:[#allocation2 + $0x98] sm:$0xf]
        %v3420 = vld [vmem:[#allocation5] sm:$0xff]
        %v3421 = vld [vmem:[#allocation5 + $0x8] sm:$0xff]
        %v3422 = vld [vmem:[#allocation5 + $0x10] sm:$0xff]
        %v3423 = vld [vmem:[#allocation5 + $0x18] sm:$0xff]
        %v3424 = vld [vmem:[#allocation5 + $0x20] sm:$0xff]
        %v3425 = vld [vmem:[#allocation5 + $0x28] sm:$0xff]
        %v3426 = vld [vmem:[#allocation5 + $0x30] sm:$0xff]
        %v3427 = vld [vmem:[#allocation5 + $0x38] sm:$0xff]
        %v3428 = vld [vmem:[#allocation5 + $0x40] sm:$0xff]
        %v3429 = vld [vmem:[#allocation5 + $0x48] sm:$0xff]
        %v3430 = vld [vmem:[#allocation5 + $0x50] sm:$0xff]
        %v3431 = vld [vmem:[#allocation5 + $0x58] sm:$0xff]
        %v3432 = vld [vmem:[#allocation5 + $0x60] sm:$0xff]
        %v3433 = vld [vmem:[#allocation5 + $0x68] sm:$0xff]
        %v3434 = vld [vmem:[#allocation5 + $0x70] sm:$0xff]
        %v3435 = vld [vmem:[#allocation5 + $0x78] sm:$0xff]
        %v3436 = vld [vmem:[#allocation5 + $0x80] sm:$0xff]
        %v3437 = vld [vmem:[#allocation5 + $0x88] sm:$0xff]
        %v3438 = vld [vmem:[#allocation5 + $0x90] sm:$0xff]
        %v3439 = vld [vmem:[#allocation5 + $0x98] sm:$0xff]
        %v3440 = vld [vmem:[#allocation5 + $0xa0] sm:$0xff]
        %v3441 = vld [vmem:[#allocation5 + $0xa8] sm:$0xff]
        %v3442 = vld [vmem:[#allocation5 + $0xb0] sm:$0xff]
        %v3443 = vld [vmem:[#allocation5 + $0xb8] sm:$0xff]
        %v3444 = vld [vmem:[#allocation5 + $0xc0] sm:$0xff]
        %v3445 = vld [vmem:[#allocation5 + $0xc8] sm:$0xff]
        %v3446 = vld [vmem:[#allocation5 + $0xd0] sm:$0xff]
        %v3447 = vld [vmem:[#allocation5 + $0xd8] sm:$0xff]
        %v3448 = vld [vmem:[#allocation5 + $0xe0] sm:$0xff]
        %v3449 = vld [vmem:[#allocation5 + $0xe8] sm:$0xff]
        %v3450 = vld [vmem:[#allocation5 + $0xf0] sm:$0xff]
        %v3451 = vld [vmem:[#allocation5 + $0xf8] sm:$0xff]
        %s3452 = scalar_lea.vmem %s3, 896
        %v3453 = vld [vmem:[%s3452] sm:$0xff]
        %v3454 = vld [vmem:[%s3452 + $0x8] sm:$0xff]
        %v3455 = vld [vmem:[%s3452 + $0x10] sm:$0xff]
        %v3456 = vld [vmem:[%s3452 + $0x18] sm:$0xff]
        %v3457 = vld [vmem:[%s3452 + $0x20] sm:$0xff]
        %v3458 = vld [vmem:[%s3452 + $0x28] sm:$0xff]
        %v3459 = vld [vmem:[%s3452 + $0x30] sm:$0xff]
        %v3460 = vld [vmem:[%s3452 + $0x38] sm:$0xff]
        %v3461 = vld [vmem:[%s3452 + $0x40] sm:$0xff]
        %v3462 = vld [vmem:[%s3452 + $0x48] sm:$0xff]
        %v3463 = vld [vmem:[%s3452 + $0x50] sm:$0xff]
        %v3464 = vld [vmem:[%s3452 + $0x58] sm:$0xff]
        %v3465 = vld [vmem:[%s3452 + $0x60] sm:$0xff]
        %v3466 = vld [vmem:[%s3452 + $0x68] sm:$0xff]
        %v3467 = vld [vmem:[%s3452 + $0x70] sm:$0xff]
        %v3468 = vld [vmem:[%s3452 + $0x78] sm:$0xff]
        %3484 = vrot.lane.b32.xlu0 %v3405, 112
        %v3485 = vpop.permute.xlu0 %3484
        %3486 = vrot.lane.b32.xlu0 %v3406, 112
        %v3487 = vpop.permute.xlu0 %3486
        %3488 = vrot.lane.b32.xlu0 %v3407, 112
        %v3489 = vpop.permute.xlu0 %3488
        %3490 = vrot.lane.b32.xlu0 %v3408, 112
        %v3491 = vpop.permute.xlu0 %3490
        %3492 = vrot.lane.b32.xlu0 %v3409, 112
        %v3493 = vpop.permute.xlu0 %3492
        %3494 = vrot.lane.b32.xlu0 %v3410, 112
        %v3495 = vpop.permute.xlu0 %3494
        %3496 = vrot.lane.b32.xlu0 %v3411, 112
        %v3497 = vpop.permute.xlu0 %3496
        %3498 = vrot.lane.b32.xlu0 %v3412, 112
        %v3499 = vpop.permute.xlu0 %3498
        %3500 = vrot.lane.b32.xlu0 %v3413, 112
        %v3501 = vpop.permute.xlu0 %3500
        %3502 = vrot.lane.b32.xlu0 %v3414, 112
        %v3503 = vpop.permute.xlu0 %3502
        %3504 = vrot.lane.b32.xlu0 %v3415, 112
        %v3505 = vpop.permute.xlu0 %3504
        %3506 = vrot.lane.b32.xlu0 %v3416, 112
        %v3507 = vpop.permute.xlu0 %3506
        %3508 = vrot.lane.b32.xlu0 %v3417, 112
        %v3509 = vpop.permute.xlu0 %3508
        %3510 = vrot.lane.b32.xlu0 %v3418, 112
        %v3511 = vpop.permute.xlu0 %3510
        %3512 = vrot.lane.b32.xlu0 %v3419, 112
        %v3513 = vpop.permute.xlu0 %3512
        %vm3514 = vcmask 916480
        %v3515 = vsel %vm3514, %v3485, %v3487
        %v3516 = vsel %vm3514, %v3487, %v3489
        %v3517 = vsel %vm3514, %v3491, %v3493
        %v3518 = vsel %vm3514, %v3493, %v3495
        %v3519 = vsel %vm3514, %v3497, %v3499
        %v3520 = vsel %vm3514, %v3499, %v3501
        %v3521 = vsel %vm3514, %v3503, %v3505
        %v3522 = vsel %vm3514, %v3505, %v3507
        %v3523 = vsel %vm3514, %v3509, %v3511
        %v3524 = vsel %vm3514, %v3511, %v3513
        %v3534 = vsel %vm703, %v3453, 0
        %v3537 = vsel %vm703, %v3454, 0
        %v3540 = vsel %vm703, %v3455, 0
        %v3543 = vsel %vm703, %v3456, 0
        %v3546 = vsel %vm703, %v3457, 0
        %v3549 = vsel %vm703, %v3458, 0
        %v3552 = vsel %vm703, %v3459, 0
        %v3555 = vsel %vm703, %v3460, 0
        %v3558 = vsel %vm703, %v3461, 0
        %v3561 = vsel %vm703, %v3462, 0
        %v3564 = vsel %vm703, %v3463, 0
        %v3567 = vsel %vm703, %v3464, 0
        %v3570 = vsel %vm703, %v3465, 0
        %v3573 = vsel %vm703, %v3466, 0
        %v3576 = vsel %vm703, %v3467, 0
        %v3579 = vsel %vm703, %v3468, 0
        %v3581 = vsel %vm752, %v3523, 0
        %v3583 = vsel %vm752, %v3524, 0
        %3585 = vmatprep.subr.mxu0 %v3516
        %3586 = vmatpush1.msra.mxu0 %v3515
        %3587 = vmatprep.subr.mxu0 %v3518
        %3588 = vmatpush1.msra.mxu0 %v3517
        %3589 = vmatprep.subr.mxu0 %v3520
        %3590 = vmatpush1.msra.mxu0 %v3519
        %3591 = vmatprep.subr.mxu0 %v3522
        %3592 = vmatpush1.msra.mxu0 %v3521
        %3593 = vmatprep.subr.mxu0 %v3583
        %3594 = vmatpush1.msra.mxu0 %v3581
        %3595 = vmatprep.subr.mxu0 0.0
        %3596 = vmatpush1.msra.mxu0 0.0
        %3597 = vmatprep.subr.mxu0 0.0
        %3598 = vmatpush1.msra.mxu0 0.0
        %3599 = vmatprep.subr.mxu0 0.0
        %3600 = vmatpush1.msra.mxu0 0.0
        %3601 = vmatprep.subr.mxu0 0.0
        %3602 = vmatpush1.msra.mxu0 0.0
        %3603 = vmatprep.subr.mxu0 0.0
        %3604 = vmatpush1.msra.mxu0 0.0
        %3605 = vmatprep.subr.mxu0 0.0
        %3606 = vmatpush1.msra.mxu0 0.0
        %3607 = vmatprep.subr.mxu0 0.0
        %3608 = vmatpush1.msra.mxu0 0.0
        %3609 = vmatprep.subr.mxu0 0.0
        %3610 = vmatpush1.msra.mxu0 0.0
        %3611 = vmatprep.subr.mxu0 0.0
        %3612 = vmatpush1.msra.mxu0 0.0
        %3613 = vmatprep.subr.mxu0 0.0
        %3614 = vmatpush1.msra.mxu0 0.0
        %3615 = vmatprep.subr.mxu0 0.0
        %3616 = vmatpush1.msra.mxu0 0.0
        %3617 = vmatprep.subr.mxu0 0.0
        %3618 = vmatpush1.msra.mxu0 0.0
        %3619 = vmatprep.subr.mxu0 0.0
        %3620 = vmatpush1.msra.mxu0 0.0
        %3621 = vmatprep.subr.mxu0 0.0
        %3622 = vmatpush1.msra.mxu0 0.0
        %3623 = vmatprep.subr.mxu0 0.0
        %3624 = vmatpush1.msra.mxu0 0.0
        %3625 = vmatprep.subr.mxu0 0.0
        %3626 = vmatpush1.msra.mxu0 0.0
        %3627 = vmatprep.subr.mxu0 0.0
        %3628 = vmatpush1.msra.mxu0 0.0
        %3629 = vmatprep.subr.mxu0 0.0
        %3630 = vmatpush1.msra.mxu0 0.0
        %3631 = vmatprep.subr.mxu0 0.0
        %3632 = vmatpush1.msra.mxu0 0.0
        %3633 = vmatprep.subr.mxu0 0.0
        %3634 = vmatpush1.msra.mxu0 0.0
        %3635 = vmatprep.subr.mxu0 0.0
        %3636 = vmatpush1.msra.mxu0 0.0
        %3637 = vmatprep.subr.mxu0 0.0
        %3638 = vmatpush1.msra.mxu0 0.0
        %3639 = vmatprep.subr.mxu0 0.0
        %3640 = vmatpush1.msra.mxu0 0.0
        %3641 = vmatprep.subr.mxu0 0.0
        %3642 = vmatpush1.msra.mxu0 0.0
        %3643 = vmatprep.subr.mxu0 0.0
        %3644 = vmatpush1.msra.mxu0 0.0
        %3645 = vmatprep.subr.mxu0 0.0
        %3646 = vmatpush1.msra.mxu0 0.0
        %3647 = vmatprep.subr.mxu0 0.0
        %3648 = vmatpush1.msra.mxu0 0.0
        %3649 = vmatprep.mubr.f32.mxu0 0.0
        %3650 = vmatmul.mubr.f32.gmra.mrb[0].mxu0 %v3534
        %v3651 = vpop.f32.mrb[0].mxu0
        %v3652 = vadd.f32 0.0, %v3651
        %v3653 = vpop.f32.mrb[0].mxu0
        %v3654 = vadd.f32 0.0, %v3653
        %3655 = vmatprep.mubr.f32.mxu0 0.0
        %3656 = vmatmul.mubr.f32.gmra.mrb[0].mxu0 %v3537
        %v3657 = vpop.f32.mrb[0].mxu0
        %v3658 = vadd.f32 0.0, %v3657
        %v3659 = vpop.f32.mrb[0].mxu0
        %v3660 = vadd.f32 0.0, %v3659
        %3661 = vmatprep.mubr.f32.mxu0 0.0
        %3662 = vmatmul.mubr.f32.gmra.mrb[0].mxu0 %v3540
        %v3663 = vpop.f32.mrb[0].mxu0
        %v3664 = vadd.f32 0.0, %v3663
        %v3665 = vpop.f32.mrb[0].mxu0
        %v3666 = vadd.f32 0.0, %v3665
        %3667 = vmatprep.mubr.f32.mxu0 0.0
        %3668 = vmatmul.mubr.f32.gmra.mrb[0].mxu0 %v3543
        %v3669 = vpop.f32.mrb[0].mxu0
        %v3670 = vadd.f32 0.0, %v3669
        %v3671 = vpop.f32.mrb[0].mxu0
        %v3672 = vadd.f32 0.0, %v3671
        %3673 = vmatprep.mubr.f32.mxu0 0.0
        %3674 = vmatmul.mubr.f32.gmra.mrb[0].mxu0 %v3546
        %v3675 = vpop.f32.mrb[0].mxu0
        %v3676 = vadd.f32 0.0, %v3675
        %v3677 = vpop.f32.mrb[0].mxu0
        %v3678 = vadd.f32 0.0, %v3677
        %3679 = vmatprep.mubr.f32.mxu0 0.0
        %3680 = vmatmul.mubr.f32.gmra.mrb[0].mxu0 %v3549
        %v3681 = vpop.f32.mrb[0].mxu0
        %v3682 = vadd.f32 0.0, %v3681
        %v3683 = vpop.f32.mrb[0].mxu0
        %v3684 = vadd.f32 0.0, %v3683
        %3685 = vmatprep.mubr.f32.mxu0 0.0
        %3686 = vmatmul.mubr.f32.gmra.mrb[0].mxu0 %v3552
        %v3687 = vpop.f32.mrb[0].mxu0
        %v3688 = vadd.f32 0.0, %v3687
        %v3689 = vpop.f32.mrb[0].mxu0
        %v3690 = vadd.f32 0.0, %v3689
        %3691 = vmatprep.mubr.f32.mxu0 0.0
        %3692 = vmatmul.mubr.f32.gmra.mrb[0].mxu0 %v3555
        %v3693 = vpop.f32.mrb[0].mxu0
        %v3694 = vadd.f32 0.0, %v3693
        %v3695 = vpop.f32.mrb[0].mxu0
        %v3696 = vadd.f32 0.0, %v3695
        %3697 = vmatprep.mubr.f32.mxu0 0.0
        %3698 = vmatmul.mubr.f32.gmra.mrb[0].mxu0 %v3558
        %v3699 = vpop.f32.mrb[0].mxu0
        %v3700 = vadd.f32 0.0, %v3699
        %v3701 = vpop.f32.mrb[0].mxu0
        %v3702 = vadd.f32 0.0, %v3701
        %3703 = vmatprep.mubr.f32.mxu0 0.0
        %3704 = vmatmul.mubr.f32.gmra.mrb[0].mxu0 %v3561
        %v3705 = vpop.f32.mrb[0].mxu0
        %v3706 = vadd.f32 0.0, %v3705
        %v3707 = vpop.f32.mrb[0].mxu0
        %v3708 = vadd.f32 0.0, %v3707
        %3709 = vmatprep.mubr.f32.mxu0 0.0
        %3710 = vmatmul.mubr.f32.gmra.mrb[0].mxu0 %v3564
        %v3711 = vpop.f32.mrb[0].mxu0
        %v3712 = vadd.f32 0.0, %v3711
        %v3713 = vpop.f32.mrb[0].mxu0
        %v3714 = vadd.f32 0.0, %v3713
        %3715 = vmatprep.mubr.f32.mxu0 0.0
        %3716 = vmatmul.mubr.f32.gmra.mrb[0].mxu0 %v3567
        %v3717 = vpop.f32.mrb[0].mxu0
        %v3718 = vadd.f32 0.0, %v3717
        %v3719 = vpop.f32.mrb[0].mxu0
        %v3720 = vadd.f32 0.0, %v3719
        %3721 = vmatprep.mubr.f32.mxu0 0.0
        %3722 = vmatmul.mubr.f32.gmra.mrb[0].mxu0 %v3570
        %v3723 = vpop.f32.mrb[0].mxu0
        %v3724 = vadd.f32 0.0, %v3723
        %v3725 = vpop.f32.mrb[0].mxu0
        %v3726 = vadd.f32 0.0, %v3725
        %3727 = vmatprep.mubr.f32.mxu0 0.0
        %3728 = vmatmul.mubr.f32.gmra.mrb[0].mxu0 %v3573
        %v3729 = vpop.f32.mrb[0].mxu0
        %v3730 = vadd.f32 0.0, %v3729
        %v3731 = vpop.f32.mrb[0].mxu0
        %v3732 = vadd.f32 0.0, %v3731
        %3733 = vmatprep.mubr.f32.mxu0 0.0
        %3734 = vmatmul.mubr.f32.gmra.mrb[0].mxu0 %v3576
        %v3735 = vpop.f32.mrb[0].mxu0
        %v3736 = vadd.f32 0.0, %v3735
        %v3737 = vpop.f32.mrb[0].mxu0
        %v3738 = vadd.f32 0.0, %v3737
        %3739 = vmatprep.mubr.f32.mxu0 0.0
        %3740 = vmatmul.mubr.f32.gmra.mrb[0].mxu0 %v3579
        %v3741 = vpop.f32.mrb[0].mxu0
        %v3742 = vadd.f32 0.0, %v3741
        %v3743 = vpop.f32.mrb[0].mxu0
        %v3744 = vadd.f32 0.0, %v3743
        %3745 = vdwg.mxu0
        %v3746 = vadd.f32 %v3420, %v3652
        %v3747 = vadd.f32 %v3421, %v3654
        %v3748 = vadd.f32 %v3422, %v3658
        %v3749 = vadd.f32 %v3423, %v3660
        %v3750 = vadd.f32 %v3424, %v3664
        %v3751 = vadd.f32 %v3425, %v3666
        %v3752 = vadd.f32 %v3426, %v3670
        %v3753 = vadd.f32 %v3427, %v3672
        %v3754 = vadd.f32 %v3428, %v3676
        %v3755 = vadd.f32 %v3429, %v3678
        %v3756 = vadd.f32 %v3430, %v3682
        %v3757 = vadd.f32 %v3431, %v3684
        %v3758 = vadd.f32 %v3432, %v3688
        %v3759 = vadd.f32 %v3433, %v3690
        %v3760 = vadd.f32 %v3434, %v3694
        %v3761 = vadd.f32 %v3435, %v3696
        %v3762 = vadd.f32 %v3436, %v3700
        %v3763 = vadd.f32 %v3437, %v3702
        %v3764 = vadd.f32 %v3438, %v3706
        %v3765 = vadd.f32 %v3439, %v3708
        %v3766 = vadd.f32 %v3440, %v3712
        %v3767 = vadd.f32 %v3441, %v3714
        %v3768 = vadd.f32 %v3442, %v3718
        %v3769 = vadd.f32 %v3443, %v3720
        %v3770 = vadd.f32 %v3444, %v3724
        %v3771 = vadd.f32 %v3445, %v3726
        %v3772 = vadd.f32 %v3446, %v3730
        %v3773 = vadd.f32 %v3447, %v3732
        %v3774 = vadd.f32 %v3448, %v3736
        %v3775 = vadd.f32 %v3449, %v3738
        %v3776 = vadd.f32 %v3450, %v3742
        %v3777 = vadd.f32 %v3451, %v3744
        %3778 = vst [vmem:[#allocation5] sm:$0xff] %v3746
        %3779 = vst [vmem:[#allocation5 + $0x8] sm:$0xff] %v3747
        %3780 = vst [vmem:[#allocation5 + $0x10] sm:$0xff] %v3748
        %3781 = vst [vmem:[#allocation5 + $0x18] sm:$0xff] %v3749
        %3782 = vst [vmem:[#allocation5 + $0x20] sm:$0xff] %v3750
        %3783 = vst [vmem:[#allocation5 + $0x28] sm:$0xff] %v3751
        %3784 = vst [vmem:[#allocation5 + $0x30] sm:$0xff] %v3752
        %3785 = vst [vmem:[#allocation5 + $0x38] sm:$0xff] %v3753
        %3786 = vst [vmem:[#allocation5 + $0x40] sm:$0xff] %v3754
        %3787 = vst [vmem:[#allocation5 + $0x48] sm:$0xff] %v3755
        %3788 = vst [vmem:[#allocation5 + $0x50] sm:$0xff] %v3756
        %3789 = vst [vmem:[#allocation5 + $0x58] sm:$0xff] %v3757
        %3790 = vst [vmem:[#allocation5 + $0x60] sm:$0xff] %v3758
        %3791 = vst [vmem:[#allocation5 + $0x68] sm:$0xff] %v3759
        %3792 = vst [vmem:[#allocation5 + $0x70] sm:$0xff] %v3760
        %3793 = vst [vmem:[#allocation5 + $0x78] sm:$0xff] %v3761
        %3794 = vst [vmem:[#allocation5 + $0x80] sm:$0xff] %v3762
        %3795 = vst [vmem:[#allocation5 + $0x88] sm:$0xff] %v3763
        %3796 = vst [vmem:[#allocation5 + $0x90] sm:$0xff] %v3764
        %3797 = vst [vmem:[#allocation5 + $0x98] sm:$0xff] %v3765
        %3798 = vst [vmem:[#allocation5 + $0xa0] sm:$0xff] %v3766
        %3799 = vst [vmem:[#allocation5 + $0xa8] sm:$0xff] %v3767
        %3800 = vst [vmem:[#allocation5 + $0xb0] sm:$0xff] %v3768
        %3801 = vst [vmem:[#allocation5 + $0xb8] sm:$0xff] %v3769
        %3802 = vst [vmem:[#allocation5 + $0xc0] sm:$0xff] %v3770
        %3803 = vst [vmem:[#allocation5 + $0xc8] sm:$0xff] %v3771
        %3804 = vst [vmem:[#allocation5 + $0xd0] sm:$0xff] %v3772
        %3805 = vst [vmem:[#allocation5 + $0xd8] sm:$0xff] %v3773
        %3806 = vst [vmem:[#allocation5 + $0xe0] sm:$0xff] %v3774
        %3807 = vst [vmem:[#allocation5 + $0xe8] sm:$0xff] %v3775
        %3808 = vst [vmem:[#allocation5 + $0xf0] sm:$0xff] %v3776
        %3809 = vst [vmem:[#allocation5 + $0xf8] sm:$0xff] %v3777
        %v3810 = vld [vmem:[#allocation2 + $0x8] sm:$0xff]
        %v3811 = vld [vmem:[#allocation2 + $0x10] sm:$0xff]
        %v3812 = vld [vmem:[#allocation2 + $0x18] sm:$0xff]
        %v3813 = vld [vmem:[#allocation2 + $0x28] sm:$0xff]
        %v3814 = vld [vmem:[#allocation2 + $0x30] sm:$0xff]
        %v3815 = vld [vmem:[#allocation2 + $0x38] sm:$0xff]
        %v3816 = vld [vmem:[#allocation2 + $0x48] sm:$0xff]
        %v3817 = vld [vmem:[#allocation2 + $0x50] sm:$0xff]
        %v3818 = vld [vmem:[#allocation2 + $0x58] sm:$0xff]
        %v3819 = vld [vmem:[#allocation2 + $0x68] sm:$0xff]
        %v3820 = vld [vmem:[#allocation2 + $0x70] sm:$0xff]
        %v3821 = vld [vmem:[#allocation2 + $0x78] sm:$0xff]
        %v3822 = vld [vmem:[#allocation2 + $0x88] sm:$0xf]
        %v3823 = vld [vmem:[#allocation2 + $0x90] sm:$0xf]
        %v3824 = vld [vmem:[#allocation2 + $0x98] sm:$0xf]
        %3840 = vrot.lane.b32.xlu0 %v3810, 111
        %v3841 = vpop.permute.xlu0 %3840
        %3842 = vrot.lane.b32.xlu0 %v3811, 111
        %v3843 = vpop.permute.xlu0 %3842
        %3844 = vrot.lane.b32.xlu0 %v3812, 111
        %v3845 = vpop.permute.xlu0 %3844
        %3846 = vrot.lane.b32.xlu0 %v3813, 111
        %v3847 = vpop.permute.xlu0 %3846
        %3848 = vrot.lane.b32.xlu0 %v3814, 111
        %v3849 = vpop.permute.xlu0 %3848
        %3850 = vrot.lane.b32.xlu0 %v3815, 111
        %v3851 = vpop.permute.xlu0 %3850
        %3852 = vrot.lane.b32.xlu0 %v3816, 111
        %v3853 = vpop.permute.xlu0 %3852
        %3854 = vrot.lane.b32.xlu0 %v3817, 111
        %v3855 = vpop.permute.xlu0 %3854
        %3856 = vrot.lane.b32.xlu0 %v3818, 111
        %v3857 = vpop.permute.xlu0 %3856
        %3858 = vrot.lane.b32.xlu0 %v3819, 111
        %v3859 = vpop.permute.xlu0 %3858
        %3860 = vrot.lane.b32.xlu0 %v3820, 111
        %v3861 = vpop.permute.xlu0 %3860
        %3862 = vrot.lane.b32.xlu0 %v3821, 111
        %v3863 = vpop.permute.xlu0 %3862
        %3864 = vrot.lane.b32.xlu0 %v3822, 111
        %v3865 = vpop.permute.xlu0 %3864
        %3866 = vrot.lane.b32.xlu0 %v3823, 111
        %v3867 = vpop.permute.xlu0 %3866
        %3868 = vrot.lane.b32.xlu0 %v3824, 111
        %v3869 = vpop.permute.xlu0 %3868
        %vm3870 = vcmask 908288
        %v3871 = vsel %vm3870, %v3841, %v3843
        %v3872 = vsel %vm3870, %v3843, %v3845
        %v3873 = vsel %vm3870, %v3847, %v3849
        %v3874 = vsel %vm3870, %v3849, %v3851
        %v3875 = vsel %vm3870, %v3853, %v3855
        %v3876 = vsel %vm3870, %v3855, %v3857
        %v3877 = vsel %vm3870, %v3859, %v3861
        %v3878 = vsel %vm3870, %v3861, %v3863
        %v3879 = vsel %vm3870, %v3865, %v3867
        %v3880 = vsel %vm3870, %v3867, %v3869
        %v3891 = vsel %vm1404, 0.0, %v3871
        %v3892 = vsel %vm1405, 0.0, %v3872
        %v3893 = vsel %vm1404, 0.0, %v3873
        %v3894 = vsel %vm1405, 0.0, %v3874
        %v3895 = vsel %vm1404, 0.0, %v3875
        %v3896 = vsel %vm1405, 0.0, %v3876
        %v3897 = vsel %vm1404, 0.0, %v3877
        %v3898 = vsel %vm1405, 0.0, %v3878
        %v3899 = vsel %vm1404, 0.0, %v3879
        %v3900 = vsel %vm1405, 0.0, %v3880
        %v3901 = vld [vmem:[#allocation5] sm:$0xff]
        %v3902 = vld [vmem:[#allocation5 + $0x8] sm:$0xff]
        %v3903 = vld [vmem:[#allocation5 + $0x10] sm:$0xff]
        %v3904 = vld [vmem:[#allocation5 + $0x18] sm:$0xff]
        %v3905 = vld [vmem:[#allocation5 + $0x20] sm:$0xff]
        %v3906 = vld [vmem:[#allocation5 + $0x28] sm:$0xff]
        %v3907 = vld [vmem:[#allocation5 + $0x30] sm:$0xff]
        %v3908 = vld [vmem:[#allocation5 + $0x38] sm:$0xff]
        %v3909 = vld [vmem:[#allocation5 + $0x40] sm:$0xff]
        %v3910 = vld [vmem:[#allocation5 + $0x48] sm:$0xff]
        %v3911 = vld [vmem:[#allocation5 + $0x50] sm:$0xff]
        %v3912 = vld [vmem:[#allocation5 + $0x58] sm:$0xff]
        %v3913 = vld [vmem:[#allocation5 + $0x60] sm:$0xff]
        %v3914 = vld [vmem:[#allocation5 + $0x68] sm:$0xff]
        %v3915 = vld [vmem:[#allocation5 + $0x70] sm:$0xff]
        %v3916 = vld [vmem:[#allocation5 + $0x78] sm:$0xff]
        %v3917 = vld [vmem:[#allocation5 + $0x80] sm:$0xff]
        %v3918 = vld [vmem:[#allocation5 + $0x88] sm:$0xff]
        %v3919 = vld [vmem:[#allocation5 + $0x90] sm:$0xff]
        %v3920 = vld [vmem:[#allocation5 + $0x98] sm:$0xff]
        %v3921 = vld [vmem:[#allocation5 + $0xa0] sm:$0xff]
        %v3922 = vld [vmem:[#allocation5 + $0xa8] sm:$0xff]
        %v3923 = vld [vmem:[#allocation5 + $0xb0] sm:$0xff]
        %v3924 = vld [vmem:[#allocation5 + $0xb8] sm:$0xff]
        %v3925 = vld [vmem:[#allocation5 + $0xc0] sm:$0xff]
        %v3926 = vld [vmem:[#allocation5 + $0xc8] sm:$0xff]
        %v3927 = vld [vmem:[#allocation5 + $0xd0] sm:$0xff]
        %v3928 = vld [vmem:[#allocation5 + $0xd8] sm:$0xff]
        %v3929 = vld [vmem:[#allocation5 + $0xe0] sm:$0xff]
        %v3930 = vld [vmem:[#allocation5 + $0xe8] sm:$0xff]
        %v3931 = vld [vmem:[#allocation5 + $0xf0] sm:$0xff]
        %v3932 = vld [vmem:[#allocation5 + $0xf8] sm:$0xff]
        %s3933 = scalar_lea.vmem %s3, 1024
        %v3934 = vld [vmem:[%s3933] sm:$0xff]
        %v3935 = vld [vmem:[%s3933 + $0x8] sm:$0xff]
        %v3936 = vld [vmem:[%s3933 + $0x10] sm:$0xff]
        %v3937 = vld [vmem:[%s3933 + $0x18] sm:$0xff]
        %v3938 = vld [vmem:[%s3933 + $0x20] sm:$0xff]
        %v3939 = vld [vmem:[%s3933 + $0x28] sm:$0xff]
        %v3940 = vld [vmem:[%s3933 + $0x30] sm:$0xff]
        %v3941 = vld [vmem:[%s3933 + $0x38] sm:$0xff]
        %v3942 = vld [vmem:[%s3933 + $0x40] sm:$0xff]
        %v3943 = vld [vmem:[%s3933 + $0x48] sm:$0xff]
        %v3944 = vld [vmem:[%s3933 + $0x50] sm:$0xff]
        %v3945 = vld [vmem:[%s3933 + $0x58] sm:$0xff]
        %v3946 = vld [vmem:[%s3933 + $0x60] sm:$0xff]
        %v3947 = vld [vmem:[%s3933 + $0x68] sm:$0xff]
        %v3948 = vld [vmem:[%s3933 + $0x70] sm:$0xff]
        %v3949 = vld [vmem:[%s3933 + $0x78] sm:$0xff]
        %v3951 = vsel %vm703, %v3934, 0
        %v3954 = vsel %vm703, %v3935, 0
        %v3957 = vsel %vm703, %v3936, 0
        %v3960 = vsel %vm703, %v3937, 0
        %v3963 = vsel %vm703, %v3938, 0
        %v3966 = vsel %vm703, %v3939, 0
        %v3969 = vsel %vm703, %v3940, 0
        %v3972 = vsel %vm703, %v3941, 0
        %v3975 = vsel %vm703, %v3942, 0
        %v3978 = vsel %vm703, %v3943, 0
        %v3981 = vsel %vm703, %v3944, 0
        %v3984 = vsel %vm703, %v3945, 0
        %v3987 = vsel %vm703, %v3946, 0
        %v3990 = vsel %vm703, %v3947, 0
        %v3993 = vsel %vm703, %v3948, 0
        %v3996 = vsel %vm703, %v3949, 0
        %v3999 = vsel %vm752, %v3899, 0
        %v4002 = vsel %vm752, %v3900, 0
        %4004 = vmatprep.subr.mxu0 %v3892
        %4005 = vmatpush1.msra.mxu0 %v3891
        %4006 = vmatprep.subr.mxu0 %v3894
        %4007 = vmatpush1.msra.mxu0 %v3893
        %4008 = vmatprep.subr.mxu0 %v3896
        %4009 = vmatpush1.msra.mxu0 %v3895
        %4010 = vmatprep.subr.mxu0 %v3898
        %4011 = vmatpush1.msra.mxu0 %v3897
        %4012 = vmatprep.subr.mxu0 %v4002
        %4013 = vmatpush1.msra.mxu0 %v3999
        %4014 = vmatprep.subr.mxu0 0.0
        %4015 = vmatpush1.msra.mxu0 0.0
        %4016 = vmatprep.subr.mxu0 0.0
        %4017 = vmatpush1.msra.mxu0 0.0
        %4018 = vmatprep.subr.mxu0 0.0
        %4019 = vmatpush1.msra.mxu0 0.0
        %4020 = vmatprep.subr.mxu0 0.0
        %4021 = vmatpush1.msra.mxu0 0.0
        %4022 = vmatprep.subr.mxu0 0.0
        %4023 = vmatpush1.msra.mxu0 0.0
        %4024 = vmatprep.subr.mxu0 0.0
        %4025 = vmatpush1.msra.mxu0 0.0
        %4026 = vmatprep.subr.mxu0 0.0
        %4027 = vmatpush1.msra.mxu0 0.0
        %4028 = vmatprep.subr.mxu0 0.0
        %4029 = vmatpush1.msra.mxu0 0.0
        %4030 = vmatprep.subr.mxu0 0.0
        %4031 = vmatpush1.msra.mxu0 0.0
        %4032 = vmatprep.subr.mxu0 0.0
        %4033 = vmatpush1.msra.mxu0 0.0
        %4034 = vmatprep.subr.mxu0 0.0
        %4035 = vmatpush1.msra.mxu0 0.0
        %4036 = vmatprep.subr.mxu0 0.0
        %4037 = vmatpush1.msra.mxu0 0.0
        %4038 = vmatprep.subr.mxu0 0.0
        %4039 = vmatpush1.msra.mxu0 0.0
        %4040 = vmatprep.subr.mxu0 0.0
        %4041 = vmatpush1.msra.mxu0 0.0
        %4042 = vmatprep.subr.mxu0 0.0
        %4043 = vmatpush1.msra.mxu0 0.0
        %4044 = vmatprep.subr.mxu0 0.0
        %4045 = vmatpush1.msra.mxu0 0.0
        %4046 = vmatprep.subr.mxu0 0.0
        %4047 = vmatpush1.msra.mxu0 0.0
        %4048 = vmatprep.subr.mxu0 0.0
        %4049 = vmatpush1.msra.mxu0 0.0
        %4050 = vmatprep.subr.mxu0 0.0
        %4051 = vmatpush1.msra.mxu0 0.0
        %4052 = vmatprep.subr.mxu0 0.0
        %4053 = vmatpush1.msra.mxu0 0.0
        %4054 = vmatprep.subr.mxu0 0.0
        %4055 = vmatpush1.msra.mxu0 0.0
        %4056 = vmatprep.subr.mxu0 0.0
        %4057 = vmatpush1.msra.mxu0 0.0
        %4058 = vmatprep.subr.mxu0 0.0
        %4059 = vmatpush1.msra.mxu0 0.0
        %4060 = vmatprep.subr.mxu0 0.0
        %4061 = vmatpush1.msra.mxu0 0.0
        %4062 = vmatprep.subr.mxu0 0.0
        %4063 = vmatpush1.msra.mxu0 0.0
        %4064 = vmatprep.subr.mxu0 0.0
        %4065 = vmatpush1.msra.mxu0 0.0
        %4066 = vmatprep.subr.mxu0 0.0
        %4067 = vmatpush1.msra.mxu0 0.0
        %4068 = vmatprep.mubr.f32.mxu0 0.0
        %4069 = vmatmul.mubr.f32.gmra.mrb[0].mxu0 %v3951
        %v4070 = vpop.f32.mrb[0].mxu0
        %v4071 = vadd.f32 0.0, %v4070
        %v4072 = vpop.f32.mrb[0].mxu0
        %v4073 = vadd.f32 0.0, %v4072
        %4074 = vmatprep.mubr.f32.mxu0 0.0
        %4075 = vmatmul.mubr.f32.gmra.mrb[0].mxu0 %v3954
        %v4076 = vpop.f32.mrb[0].mxu0
        %v4077 = vadd.f32 0.0, %v4076
        %v4078 = vpop.f32.mrb[0].mxu0
        %v4079 = vadd.f32 0.0, %v4078
        %4080 = vmatprep.mubr.f32.mxu0 0.0
        %4081 = vmatmul.mubr.f32.gmra.mrb[0].mxu0 %v3957
        %v4082 = vpop.f32.mrb[0].mxu0
        %v4083 = vadd.f32 0.0, %v4082
        %v4084 = vpop.f32.mrb[0].mxu0
        %v4085 = vadd.f32 0.0, %v4084
        %4086 = vmatprep.mubr.f32.mxu0 0.0
        %4087 = vmatmul.mubr.f32.gmra.mrb[0].mxu0 %v3960
        %v4088 = vpop.f32.mrb[0].mxu0
        %v4089 = vadd.f32 0.0, %v4088
        %v4090 = vpop.f32.mrb[0].mxu0
        %v4091 = vadd.f32 0.0, %v4090
        %4092 = vmatprep.mubr.f32.mxu0 0.0
        %4093 = vmatmul.mubr.f32.gmra.mrb[0].mxu0 %v3963
        %v4094 = vpop.f32.mrb[0].mxu0
        %v4095 = vadd.f32 0.0, %v4094
        %v4096 = vpop.f32.mrb[0].mxu0
        %v4097 = vadd.f32 0.0, %v4096
        %4098 = vmatprep.mubr.f32.mxu0 0.0
        %4099 = vmatmul.mubr.f32.gmra.mrb[0].mxu0 %v3966
        %v4100 = vpop.f32.mrb[0].mxu0
        %v4101 = vadd.f32 0.0, %v4100
        %v4102 = vpop.f32.mrb[0].mxu0
        %v4103 = vadd.f32 0.0, %v4102
        %4104 = vmatprep.mubr.f32.mxu0 0.0
        %4105 = vmatmul.mubr.f32.gmra.mrb[0].mxu0 %v3969
        %v4106 = vpop.f32.mrb[0].mxu0
        %v4107 = vadd.f32 0.0, %v4106
        %v4108 = vpop.f32.mrb[0].mxu0
        %v4109 = vadd.f32 0.0, %v4108
        %4110 = vmatprep.mubr.f32.mxu0 0.0
        %4111 = vmatmul.mubr.f32.gmra.mrb[0].mxu0 %v3972
        %v4112 = vpop.f32.mrb[0].mxu0
        %v4113 = vadd.f32 0.0, %v4112
        %v4114 = vpop.f32.mrb[0].mxu0
        %v4115 = vadd.f32 0.0, %v4114
        %4116 = vmatprep.mubr.f32.mxu0 0.0
        %4117 = vmatmul.mubr.f32.gmra.mrb[0].mxu0 %v3975
        %v4118 = vpop.f32.mrb[0].mxu0
        %v4119 = vadd.f32 0.0, %v4118
        %v4120 = vpop.f32.mrb[0].mxu0
        %v4121 = vadd.f32 0.0, %v4120
        %4122 = vmatprep.mubr.f32.mxu0 0.0
        %4123 = vmatmul.mubr.f32.gmra.mrb[0].mxu0 %v3978
        %v4124 = vpop.f32.mrb[0].mxu0
        %v4125 = vadd.f32 0.0, %v4124
        %v4126 = vpop.f32.mrb[0].mxu0
        %v4127 = vadd.f32 0.0, %v4126
        %4128 = vmatprep.mubr.f32.mxu0 0.0
        %4129 = vmatmul.mubr.f32.gmra.mrb[0].mxu0 %v3981
        %v4130 = vpop.f32.mrb[0].mxu0
        %v4131 = vadd.f32 0.0, %v4130
        %v4132 = vpop.f32.mrb[0].mxu0
        %v4133 = vadd.f32 0.0, %v4132
        %4134 = vmatprep.mubr.f32.mxu0 0.0
        %4135 = vmatmul.mubr.f32.gmra.mrb[0].mxu0 %v3984
        %v4136 = vpop.f32.mrb[0].mxu0
        %v4137 = vadd.f32 0.0, %v4136
        %v4138 = vpop.f32.mrb[0].mxu0
        %v4139 = vadd.f32 0.0, %v4138
        %4140 = vmatprep.mubr.f32.mxu0 0.0
        %4141 = vmatmul.mubr.f32.gmra.mrb[0].mxu0 %v3987
        %v4142 = vpop.f32.mrb[0].mxu0
        %v4143 = vadd.f32 0.0, %v4142
        %v4144 = vpop.f32.mrb[0].mxu0
        %v4145 = vadd.f32 0.0, %v4144
        %4146 = vmatprep.mubr.f32.mxu0 0.0
        %4147 = vmatmul.mubr.f32.gmra.mrb[0].mxu0 %v3990
        %v4148 = vpop.f32.mrb[0].mxu0
        %v4149 = vadd.f32 0.0, %v4148
        %v4150 = vpop.f32.mrb[0].mxu0
        %v4151 = vadd.f32 0.0, %v4150
        %4152 = vmatprep.mubr.f32.mxu0 0.0
        %4153 = vmatmul.mubr.f32.gmra.mrb[0].mxu0 %v3993
        %v4154 = vpop.f32.mrb[0].mxu0
        %v4155 = vadd.f32 0.0, %v4154
        %v4156 = vpop.f32.mrb[0].mxu0
        %v4157 = vadd.f32 0.0, %v4156
        %4158 = vmatprep.mubr.f32.mxu0 0.0
        %4159 = vmatmul.mubr.f32.gmra.mrb[0].mxu0 %v3996
        %v4160 = vpop.f32.mrb[0].mxu0
        %v4161 = vadd.f32 0.0, %v4160
        %v4162 = vpop.f32.mrb[0].mxu0
        %v4163 = vadd.f32 0.0, %v4162
        %4164 = vdwg.mxu0
        %v4165 = vadd.f32 %v3901, %v4071
        %v4166 = vadd.f32 %v3902, %v4073
        %v4167 = vadd.f32 %v3903, %v4077
        %v4168 = vadd.f32 %v3904, %v4079
        %v4169 = vadd.f32 %v3905, %v4083
        %v4170 = vadd.f32 %v3906, %v4085
        %v4171 = vadd.f32 %v3907, %v4089
        %v4172 = vadd.f32 %v3908, %v4091
        %v4173 = vadd.f32 %v3909, %v4095
        %v4174 = vadd.f32 %v3910, %v4097
        %v4175 = vadd.f32 %v3911, %v4101
        %v4176 = vadd.f32 %v3912, %v4103
        %v4177 = vadd.f32 %v3913, %v4107
        %v4178 = vadd.f32 %v3914, %v4109
        %v4179 = vadd.f32 %v3915, %v4113
        %v4180 = vadd.f32 %v3916, %v4115
        %v4181 = vadd.f32 %v3917, %v4119
        %v4182 = vadd.f32 %v3918, %v4121
        %v4183 = vadd.f32 %v3919, %v4125
        %v4184 = vadd.f32 %v3920, %v4127
        %v4185 = vadd.f32 %v3921, %v4131
        %v4186 = vadd.f32 %v3922, %v4133
        %v4187 = vadd.f32 %v3923, %v4137
        %v4188 = vadd.f32 %v3924, %v4139
        %v4189 = vadd.f32 %v3925, %v4143
        %v4190 = vadd.f32 %v3926, %v4145
        %v4191 = vadd.f32 %v3927, %v4149
        %v4192 = vadd.f32 %v3928, %v4151
        %v4193 = vadd.f32 %v3929, %v4155
        %v4194 = vadd.f32 %v3930, %v4157
        %v4195 = vadd.f32 %v3931, %v4161
        %v4196 = vadd.f32 %v3932, %v4163
        %4197 = vst [vmem:[#allocation5] sm:$0xff] %v4165
        %4198 = vst [vmem:[#allocation5 + $0x8] sm:$0xff] %v4166
        %4199 = vst [vmem:[#allocation5 + $0x10] sm:$0xff] %v4167
        %4200 = vst [vmem:[#allocation5 + $0x18] sm:$0xff] %v4168
        %4201 = vst [vmem:[#allocation5 + $0x20] sm:$0xff] %v4169
        %4202 = vst [vmem:[#allocation5 + $0x28] sm:$0xff] %v4170
        %4203 = vst [vmem:[#allocation5 + $0x30] sm:$0xff] %v4171
        %4204 = vst [vmem:[#allocation5 + $0x38] sm:$0xff] %v4172
        %4205 = vst [vmem:[#allocation5 + $0x40] sm:$0xff] %v4173
        %4206 = vst [vmem:[#allocation5 + $0x48] sm:$0xff] %v4174
        %4207 = vst [vmem:[#allocation5 + $0x50] sm:$0xff] %v4175
        %4208 = vst [vmem:[#allocation5 + $0x58] sm:$0xff] %v4176
        %4209 = vst [vmem:[#allocation5 + $0x60] sm:$0xff] %v4177
        %4210 = vst [vmem:[#allocation5 + $0x68] sm:$0xff] %v4178
        %4211 = vst [vmem:[#allocation5 + $0x70] sm:$0xff] %v4179
        %4212 = vst [vmem:[#allocation5 + $0x78] sm:$0xff] %v4180
        %4213 = vst [vmem:[#allocation5 + $0x80] sm:$0xff] %v4181
        %4214 = vst [vmem:[#allocation5 + $0x88] sm:$0xff] %v4182
        %4215 = vst [vmem:[#allocation5 + $0x90] sm:$0xff] %v4183
        %4216 = vst [vmem:[#allocation5 + $0x98] sm:$0xff] %v4184
        %4217 = vst [vmem:[#allocation5 + $0xa0] sm:$0xff] %v4185
        %4218 = vst [vmem:[#allocation5 + $0xa8] sm:$0xff] %v4186
        %4219 = vst [vmem:[#allocation5 + $0xb0] sm:$0xff] %v4187
        %4220 = vst [vmem:[#allocation5 + $0xb8] sm:$0xff] %v4188
        %4221 = vst [vmem:[#allocation5 + $0xc0] sm:$0xff] %v4189
        %4222 = vst [vmem:[#allocation5 + $0xc8] sm:$0xff] %v4190
        %4223 = vst [vmem:[#allocation5 + $0xd0] sm:$0xff] %v4191
        %4224 = vst [vmem:[#allocation5 + $0xd8] sm:$0xff] %v4192
        %4225 = vst [vmem:[#allocation5 + $0xe0] sm:$0xff] %v4193
        %4226 = vst [vmem:[#allocation5 + $0xe8] sm:$0xff] %v4194
        %4227 = vst [vmem:[#allocation5 + $0xf0] sm:$0xff] %v4195
        %4228 = vst [vmem:[#allocation5 + $0xf8] sm:$0xff] %v4196
        %v4229 = vld [vmem:[#allocation5] sm:$0xff]
        %v4230 = vld [vmem:[#allocation5 + $0x8] sm:$0xff]
        %v4231 = vld [vmem:[#allocation5 + $0x10] sm:$0xff]
        %v4232 = vld [vmem:[#allocation5 + $0x18] sm:$0xff]
        %v4233 = vld [vmem:[#allocation5 + $0x20] sm:$0xff]
        %v4234 = vld [vmem:[#allocation5 + $0x28] sm:$0xff]
        %v4235 = vld [vmem:[#allocation5 + $0x30] sm:$0xff]
        %v4236 = vld [vmem:[#allocation5 + $0x38] sm:$0xff]
        %v4237 = vld [vmem:[#allocation5 + $0x40] sm:$0xff]
        %v4238 = vld [vmem:[#allocation5 + $0x48] sm:$0xff]
        %v4239 = vld [vmem:[#allocation5 + $0x50] sm:$0xff]
        %v4240 = vld [vmem:[#allocation5 + $0x58] sm:$0xff]
        %v4241 = vld [vmem:[#allocation5 + $0x60] sm:$0xff]
        %v4242 = vld [vmem:[#allocation5 + $0x68] sm:$0xff]
        %v4243 = vld [vmem:[#allocation5 + $0x70] sm:$0xff]
        %v4244 = vld [vmem:[#allocation5 + $0x78] sm:$0xff]
        %v4245 = vld [vmem:[#allocation5 + $0x80] sm:$0xff]
        %v4246 = vld [vmem:[#allocation5 + $0x88] sm:$0xff]
        %v4247 = vld [vmem:[#allocation5 + $0x90] sm:$0xff]
        %v4248 = vld [vmem:[#allocation5 + $0x98] sm:$0xff]
        %v4249 = vld [vmem:[#allocation5 + $0xa0] sm:$0xff]
        %v4250 = vld [vmem:[#allocation5 + $0xa8] sm:$0xff]
        %v4251 = vld [vmem:[#allocation5 + $0xb0] sm:$0xff]
        %v4252 = vld [vmem:[#allocation5 + $0xb8] sm:$0xff]
        %v4253 = vld [vmem:[#allocation5 + $0xc0] sm:$0xff]
        %v4254 = vld [vmem:[#allocation5 + $0xc8] sm:$0xff]
        %v4255 = vld [vmem:[#allocation5 + $0xd0] sm:$0xff]
        %v4256 = vld [vmem:[#allocation5 + $0xd8] sm:$0xff]
        %v4257 = vld [vmem:[#allocation5 + $0xe0] sm:$0xff]
        %v4258 = vld [vmem:[#allocation5 + $0xe8] sm:$0xff]
        %v4259 = vld [vmem:[#allocation5 + $0xf0] sm:$0xff]
        %v4260 = vld [vmem:[#allocation5 + $0xf8] sm:$0xff]
        %v4261 = vxor.u32 %v4229, 2147483648
        %v4262 = vxor.u32 %v4230, 2147483648
        %v4263 = vxor.u32 %v4231, 2147483648
        %v4264 = vxor.u32 %v4232, 2147483648
        %v4265 = vxor.u32 %v4233, 2147483648
        %v4266 = vxor.u32 %v4234, 2147483648
        %v4267 = vxor.u32 %v4235, 2147483648
        %v4268 = vxor.u32 %v4236, 2147483648
        %v4269 = vmul.f32 %v4261, 1.442695
        %v4270 = vpow.pop %v4269
        %v4271 = vmul.f32 %v4262, 1.442695
        %v4272 = vpow.pop %v4271
        %v4273 = vmul.f32 %v4263, 1.442695
        %v4274 = vpow.pop %v4273
        %v4275 = vmul.f32 %v4264, 1.442695
        %v4276 = vpow.pop %v4275
        %v4277 = vmul.f32 %v4265, 1.442695
        %v4278 = vpow.pop %v4277
        %v4279 = vmul.f32 %v4266, 1.442695
        %v4280 = vpow.pop %v4279
        %v4281 = vmul.f32 %v4267, 1.442695
        %v4282 = vpow.pop %v4281
        %v4283 = vmul.f32 %v4268, 1.442695
        %v4284 = vpow.pop %v4283
        %v4285 = vadd.f32 %v4270, 1.0
        %v4286 = vadd.f32 %v4272, 1.0
        %v4287 = vadd.f32 %v4274, 1.0
        %v4288 = vadd.f32 %v4276, 1.0
        %v4289 = vadd.f32 %v4278, 1.0
        %v4290 = vadd.f32 %v4280, 1.0
        %v4291 = vadd.f32 %v4282, 1.0
        %v4292 = vadd.f32 %v4284, 1.0
        %v4293 = vrcp.pop %v4285
        %v4294 = vmul.f32 1.0, %v4293
        %v4295 = vrcp.pop %v4286
        %v4296 = vmul.f32 1.0, %v4295
        %v4297 = vrcp.pop %v4287
        %v4298 = vmul.f32 1.0, %v4297
        %v4299 = vrcp.pop %v4288
        %v4300 = vmul.f32 1.0, %v4299
        %v4301 = vrcp.pop %v4289
        %v4302 = vmul.f32 1.0, %v4301
        %v4303 = vrcp.pop %v4290
        %v4304 = vmul.f32 1.0, %v4303
        %v4305 = vrcp.pop %v4291
        %v4306 = vmul.f32 1.0, %v4305
        %v4307 = vrcp.pop %v4292
        %v4308 = vmul.f32 1.0, %v4307
        %v4309 = vxor.u32 %v4237, 2147483648
        %v4310 = vxor.u32 %v4238, 2147483648
        %v4311 = vxor.u32 %v4239, 2147483648
        %v4312 = vxor.u32 %v4240, 2147483648
        %v4313 = vxor.u32 %v4241, 2147483648
        %v4314 = vxor.u32 %v4242, 2147483648
        %v4315 = vxor.u32 %v4243, 2147483648
        %v4316 = vxor.u32 %v4244, 2147483648
        %v4317 = vmul.f32 %v4309, 1.442695
        %v4318 = vpow.pop %v4317
        %v4319 = vmul.f32 %v4310, 1.442695
        %v4320 = vpow.pop %v4319
        %v4321 = vmul.f32 %v4311, 1.442695
        %v4322 = vpow.pop %v4321
        %v4323 = vmul.f32 %v4312, 1.442695
        %v4324 = vpow.pop %v4323
        %v4325 = vmul.f32 %v4313, 1.442695
        %v4326 = vpow.pop %v4325
        %v4327 = vmul.f32 %v4314, 1.442695
        %v4328 = vpow.pop %v4327
        %v4329 = vmul.f32 %v4315, 1.442695
        %v4330 = vpow.pop %v4329
        %v4331 = vmul.f32 %v4316, 1.442695
        %v4332 = vpow.pop %v4331
        %v4333 = vadd.f32 %v4318, 1.0
        %v4334 = vadd.f32 %v4320, 1.0
        %v4335 = vadd.f32 %v4322, 1.0
        %v4336 = vadd.f32 %v4324, 1.0
        %v4337 = vadd.f32 %v4326, 1.0
        %v4338 = vadd.f32 %v4328, 1.0
        %v4339 = vadd.f32 %v4330, 1.0
        %v4340 = vadd.f32 %v4332, 1.0
        %v4341 = vrcp.pop %v4333
        %v4342 = vmul.f32 1.0, %v4341
        %v4343 = vrcp.pop %v4334
        %v4344 = vmul.f32 1.0, %v4343
        %v4345 = vrcp.pop %v4335
        %v4346 = vmul.f32 1.0, %v4345
        %v4347 = vrcp.pop %v4336
        %v4348 = vmul.f32 1.0, %v4347
        %v4349 = vrcp.pop %v4337
        %v4350 = vmul.f32 1.0, %v4349
        %v4351 = vrcp.pop %v4338
        %v4352 = vmul.f32 1.0, %v4351
        %v4353 = vrcp.pop %v4339
        %v4354 = vmul.f32 1.0, %v4353
        %v4355 = vrcp.pop %v4340
        %v4356 = vmul.f32 1.0, %v4355
        %v4357 = vxor.u32 %v4245, 2147483648
        %v4358 = vxor.u32 %v4246, 2147483648
        %v4359 = vxor.u32 %v4247, 2147483648
        %v4360 = vxor.u32 %v4248, 2147483648
        %v4361 = vxor.u32 %v4249, 2147483648
        %v4362 = vxor.u32 %v4250, 2147483648
        %v4363 = vxor.u32 %v4251, 2147483648
        %v4364 = vxor.u32 %v4252, 2147483648
        %v4365 = vmul.f32 %v4357, 1.442695
        %v4366 = vpow.pop %v4365
        %v4367 = vmul.f32 %v4358, 1.442695
        %v4368 = vpow.pop %v4367
        %v4369 = vmul.f32 %v4359, 1.442695
        %v4370 = vpow.pop %v4369
        %v4371 = vmul.f32 %v4360, 1.442695
        %v4372 = vpow.pop %v4371
        %v4373 = vmul.f32 %v4361, 1.442695
        %v4374 = vpow.pop %v4373
        %v4375 = vmul.f32 %v4362, 1.442695
        %v4376 = vpow.pop %v4375
        %v4377 = vmul.f32 %v4363, 1.442695
        %v4378 = vpow.pop %v4377
        %v4379 = vmul.f32 %v4364, 1.442695
        %v4380 = vpow.pop %v4379
        %v4381 = vadd.f32 %v4366, 1.0
        %v4382 = vadd.f32 %v4368, 1.0
        %v4383 = vadd.f32 %v4370, 1.0
        %v4384 = vadd.f32 %v4372, 1.0
        %v4385 = vadd.f32 %v4374, 1.0
        %v4386 = vadd.f32 %v4376, 1.0
        %v4387 = vadd.f32 %v4378, 1.0
        %v4388 = vadd.f32 %v4380, 1.0
        %v4389 = vrcp.pop %v4381
        %v4390 = vmul.f32 1.0, %v4389
        %v4391 = vrcp.pop %v4382
        %v4392 = vmul.f32 1.0, %v4391
        %v4393 = vrcp.pop %v4383
        %v4394 = vmul.f32 1.0, %v4393
        %v4395 = vrcp.pop %v4384
        %v4396 = vmul.f32 1.0, %v4395
        %v4397 = vrcp.pop %v4385
        %v4398 = vmul.f32 1.0, %v4397
        %v4399 = vrcp.pop %v4386
        %v4400 = vmul.f32 1.0, %v4399
        %v4401 = vrcp.pop %v4387
        %v4402 = vmul.f32 1.0, %v4401
        %v4403 = vrcp.pop %v4388
        %v4404 = vmul.f32 1.0, %v4403
        %v4405 = vtanh.pop %v4253
        %v4406 = vtanh.pop %v4254
        %v4407 = vtanh.pop %v4255
        %v4408 = vtanh.pop %v4256
        %v4409 = vtanh.pop %v4257
        %v4410 = vtanh.pop %v4258
        %v4411 = vtanh.pop %v4259
        %v4412 = vtanh.pop %v4260
        %v4413 = vld [vmem:[#allocation4] sm:$0xff]
        %v4414 = vld [vmem:[#allocation4 + $0x8] sm:$0xff]
        %v4415 = vld [vmem:[#allocation4 + $0x10] sm:$0xff]
        %v4416 = vld [vmem:[#allocation4 + $0x18] sm:$0xff]
        %v4417 = vld [vmem:[#allocation4 + $0x20] sm:$0xff]
        %v4418 = vld [vmem:[#allocation4 + $0x28] sm:$0xff]
        %v4419 = vld [vmem:[#allocation4 + $0x30] sm:$0xff]
        %v4420 = vld [vmem:[#allocation4 + $0x38] sm:$0xff]
        %v4421 = vmul.f32 %v4342, %v4413
        %v4422 = vmul.f32 %v4344, %v4414
        %v4423 = vmul.f32 %v4346, %v4415
        %v4424 = vmul.f32 %v4348, %v4416
        %v4425 = vmul.f32 %v4350, %v4417
        %v4426 = vmul.f32 %v4352, %v4418
        %v4427 = vmul.f32 %v4354, %v4419
        %v4428 = vmul.f32 %v4356, %v4420
        %v4429 = vmul.f32 %v4294, %v4405
        %v4430 = vmul.f32 %v4296, %v4406
        %v4431 = vmul.f32 %v4298, %v4407
        %v4432 = vmul.f32 %v4300, %v4408
        %v4433 = vmul.f32 %v4302, %v4409
        %v4434 = vmul.f32 %v4304, %v4410
        %v4435 = vmul.f32 %v4306, %v4411
        %v4436 = vmul.f32 %v4308, %v4412
        %v4437 = vadd.f32 %v4421, %v4429
        %v4438 = vadd.f32 %v4422, %v4430
        %v4439 = vadd.f32 %v4423, %v4431
        %v4440 = vadd.f32 %v4424, %v4432
        %v4441 = vadd.f32 %v4425, %v4433
        %v4442 = vadd.f32 %v4426, %v4434
        %v4443 = vadd.f32 %v4427, %v4435
        %v4444 = vadd.f32 %v4428, %v4436
        %v4445 = vtanh.pop %v4437
        %v4446 = vtanh.pop %v4438
        %v4447 = vtanh.pop %v4439
        %v4448 = vtanh.pop %v4440
        %v4449 = vtanh.pop %v4441
        %v4450 = vtanh.pop %v4442
        %v4451 = vtanh.pop %v4443
        %v4452 = vtanh.pop %v4444
        %v4453 = vmul.f32 %v4390, %v4445
        %v4454 = vmul.f32 %v4392, %v4446
        %v4455 = vmul.f32 %v4394, %v4447
        %v4456 = vmul.f32 %v4396, %v4448
        %v4457 = vmul.f32 %v4398, %v4449
        %v4458 = vmul.f32 %v4400, %v4450
        %v4459 = vmul.f32 %v4402, %v4451
        %v4460 = vmul.f32 %v4404, %v4452
        %4461 = vst [vmem:[#allocation4] sm:$0xff] %v4437
        %4462 = vst [vmem:[#allocation4 + $0x8] sm:$0xff] %v4438
        %4463 = vst [vmem:[#allocation4 + $0x10] sm:$0xff] %v4439
        %4464 = vst [vmem:[#allocation4 + $0x18] sm:$0xff] %v4440
        %4465 = vst [vmem:[#allocation4 + $0x20] sm:$0xff] %v4441
        %4466 = vst [vmem:[#allocation4 + $0x28] sm:$0xff] %v4442
        %4467 = vst [vmem:[#allocation4 + $0x30] sm:$0xff] %v4443
        %4468 = vst [vmem:[#allocation4 + $0x38] sm:$0xff] %v4444
        %4469 = vst [vmem:[#allocation3] sm:$0xff] %v4453
        %4470 = vst [vmem:[#allocation3 + $0x8] sm:$0xff] %v4454
        %4471 = vst [vmem:[#allocation3 + $0x10] sm:$0xff] %v4455
        %4472 = vst [vmem:[#allocation3 + $0x18] sm:$0xff] %v4456
        %4473 = vst [vmem:[#allocation3 + $0x20] sm:$0xff] %v4457
        %4474 = vst [vmem:[#allocation3 + $0x28] sm:$0xff] %v4458
        %4475 = vst [vmem:[#allocation3 + $0x30] sm:$0xff] %v4459
        %4476 = vst [vmem:[#allocation3 + $0x38] sm:$0xff] %v4460
        %4477 = vst [vmem:[%s302] sm:$0xff] %v4453
        %4478 = vst [vmem:[%s302 + $0x8] sm:$0xff] %v4454
        %4479 = vst [vmem:[%s302 + $0x10] sm:$0xff] %v4455
        %4480 = vst [vmem:[%s302 + $0x18] sm:$0xff] %v4456
        %4481 = vst [vmem:[%s302 + $0x20] sm:$0xff] %v4457
        %4482 = vst [vmem:[%s302 + $0x28] sm:$0xff] %v4458
        %4483 = vst [vmem:[%s302 + $0x30] sm:$0xff] %v4459
        %4484 = vst [vmem:[%s302 + $0x38] sm:$0xff] %v4460
        %p4485 = scmp.eq.s32.totalorder %s29, 7
        // Predicated region
        $region45: #{tpu_custom_call.1} parent=39 // pred_check
          %p4486 = pneg %p4485
        $region46: #{tpu_custom_call.1} parent=39 // pred_check_branch
          %4488 = sbr.rel (%p4486) target = $region48
        $region47: #{tpu_custom_call.1} parent=39 // pred_region
          %4489 = vst [vmem:[%s309] sm:$0xff] %v4437
          %4490 = vst [vmem:[%s309 + $0x8] sm:$0xff] %v4438
          %4491 = vst [vmem:[%s309 + $0x10] sm:$0xff] %v4439
          %4492 = vst [vmem:[%s309 + $0x18] sm:$0xff] %v4440
          %4493 = vst [vmem:[%s309 + $0x20] sm:$0xff] %v4441
          %4494 = vst [vmem:[%s309 + $0x28] sm:$0xff] %v4442
          %4495 = vst [vmem:[%s309 + $0x30] sm:$0xff] %v4443
          %4496 = vst [vmem:[%s309 + $0x38] sm:$0xff] %v4444
        $region48: #{tpu_custom_call.1} parent=39 // pred_fallthru
          _
        %s4497 = sand.u32 %s168, 1
        %s4498 = scalar_lea.sflag [#allocation7], %s4497
        %s4499 = sand.u32 %s168, 1
        %s4500 = smul.addr %s4499, 64
        %s4501 = scalar_lea.vmem [#allocation6], %s4500
        %s4502 = sand.u32 %s194, 1
        %s4503 = scalar_lea.sflag [#allocation9], %s4502
        %s4504 = sand.u32 %s194, 1
        %s4505 = smul.addr %s4504, 64
        %s4506 = scalar_lea.vmem [#allocation8], %s4505
        // Predicated region
        $region49: #{tpu_custom_call.1} parent=39 // pred_check
          %p4507 = pneg %p178
        $region50: #{tpu_custom_call.1} parent=39 // pred_check_branch
          %4509 = sbr.rel (%p4507) target = $region52
        $region51: #{tpu_custom_call.1} parent=39 // pred_region
          %s4511 = ssub.s32 1024, 1024
          %4512 = vsyncadd %s4498, %s4511
          %s4513 = smul.addr %s28, 8
          %s4514 = smul.addr %s29, 16
          %s4515 = sadd.s32 %s4513, %s4514
          %s4516 = smul.addr %s4515, 128
          %s4517 = scalar_lea.hbm %s5, %s4516
          %s4518 = sshll.u32 %s4501, 4
          %s4519 = int_to_ptr.vmem [resolvable:$true] %s4518
          %4524 = dma.vmem_to_hbm [thread:$0]  %s4519, 1024, %s4517, %s4498, 256, 256, 16
        $region52: #{tpu_custom_call.1} parent=39 // pred_fallthru
          _
        // Predicated region
        $region53: #{tpu_custom_call.1} parent=39 // pred_check
          %p4525 = pneg %p204
        $region54: #{tpu_custom_call.1} parent=39 // pred_check_branch
          %4527 = sbr.rel (%p4525) target = $region56
        $region55: #{tpu_custom_call.1} parent=39 // pred_region
          %s4529 = ssub.s32 1024, 1024
          %4530 = vsyncadd %s4503, %s4529
          %s4531 = smul.addr %s28, 8
          %s4532 = smul.addr %s4531, 128
          %s4533 = scalar_lea.hbm %s6, %s4532
          %s4534 = sshll.u32 %s4506, 4
          %s4535 = int_to_ptr.vmem [resolvable:$true] %s4534
          %4540 = dma.vmem_to_hbm [thread:$0]  %s4535, 1024, %s4533, %s4503, 256, 256, 16
        $region56: #{tpu_custom_call.1} parent=39 // pred_fallthru
          _
      $region40: #{tpu_custom_call.1} parent=5 // pred_fallthru
        _
      %p4541 = scmp.le.s32.totalorder 2, %s19
      // Predicated region
      $region57: #{tpu_custom_call.1} parent=5 // pred_check
        %p4542 = pneg %p4541
      $region58: #{tpu_custom_call.1} parent=5 // pred_check_branch
        %4544 = sbr.rel (%p4542) target = $region60
      $region59: #{tpu_custom_call.1} parent=5 // pred_region
        %s4545 = ssub.s32 %s19, 2
        // Predicated region
        $region61: #{tpu_custom_call.1} parent=59 // pred_check
          %p4546 = pneg %p184
        $region62: #{tpu_custom_call.1} parent=59 // pred_check_branch
          %4548 = sbr.rel (%p4546) target = $region64
        $region63: #{tpu_custom_call.1} parent=59 // pred_region
          %s4549 = sand.u32 %s169, 1
          %s4550 = scalar_lea.sflag [#allocation7], %s4549
          %s4551 = sand.u32 %s169, 1
          %s4552 = smul.addr %s4551, 64
          %s4553 = scalar_lea.vmem [#allocation6], %s4552
          %4554 = dma.done %s4550, 1024
        $region64: #{tpu_custom_call.1} parent=59 // pred_fallthru
          _
        // Predicated region
        $region65: #{tpu_custom_call.1} parent=59 // pred_check
          %p4555 = pneg %p210
        $region66: #{tpu_custom_call.1} parent=59 // pred_check_branch
          %4557 = sbr.rel (%p4555) target = $region68
        $region67: #{tpu_custom_call.1} parent=59 // pred_region
          %s4558 = sand.u32 %s195, 1
          %s4559 = scalar_lea.sflag [#allocation9], %s4558
          %s4560 = sand.u32 %s195, 1
          %s4561 = smul.addr %s4560, 64
          %s4562 = scalar_lea.vmem [#allocation8], %s4561
          %4563 = dma.done %s4559, 1024
        $region68: #{tpu_custom_call.1} parent=59 // pred_fallthru
          _
      $region60: #{tpu_custom_call.1} parent=5 // pred_fallthru
        _
    $region6: #{tpu_custom_call.1} parent=1 // loop_footer
      %s23 = sadd.s32 1, %s19
    $region7: #{tpu_custom_call.1} parent=1 // loop_footer_branch
      %18 = sbr.rel target = $region3
    $region8: #{tpu_custom_call.1} parent=1 // loop_exit
      _
    %4564 = vsyncpa [#allocation7], 1
    %s4565 = scalar_lea.sflag [#allocation7], 1
    %4566 = vsyncpa %s4565, 1
    %4567 = vsyncpa [#allocation9], 1
    %s4568 = scalar_lea.sflag [#allocation9], 1
    %4569 = vsyncpa %s4568, 1

</llo_original>
